<compile_context>
chip_gen: v6e
topology: v6e:2x2x1
jax: 0.10.0
libtpu: 0.0.40
codegen_flags: <defaults>
</compile_context>

<pallas_src>
import functools

import jax
import jax.numpy as jnp
from jax.experimental import pallas as pl
from jax.experimental.pallas import tpu as pltpu


# ----------------------------------------------------------------------------
# Feature probes (run once, eagerly, outside any trace)
# ----------------------------------------------------------------------------
_PROBE_CACHE = {}


def _probe(name, fn):
    if name not in _PROBE_CACHE:
        try:
            with jax.ensure_compile_time_eval():
                _PROBE_CACHE[name] = bool(fn())
        except Exception:
            _PROBE_CACHE[name] = False
    return _PROBE_CACHE[name]


def _probe_single_buffer():
    def k(x_ref, o_ref):
        o_ref[...] = x_ref[...] + 1.0

    x = jnp.zeros((8, 128), jnp.float32)
    y = pl.pallas_call(
        k,
        out_shape=jax.ShapeDtypeStruct((8, 128), jnp.float32),
        grid=(2,),
        in_specs=[pl.BlockSpec((8, 128), lambda i: (0, 0),
                               pipeline_mode=pl.Buffered(buffer_count=1))],
        out_specs=pl.BlockSpec((8, 128), lambda i: (0, 0)),
    )(x)
    jax.block_until_ready(y)
    return jnp.allclose(y, 1.0)


def _probe_lane_pack():
    # Exercises the (TW, C) <-> (TH, W*C) and (TH, W*C) <-> (TH, W, C) reshapes used by the
    # lane-dense output packing, including row-major round-trip semantics.
    def k(x_ref, o_ref):
        v = x_ref[...].reshape(8, 128)
        w = (v + 0.0).reshape(8, 16, 8)
        o_ref[...] = w.reshape(128, 8)

    x = jnp.arange(128 * 8, dtype=jnp.float32).reshape(128, 8)
    y = pl.pallas_call(k, out_shape=jax.ShapeDtypeStruct((128, 8), jnp.float32))(x)
    jax.block_until_ready(y)
    return jnp.array_equal(y, x)


def _probe_fused_taps():
    # Lane-dim concat of narrow bf16 slabs + small-K MXU dot (the fused-tap path).
    def k(x_ref, o_ref):
        xs = x_ref[...].astype(jnp.bfloat16)
        lhs = jnp.concatenate([xs, xs, xs], axis=1)          # (128, 12)
        w = jnp.ones((12, 8), jnp.bfloat16)
        o_ref[...] = jnp.dot(lhs, w, preferred_element_type=jnp.float32)

    x = jnp.ones((128, 4), jnp.float32)
    y = pl.pallas_call(k, out_shape=jax.ShapeDtypeStruct((128, 8), jnp.float32))(x)
    jax.block_until_ready(y)
    return jnp.allclose(y, 12.0)


def _single_buffer_ok():
    return _probe("single_buffer", _probe_single_buffer)


def _lane_pack_ok():
    return _probe("lane_pack", _probe_lane_pack)


def _fused_taps_ok():
    return _probe("fused_taps", _probe_fused_taps)


# ----------------------------------------------------------------------------
# Sizing helpers
# ----------------------------------------------------------------------------
def _device_vmem_bytes():
    try:
        info = pltpu.get_tpu_info()
        cap = int(getattr(info, "vmem_capacity_bytes", 0))
        if cap > 0:
            return cap
    except Exception:
        pass
    return 64 << 20  # conservative default: v7x per-TensorCore VMEM


def _stage_vmem_bytes(TH, W, Ci, Co, fuse):
    TW = TH * W
    cmax = max(Ci, Co)
    b = 0
    b += 2 * TW * Ci * 4                     # input activation block (double-buffered)
    b += 2 * TW * Co * 4                     # output block (double-buffered)
    b += 2 * (2 * 2 * W * cmax * 4)          # halo side inputs
    b += (TH + 2) * W * cmax * 2             # zero-halo bf16 scratch
    if fuse:
        b += TW * 3 * cmax * 2               # fused-tap lhs value
    b += 6 * TW * cmax * 4                   # live f32 temporaries (headroom)
    b += 2 * (3 * Ci * Co * 2 + Ci * Co * 2 + 8 * Co * 4)   # weights + small vectors
    return b


def _pick_tile_h(H, W, Cin, Cout, cap):
    budget = min(int(0.30 * cap), 24 << 20)
    fuse = 3 * max(Cin, Cout) <= 256
    last = H
    for th in range(H, 0, -1):
        if H % th:
            continue
        last = th
        if _stage_vmem_bytes(th, W, Cin, Cout, fuse) <= budget:
            return th
    return last


def _vmem_limit(TH, W, Ci, Co, fuse, cap):
    est = _stage_vmem_bytes(TH, W, Ci, Co, fuse)
    return int(min(int(0.75 * cap), max(24 << 20, 2 * est)))


def _const_spec(shape, single_buffer):
    nd = len(shape)
    imap = lambda n, t, _nd=nd: (0,) * _nd
    if single_buffer:
        return pl.BlockSpec(shape, imap, pipeline_mode=pl.Buffered(buffer_count=1))
    return pl.BlockSpec(shape, imap)


# ----------------------------------------------------------------------------
# Kernel bodies
# ----------------------------------------------------------------------------
def _fill_pad_scratch(pad_ref, body, top, bot, t, n_tiles, TH, norm_act):
    """Fill the (TH+2, W, C) zero-halo scratch with SiLU(GN-affine(.)) in bf16."""
    pad_ref[1:TH + 1] = norm_act(body)
    a_top = norm_act(top)[None]
    a_bot = norm_act(bot)[None]
    pad_ref[0:1] = jnp.where(t > 0, a_top, jnp.zeros_like(a_top))
    pad_ref[TH + 1:TH + 2] = jnp.where(t < n_tiles - 1, a_bot, jnp.zeros_like(a_bot))


def _conv3x1(pad_ref, w_ref, b_ref, TH, W, Ci, fuse):
    """(3,1) conv over the zero-halo scratch; returns (TH*W, Cout) f32 with bias folded in."""
    TW = TH * W
    bias = b_ref[...]
    if fuse:
        # Fused taps: one MXU pass with K = 3*Ci (w_ref is pre-concatenated to (3*Ci, Cout)).
        lhs = jnp.concatenate(
            [pad_ref[k:k + TH].reshape(TW, Ci) for k in range(3)], axis=1)
        return jnp.dot(lhs, w_ref[...], preferred_element_type=jnp.float32) + bias
    out = jnp.dot(pad_ref[0:TH].reshape(TW, Ci), w_ref[0],
                  preferred_element_type=jnp.float32) + bias
    out = out + jnp.dot(pad_ref[1:TH + 1].reshape(TW, Ci), w_ref[1],
                        preferred_element_type=jnp.float32)
    out = out + jnp.dot(pad_ref[2:TH + 2].reshape(TW, Ci), w_ref[2],
                        preferred_element_type=jnp.float32)
    return out


def _make_stage1_kernel(TH, W, Ci, Co, fuse):
    def kernel(x_ref, hx_ref, sc_ref, sh_ref, w_ref, b_ref, h_ref, sums_ref, pad_ref):
        t = pl.program_id(1)
        n_tiles = pl.num_programs(1)
        scale = sc_ref[0]          # (1, Ci)
        shift = sh_ref[0]

        def norm_act(v):
            a = v * scale + shift
            return (a * jax.nn.sigmoid(a)).astype(jnp.bfloat16)

        halos = hx_ref[0, 0]       # (2, W, Ci) f32
        _fill_pad_scratch(pad_ref, x_ref[0], halos[0], halos[1], t, n_tiles, TH, norm_act)

        hval = _conv3x1(pad_ref, w_ref, b_ref, TH, W, Ci, fuse)   # (TH*W, Co) f32
        h_ref[0] = hval.reshape(h_ref.shape[1:])
        # Per-tile partial sums for GroupNorm-2 stats (single pass over the resident tile).
        sums_ref[0, 0, 0:1, :] = jnp.sum(hval, axis=0, keepdims=True)
        sums_ref[0, 0, 1:2, :] = jnp.sum(hval * hval, axis=0, keepdims=True)

    return kernel


def _make_stage2_kernel(TH, W, Ci, Co, fuse, has_shortcut):
    def kernel(*refs):
        if has_shortcut:
            (h_ref, hh_ref, sc_ref, sh_ref, w_ref, b_ref, x_ref,
             ws_ref, bs_ref, o_ref, pad_ref) = refs
        else:
            (h_ref, hh_ref, sc_ref, sh_ref, w_ref, b_ref, x_ref,
             o_ref, pad_ref) = refs
            ws_ref = bs_ref = None

        t = pl.program_id(1)
        n_tiles = pl.num_programs(1)
        TW = TH * W
        scale = sc_ref[0]
        shift = sh_ref[0]

        def norm_act(v):
            a = v * scale + shift
            return (a * jax.nn.sigmoid(a)).astype(jnp.bfloat16)

        hb = h_ref[0].reshape(TH, W, Co)
        halos = hh_ref[0, 0]
        _fill_pad_scratch(pad_ref, hb, halos[0], halos[1], t, n_tiles, TH, norm_act)

        # TODO(synk): dropout>0 training-mode RNG mask would be applied here; Identity (eval/p=0).
        y = _conv3x1(pad_ref, w_ref, b_ref, TH, W, Co, fuse)      # (TW, Co) f32

        if has_shortcut:
            xs = x_ref[0].reshape(TW, Ci).astype(jnp.bfloat16)
            y = y + (jnp.dot(xs, ws_ref[...], preferred_element_type=jnp.float32)
                     + bs_ref[...])
        else:
            y = y + x_ref[0].reshape(TW, Ci)   # identity shortcut, x re-read at the add site

        o_ref[0] = y.reshape(o_ref.shape[1:])

    return kernel


# ----------------------------------------------------------------------------
# Wrapper
# ----------------------------------------------------------------------------
def conv_block_pallas_nhwc(x_nhwc, params, *, tile_h=None):
    """x_nhwc: (N, H, W, Cin) f32 -> (N, H, W, Cout) f32."""
    N, H, W, Cin = x_nhwc.shape
    G = params["num_groups"]
    Cout = params["b1"].shape[0]
    has_shortcut = params.get("ws") is not None
    assert Cin % G == 0 and Cout % G == 0, "num_groups must divide channel counts"
    eps = 1e-6

    cap = _device_vmem_bytes()
    if tile_h is None:
        TH = _pick_tile_h(H, W, Cin, Cout, cap)
    else:
        TH = int(tile_h)
        assert H % TH == 0, "tile_h must divide H"
    nT = H // TH
    TW = TH * W

    fuse1 = (3 * Cin <= 256) and _fused_taps_ok()
    fuse2 = (3 * Cout <= 256) and _fused_taps_ok()
    pack = (Cout < 128) and (TH % 8 == 0 or TH == H) and _lane_pack_ok()
    sb = _single_buffer_ok()

    # TODO(synk): accept bf16 x / emit bf16 output to halve HBM traffic (v5e) when downstream allows.
    x = x_nhwc.astype(jnp.float32)

    # ---- GroupNorm-1 stats (one XLA reduction over x), folded into a per-(n,c) affine ----
    g1, be1 = params["gamma1"], params["beta1"]
    cg1 = Cin // G
    xg = x.reshape(N, H * W, G, cg1)
    mean1 = jnp.mean(xg, axis=(1, 3))                                     # (N, G)
    var1 = jnp.mean(jnp.square(xg - mean1[:, None, :, None]), axis=(1, 3))
    inv1 = jax.lax.rsqrt(var1 + eps)
    mean1c = jnp.repeat(mean1, cg1, axis=1)
    inv1c = jnp.repeat(inv1, cg1, axis=1)
    scale1 = (inv1c * g1[None, :]).reshape(N, 1, Cin)
    shift1 = (be1[None, :] - mean1c * inv1c * g1[None, :]).reshape(N, 1, Cin)

    # 1-row halos of x for the (3,1) conv (boundary rows masked to zero in-kernel).
    t0 = jnp.arange(nT) * TH
    halo_x = jnp.stack([x[:, jnp.maximum(t0 - 1, 0)],
                        x[:, jnp.minimum(t0 + TH, H - 1)]], axis=2)        # (N, nT, 2, W, Cin)

    w1 = params["w1"].astype(jnp.bfloat16)                                 # (3, Cin, Cout)
    if fuse1:
        w1 = w1.reshape(3 * Cin, Cout)
    b1 = params["b1"].reshape(1, Cout).astype(jnp.float32)

    if pack:
        h_shape, h_block = (N, H, W * Cout), (1, TH, W * Cout)
        h_imap = lambda n, t: (n, t, 0)
    else:
        h_shape, h_block = (N, H, W, Cout), (1, TH, W, Cout)
        h_imap = lambda n, t: (n, t, 0, 0)

    kernel1 = _make_stage1_kernel(TH, W, Cin, Cout, fuse1)
    h, sums = pl.pallas_call(
        kernel1,
        out_shape=(jax.ShapeDtypeStruct(h_shape, jnp.float32),
                   jax.ShapeDtypeStruct((N, nT, 2, Cout), jnp.float32)),
        grid=(N, nT),
        in_specs=[
            pl.BlockSpec((1, TH, W, Cin), lambda n, t: (n, t, 0, 0)),
            pl.BlockSpec((1, 1, 2, W, Cin), lambda n, t: (n, t, 0, 0, 0)),
            pl.BlockSpec((1, 1, Cin), lambda n, t: (n, 0, 0)),
            pl.BlockSpec((1, 1, Cin), lambda n, t: (n, 0, 0)),
            _const_spec(w1.shape, sb),
            _const_spec(b1.shape, sb),
        ],
        out_specs=(
            pl.BlockSpec(h_block, h_imap),
            pl.BlockSpec((1, 1, 2, Cout), lambda n, t: (n, t, 0, 0)),
        ),
        scratch_shapes=[pltpu.VMEM((TH + 2, W, Cin), jnp.bfloat16)],
        compiler_params=pltpu.CompilerParams(
            dimension_semantics=("parallel", "parallel"),
            vmem_limit_bytes=_vmem_limit(TH, W, Cin, Cout, fuse1, cap)),
    )(x, halo_x, scale1, shift1, w1, b1)

    # ---- GroupNorm-2 stats from stage-1 partial sums ----
    g2, be2 = params["gamma2"], params["beta2"]
    cg2 = Cout // G
    S = jnp.sum(sums[:, :, 0, :], axis=1)                                  # (N, Cout)
    S2 = jnp.sum(sums[:, :, 1, :], axis=1)
    n_el = float(H * W * cg2)
    Sg = jnp.sum(S.reshape(N, G, cg2), axis=-1)
    S2g = jnp.sum(S2.reshape(N, G, cg2), axis=-1)
    mean2 = Sg / n_el
    # E[x^2]-E[x]^2 in f32; clamp at 0 guards cancellation (two-pass Welford if GN accuracy matters).
    var2 = jnp.maximum(S2g / n_el - mean2 * mean2, 0.0)
    inv2 = jax.lax.rsqrt(var2 + eps)
    mean2c = jnp.repeat(mean2, cg2, axis=1)
    inv2c = jnp.repeat(inv2, cg2, axis=1)
    scale2 = (inv2c * g2[None, :]).reshape(N, 1, Cout)
    shift2 = (be2[None, :] - mean2c * inv2c * g2[None, :]).reshape(N, 1, Cout)

    h4 = h.reshape(N, H, W, Cout)
    halo_h = jnp.stack([h4[:, jnp.maximum(t0 - 1, 0)],
                        h4[:, jnp.minimum(t0 + TH, H - 1)]], axis=2)       # (N, nT, 2, W, Cout)

    w2 = params["w2"].astype(jnp.bfloat16)                                 # (3, Cout, Cout)
    if fuse2:
        w2 = w2.reshape(3 * Cout, Cout)
    b2 = params["b2"].reshape(1, Cout).astype(jnp.float32)

    in_arrays2 = [h, halo_h, scale2, shift2, w2, b2, x]
    in_specs2 = [
        pl.BlockSpec(h_block, h_imap),
        pl.BlockSpec((1, 1, 2, W, Cout), lambda n, t: (n, t, 0, 0, 0)),
        pl.BlockSpec((1, 1, Cout), lambda n, t: (n, 0, 0)),
        pl.BlockSpec((1, 1, Cout), lambda n, t: (n, 0, 0)),
        _const_spec(w2.shape, sb),
        _const_spec(b2.shape, sb),
        pl.BlockSpec((1, TH, W, Cin), lambda n, t: (n, t, 0, 0)),
    ]
    if has_shortcut:
        ws = params["ws"].astype(jnp.bfloat16)                             # (Cin, Cout)
        bs = params["bs"].reshape(1, Cout).astype(jnp.float32)
        in_arrays2 += [ws, bs]
        in_specs2 += [_const_spec(ws.shape, sb), _const_spec(bs.shape, sb)]

    kernel2 = _make_stage2_kernel(TH, W, Cin, Cout, fuse2, has_shortcut)
    out = pl.pallas_call(
        kernel2,
        out_shape=jax.ShapeDtypeStruct(h_shape, jnp.float32),
        grid=(N, nT),
        in_specs=in_specs2,
        out_specs=pl.BlockSpec(h_block, h_imap),
        scratch_shapes=[pltpu.VMEM((TH + 2, W, Cout), jnp.bfloat16)],
        compiler_params=pltpu.CompilerParams(
            dimension_semantics=("parallel", "parallel"),
            vmem_limit_bytes=_vmem_limit(TH, W, max(Cin, Cout), Cout, fuse2, cap)),
    )(*in_arrays2)

    return out.reshape(N, H, W, Cout)


def conv_block_pallas(x_nchw, params, *, tile_h=None):
    """NCHW (PyTorch convention) wrapper around the NHWC kernels."""
    x_nhwc = jnp.transpose(x_nchw, (0, 2, 3, 1))
    out = conv_block_pallas_nhwc(x_nhwc, params, tile_h=tile_h)
    return jnp.transpose(out, (0, 3, 1, 2))


# ---------------- parameter construction (deterministic) ----------------
def make_params(key, in_channels, out_channels, num_groups):
    Cin, Cout, G = in_channels, out_channels, num_groups
    ks = jax.random.split(key, 8)

    w1_t = 0.2 * jax.random.normal(ks[0], (Cout, Cin, 3, 1), jnp.float32)   # torch (Co,Ci,3,1)
    b1 = 0.1 * jax.random.normal(ks[1], (Cout,), jnp.float32)
    w2_t = 0.2 * jax.random.normal(ks[2], (Cout, Cout, 3, 1), jnp.float32)
    b2 = 0.1 * jax.random.normal(ks[3], (Cout,), jnp.float32)
    gamma1 = 1.0 + 0.1 * jax.random.normal(ks[4], (Cin,), jnp.float32)
    beta1 = 0.1 * jax.random.normal(ks[5], (Cin,), jnp.float32)
    gamma2 = 1.0 + 0.1 * jax.random.normal(ks[6], (Cout,), jnp.float32)
    beta2 = 0.1 * jax.random.normal(ks[7], (Cout,), jnp.float32)

    if Cin != Cout:
        kws, kbs = jax.random.split(jax.random.fold_in(key, 99))
        ws_t = 0.2 * jax.random.normal(kws, (Cout, Cin, 1, 1), jnp.float32)
        bs = 0.1 * jax.random.normal(kbs, (Cout,), jnp.float32)
        ws = jnp.transpose(ws_t[:, :, 0, 0], (1, 0))                        # (Cin, Cout)
    else:
        ws_t, bs, ws = None, None, None

    params = dict(
        num_groups=G,
        gamma1=gamma1, beta1=beta1,
        w1=jnp.transpose(w1_t[..., 0], (2, 1, 0)),                          # (3, Cin, Cout)
        b1=b1,
        gamma2=gamma2, beta2=beta2,
        w2=jnp.transpose(w2_t[..., 0], (2, 1, 0)),                          # (3, Cout, Cout)
        b2=b2,
        ws=ws, bs=bs,
    )
    torch_layout = dict(w1_t=w1_t, b1=b1, w2_t=w2_t, b2=b2, ws_t=ws_t, bs=bs,
                        gamma1=gamma1, beta1=beta1, gamma2=gamma2, beta2=beta2)
    return params, torch_layout


# ---------------- pure-JAX reference (f32, for verification) ----------------
def ref_forward(x, tl, num_groups):
    def gn(a, gamma, beta):
        N, C, H, W = a.shape
        G = num_groups
        ag = a.reshape(N, G, C // G, H, W)
        mean = ag.mean(axis=(2, 3, 4), keepdims=True)
        var = ((ag - mean) ** 2).mean(axis=(2, 3, 4), keepdims=True)
        an = ((ag - mean) / jnp.sqrt(var + 1e-6)).reshape(N, C, H, W)
        return an * gamma[None, :, None, None] + beta[None, :, None, None]

    def conv(a, w, b, pad_h):
        y = jax.lax.conv_general_dilated(
            a, w, window_strides=(1, 1), padding=((pad_h, pad_h), (0, 0)),
            dimension_numbers=("NCHW", "OIHW", "NCHW"))
        return y + b[None, :, None, None]

    h = conv(jax.nn.silu(gn(x, tl["gamma1"], tl["beta1"])), tl["w1_t"], tl["b1"], 1)
    h = conv(jax.nn.silu(gn(h, tl["gamma2"], tl["beta2"])), tl["w2_t"], tl["b2"], 1)
    if tl["ws_t"] is not None:
        sc = conv(x, tl["ws_t"], tl["bs"], 0)
    else:
        sc = x
    return sc + h


if __name__ == "__main__":
    N, H, W, G = 2, 16, 16, 2
    key = jax.random.PRNGKey(0)

    # Case 1: Cin != Cout -> learned 1x1 shortcut, forced 2 H-tiles (exercises halo masking).
    # Case 2: Cin == Cout -> identity shortcut, auto tile (single tile at this size).
    for (Cin, Cout, th) in [(4, 8, 8), (8, 8, None)]:
        kx, kp = jax.random.split(jax.random.fold_in(key, Cin * 100 + Cout))
        x = jax.random.normal(kx, (N, Cin, H, W), jnp.float32)
        params, torch_layout = make_params(kp, Cin, Cout, G)

        fn = jax.jit(functools.partial(conv_block_pallas, params=params, tile_h=th))
        out = jax.block_until_ready(fn(x))
        ref = jax.block_until_ready(ref_forward(x, torch_layout, G))

        assert out.shape == (N, Cout, H, W)
        # bf16 MXU operands vs f32 reference -> looser tolerance.
        err = float(jnp.max(jnp.abs(out - ref)))
        assert jnp.allclose(out, ref, rtol=5e-2, atol=5e-2), err

    print("KERNEL_OK")
</pallas_src>

<mosaic_0001>
module attributes {stable_mosaic.version = 11 : i64} {
  func.func @kernel(%arg0: i32, %arg1: i32, %arg2: memref<1x8x16x4xf32, #tpu.memory_space<vmem>>, %arg3: memref<1x1x2x16x4xf32, #tpu.memory_space<vmem>>, %arg4: memref<1x1x4xf32, #tpu.memory_space<vmem>>, %arg5: memref<1x1x4xf32, #tpu.memory_space<vmem>>, %arg6: memref<3x4x8xbf16, #tpu.memory_space<vmem>>, %arg7: memref<1x8xf32, #tpu.memory_space<vmem>>, %arg8: memref<1x8x16x8xf32, #tpu.memory_space<vmem>>, %arg9: memref<1x1x2x8xf32, #tpu.memory_space<vmem>>, %arg10: memref<10x16x4xbf16, #tpu.memory_space<vmem>>) attributes {dimension_semantics = [#tpu.dimension_semantics<parallel>, #tpu.dimension_semantics<parallel>], iteration_bounds = array<i64: 2, 2>, scalar_prefetch = 0 : i64, scratch_operands = 1 : i64, tpu.core_type = #tpu.core_type<tc>, window_params = [{transform_indices = @transform_0, window_bounds = array<i64: 1, 8, 16, 4>}, {transform_indices = @transform_1, window_bounds = array<i64: 1, 1, 2, 16, 4>}, {transform_indices = @transform_2, window_bounds = array<i64: 1, 1, 4>}, {transform_indices = @transform_3, window_bounds = array<i64: 1, 1, 4>}, {pipeline_mode = #tpu.pipeline_mode<synchronous>, transform_indices = @transform_4, window_bounds = array<i64: 3, 4, 8>}, {pipeline_mode = #tpu.pipeline_mode<synchronous>, transform_indices = @transform_5, window_bounds = array<i64: 1, 8>}, {transform_indices = @transform_6, window_bounds = array<i64: 1, 8, 16, 8>}, {transform_indices = @transform_7, window_bounds = array<i64: 1, 1, 2, 8>}]} {
    %c0 = arith.constant 0 : index
    %c0_0 = arith.constant 0 : index
    %c0_1 = arith.constant 0 : index
    %0 = vector.load %arg4[%c0, %c0_0, %c0_1] : memref<1x1x4xf32, #tpu.memory_space<vmem>>, vector<1x1x4xf32>
    %1 = vector.shape_cast %0 : vector<1x1x4xf32> to vector<1x4xf32>
    %c0_2 = arith.constant 0 : index
    %c0_3 = arith.constant 0 : index
    %c0_4 = arith.constant 0 : index
    %2 = vector.load %arg5[%c0_2, %c0_3, %c0_4] : memref<1x1x4xf32, #tpu.memory_space<vmem>>, vector<1x1x4xf32>
    %3 = vector.shape_cast %2 : vector<1x1x4xf32> to vector<1x4xf32>
    %c0_5 = arith.constant 0 : index
    %c0_6 = arith.constant 0 : index
    %c0_7 = arith.constant 0 : index
    %c0_8 = arith.constant 0 : index
    %c0_9 = arith.constant 0 : index
    %4 = vector.load %arg3[%c0_5, %c0_6, %c0_7, %c0_8, %c0_9] : memref<1x1x2x16x4xf32, #tpu.memory_space<vmem>>, vector<1x1x2x16x4xf32>
    %5 = vector.shape_cast %4 : vector<1x1x2x16x4xf32> to vector<2x16x4xf32>
    %c0_10 = arith.constant 0 : index
    %c0_11 = arith.constant 0 : index
    %c0_12 = arith.constant 0 : index
    %c0_13 = arith.constant 0 : index
    %6 = vector.load %arg2[%c0_10, %c0_11, %c0_12, %c0_13] : memref<1x8x16x4xf32, #tpu.memory_space<vmem>>, vector<1x8x16x4xf32>
    %7 = vector.shape_cast %6 : vector<1x8x16x4xf32> to vector<8x16x4xf32>
    %8 = vector.extract_strided_slice %5 {offsets = [0, 0, 0], sizes = [1, 16, 4], strides = [1, 1, 1]} : vector<2x16x4xf32> to vector<1x16x4xf32>
    %9 = vector.shape_cast %8 : vector<1x16x4xf32> to vector<16x4xf32>
    %10 = vector.extract_strided_slice %5 {offsets = [1, 0, 0], sizes = [1, 16, 4], strides = [1, 1, 1]} : vector<2x16x4xf32> to vector<1x16x4xf32>
    %11 = vector.shape_cast %10 : vector<1x16x4xf32> to vector<16x4xf32>
    %12 = vector.shape_cast %1 : vector<1x4xf32> to vector<1x1x4xf32>
    %13 = vector.broadcast %12 : vector<1x1x4xf32> to vector<8x16x4xf32>
    %14 = arith.mulf %7, %13 : vector<8x16x4xf32>
    %15 = vector.shape_cast %3 : vector<1x4xf32> to vector<1x1x4xf32>
    %16 = vector.broadcast %15 : vector<1x1x4xf32> to vector<8x16x4xf32>
    %17 = arith.addf %14, %16 : vector<8x16x4xf32>
    %18 = arith.negf %17 : vector<8x16x4xf32>
    %19 = math.exp %18 : vector<8x16x4xf32>
    %cst = arith.constant 1.000000e+00 : f32
    %20 = vector.broadcast %cst : f32 to vector<8x16x4xf32>
    %21 = arith.addf %20, %19 : vector<8x16x4xf32>
    %22 = arith.divf %20, %21 : vector<8x16x4xf32>
    %23 = arith.mulf %17, %22 : vector<8x16x4xf32>
    %24 = arith.truncf %23 : vector<8x16x4xf32> to vector<8x16x4xbf16>
    %c1 = arith.constant 1 : index
    %c0_14 = arith.constant 0 : index
    %c0_15 = arith.constant 0 : index
    %25 = vector.load %arg10[%c1, %c0_14, %c0_15] : memref<10x16x4xbf16, #tpu.memory_space<vmem>>, vector<8x16x4xbf16>
    tpu.vector_store %arg10[%c1, %c0_14, %c0_15], %24 {strides = array<i32>} : memref<10x16x4xbf16, #tpu.memory_space<vmem>>, vector<8x16x4xbf16>,
    %26 = vector.broadcast %1 : vector<1x4xf32> to vector<16x4xf32>
    %27 = arith.mulf %9, %26 : vector<16x4xf32>
    %28 = vector.broadcast %3 : vector<1x4xf32> to vector<16x4xf32>
    %29 = arith.addf %27, %28 : vector<16x4xf32>
    %30 = arith.negf %29 : vector<16x4xf32>
    %31 = math.exp %30 : vector<16x4xf32>
    %cst_16 = arith.constant 1.000000e+00 : f32
    %32 = vector.broadcast %cst_16 : f32 to vector<16x4xf32>
    %33 = arith.addf %32, %31 : vector<16x4xf32>
    %34 = arith.divf %32, %33 : vector<16x4xf32>
    %35 = arith.mulf %29, %34 : vector<16x4xf32>
    %36 = arith.truncf %35 : vector<16x4xf32> to vector<16x4xbf16>
    %37 = vector.shape_cast %36 : vector<16x4xbf16> to vector<1x16x4xbf16>
    %38 = vector.broadcast %1 : vector<1x4xf32> to vector<16x4xf32>
    %39 = arith.mulf %11, %38 : vector<16x4xf32>
    %40 = vector.broadcast %3 : vector<1x4xf32> to vector<16x4xf32>
    %41 = arith.addf %39, %40 : vector<16x4xf32>
    %42 = arith.negf %41 : vector<16x4xf32>
    %43 = math.exp %42 : vector<16x4xf32>
    %cst_17 = arith.constant 1.000000e+00 : f32
    %44 = vector.broadcast %cst_17 : f32 to vector<16x4xf32>
    %45 = arith.addf %44, %43 : vector<16x4xf32>
    %46 = arith.divf %44, %45 : vector<16x4xf32>
    %47 = arith.mulf %41, %46 : vector<16x4xf32>
    %48 = arith.truncf %47 : vector<16x4xf32> to vector<16x4xbf16>
    %49 = vector.shape_cast %48 : vector<16x4xbf16> to vector<1x16x4xbf16>
    %c0_i32 = arith.constant 0 : i32
    %50 = arith.cmpi sgt, %arg1, %c0_i32 : i32
    %cst_18 = arith.constant 0.000000e+00 : bf16
    %51 = vector.broadcast %cst_18 : bf16 to vector<1x16x4xbf16>
    %52 = arith.select %50, %37, %51 : vector<1x16x4xbf16>
    %c0_19 = arith.constant 0 : index
    %c0_20 = arith.constant 0 : index
    %c0_21 = arith.constant 0 : index
    %53 = vector.load %arg10[%c0_19, %c0_20, %c0_21] : memref<10x16x4xbf16, #tpu.memory_space<vmem>>, vector<1x16x4xbf16>
    tpu.vector_store %arg10[%c0_19, %c0_20, %c0_21], %52 {strides = array<i32>} : memref<10x16x4xbf16, #tpu.memory_space<vmem>>, vector<1x16x4xbf16>,
    %c1_i32 = arith.constant 1 : i32
    %54 = arith.cmpi slt, %arg1, %c1_i32 : i32
    %cst_22 = arith.constant 0.000000e+00 : bf16
    %55 = vector.broadcast %cst_22 : bf16 to vector<1x16x4xbf16>
    %56 = arith.select %54, %49, %55 : vector<1x16x4xbf16>
    %c9 = arith.constant 9 : index
    %c0_23 = arith.constant 0 : index
    %c0_24 = arith.constant 0 : index
    %57 = vector.load %arg10[%c9, %c0_23, %c0_24] : memref<10x16x4xbf16, #tpu.memory_space<vmem>>, vector<1x16x4xbf16>
    tpu.vector_store %arg10[%c9, %c0_23, %c0_24], %56 {strides = array<i32>} : memref<10x16x4xbf16, #tpu.memory_space<vmem>>, vector<1x16x4xbf16>,
    %c0_25 = arith.constant 0 : index
    %c0_26 = arith.constant 0 : index
    %58 = vector.load %arg7[%c0_25, %c0_26] : memref<1x8xf32, #tpu.memory_space<vmem>>, vector<1x8xf32>
    %c0_27 = arith.constant 0 : index
    %c0_28 = arith.constant 0 : index
    %c0_29 = arith.constant 0 : index
    %59 = vector.load %arg10[%c0_27, %c0_28, %c0_29] : memref<10x16x4xbf16, #tpu.memory_space<vmem>>, vector<8x16x4xbf16>
    %60 = vector.shape_cast %59 : vector<8x16x4xbf16> to vector<128x4xbf16>
    %c0_30 = arith.constant 0 : index
    %c0_31 = arith.constant 0 : index
    %c0_32 = arith.constant 0 : index
    %61 = vector.load %arg6[%c0_30, %c0_31, %c0_32] : memref<3x4x8xbf16, #tpu.memory_space<vmem>>, vector<1x4x8xbf16>
    %62 = vector.shape_cast %61 : vector<1x4x8xbf16> to vector<4x8xbf16>
    %cst_33 = arith.constant dense<0.000000e+00> : vector<128x8xf32>
    %63 = tpu.matmul %60, %62, %cst_33 {dimension_numbers = #tpu.dot_dimension_numbers<[1], [0], [0], [1], [0, 0, 1, 1], [], []>} : vector<128x4xbf16>, vector<4x8xbf16>, vector<128x8xf32> -> vector<128x8xf32>
    %64 = vector.broadcast %58 : vector<1x8xf32> to vector<128x8xf32>
    %65 = arith.addf %63, %64 : vector<128x8xf32>
    %c1_34 = arith.constant 1 : index
    %c0_35 = arith.constant 0 : index
    %c0_36 = arith.constant 0 : index
    %66 = vector.load %arg10[%c1_34, %c0_35, %c0_36] : memref<10x16x4xbf16, #tpu.memory_space<vmem>>, vector<8x16x4xbf16>
    %67 = vector.shape_cast %66 : vector<8x16x4xbf16> to vector<128x4xbf16>
    %c1_37 = arith.constant 1 : index
    %c0_38 = arith.constant 0 : index
    %c0_39 = arith.constant 0 : index
    %68 = vector.load %arg6[%c1_37, %c0_38, %c0_39] : memref<3x4x8xbf16, #tpu.memory_space<vmem>>, vector<1x4x8xbf16>
    %69 = vector.shape_cast %68 : vector<1x4x8xbf16> to vector<4x8xbf16>
    %cst_40 = arith.constant dense<0.000000e+00> : vector<128x8xf32>
    %70 = tpu.matmul %67, %69, %cst_40 {dimension_numbers = #tpu.dot_dimension_numbers<[1], [0], [0], [1], [0, 0, 1, 1], [], []>} : vector<128x4xbf16>, vector<4x8xbf16>, vector<128x8xf32> -> vector<128x8xf32>
    %71 = arith.addf %65, %70 : vector<128x8xf32>
    %c2 = arith.constant 2 : index
    %c0_41 = arith.constant 0 : index
    %c0_42 = arith.constant 0 : index
    %72 = vector.load %arg10[%c2, %c0_41, %c0_42] : memref<10x16x4xbf16, #tpu.memory_space<vmem>>, vector<8x16x4xbf16>
    %73 = vector.shape_cast %72 : vector<8x16x4xbf16> to vector<128x4xbf16>
    %c2_43 = arith.constant 2 : index
    %c0_44 = arith.constant 0 : index
    %c0_45 = arith.constant 0 : index
    %74 = vector.load %arg6[%c2_43, %c0_44, %c0_45] : memref<3x4x8xbf16, #tpu.memory_space<vmem>>, vector<1x4x8xbf16>
    %75 = vector.shape_cast %74 : vector<1x4x8xbf16> to vector<4x8xbf16>
    %cst_46 = arith.constant dense<0.000000e+00> : vector<128x8xf32>
    %76 = tpu.matmul %73, %75, %cst_46 {dimension_numbers = #tpu.dot_dimension_numbers<[1], [0], [0], [1], [0, 0, 1, 1], [], []>} : vector<128x4xbf16>, vector<4x8xbf16>, vector<128x8xf32> -> vector<128x8xf32>
    %77 = arith.addf %71, %76 : vector<128x8xf32>
    %78 = vector.shape_cast %77 : vector<128x8xf32> to vector<8x16x8xf32>
    %c0_47 = arith.constant 0 : index
    %c0_48 = arith.constant 0 : index
    %c0_49 = arith.constant 0 : index
    %c0_50 = arith.constant 0 : index
    %79 = vector.load %arg8[%c0_47, %c0_48, %c0_49, %c0_50] : memref<1x8x16x8xf32, #tpu.memory_space<vmem>>, vector<1x8x16x8xf32>
    %80 = vector.shape_cast %79 : vector<1x8x16x8xf32> to vector<8x16x8xf32>
    %81 = vector.shape_cast %78 : vector<8x16x8xf32> to vector<1x8x16x8xf32>
    tpu.vector_store %arg8[%c0_47, %c0_48, %c0_49, %c0_50], %81 {strides = array<i32>} : memref<1x8x16x8xf32, #tpu.memory_space<vmem>>, vector<1x8x16x8xf32>,
    %cst_51 = arith.constant dense<0.000000e+00> : vector<8xf32>
    %82 = vector.multi_reduction <add>, %77, %cst_51 [0] : vector<128x8xf32> to vector<8xf32>
    %83 = vector.shape_cast %82 : vector<8xf32> to vector<1x8xf32>
    %c0_52 = arith.constant 0 : index
    %c0_53 = arith.constant 0 : index
    %c0_54 = arith.constant 0 : index
    %c0_55 = arith.constant 0 : index
    %84 = vector.load %arg9[%c0_52, %c0_53, %c0_54, %c0_55] : memref<1x1x2x8xf32, #tpu.memory_space<vmem>>, vector<1x1x1x8xf32>
    %85 = vector.shape_cast %84 : vector<1x1x1x8xf32> to vector<1x8xf32>
    %86 = vector.shape_cast %83 : vector<1x8xf32> to vector<1x1x1x8xf32>
    tpu.vector_store %arg9[%c0_52, %c0_53, %c0_54, %c0_55], %86 {strides = array<i32>} : memref<1x1x2x8xf32, #tpu.memory_space<vmem>>, vector<1x1x1x8xf32>,
    %87 = arith.mulf %77, %77 : vector<128x8xf32>
    %cst_56 = arith.constant dense<0.000000e+00> : vector<8xf32>
    %88 = vector.multi_reduction <add>, %87, %cst_56 [0] : vector<128x8xf32> to vector<8xf32>
    %89 = vector.shape_cast %88 : vector<8xf32> to vector<1x8xf32>
    %c0_57 = arith.constant 0 : index
    %c0_58 = arith.constant 0 : index
    %c1_59 = arith.constant 1 : index
    %c0_60 = arith.constant 0 : index
    %90 = vector.load %arg9[%c0_57, %c0_58, %c1_59, %c0_60] : memref<1x1x2x8xf32, #tpu.memory_space<vmem>>, vector<1x1x1x8xf32>
    %91 = vector.shape_cast %90 : vector<1x1x1x8xf32> to vector<1x8xf32>
    %92 = vector.shape_cast %89 : vector<1x8xf32> to vector<1x1x1x8xf32>
    tpu.vector_store %arg9[%c0_57, %c0_58, %c1_59, %c0_60], %92 {strides = array<i32>} : memref<1x1x2x8xf32, #tpu.memory_space<vmem>>, vector<1x1x1x8xf32>,
    return
  }
  func.func @transform_0(%arg0: i32, %arg1: i32) -> (i32, i32, i32, i32) {
    %c0_i32 = arith.constant 0 : i32
    %c0_i32_0 = arith.constant 0 : i32
    %c0_i32_1 = arith.constant 0 : i32
    return %arg0, %arg1, %c0_i32, %c0_i32_0 : i32, i32, i32, i32
  }
  func.func @transform_1(%arg0: i32, %arg1: i32) -> (i32, i32, i32, i32, i32) {
    %c0_i32 = arith.constant 0 : i32
    %c0_i32_0 = arith.constant 0 : i32
    %c0_i32_1 = arith.constant 0 : i32
    %c0_i32_2 = arith.constant 0 : i32
    return %arg0, %arg1, %c0_i32, %c0_i32_0, %c0_i32_1 : i32, i32, i32, i32, i32
  }
  func.func @transform_2(%arg0: i32, %arg1: i32) -> (i32, i32, i32) {
    %c0_i32 = arith.constant 0 : i32
    %c0_i32_0 = arith.constant 0 : i32
    %c0_i32_1 = arith.constant 0 : i32
    return %arg0, %c0_i32, %c0_i32_0 : i32, i32, i32
  }
  func.func @transform_3(%arg0: i32, %arg1: i32) -> (i32, i32, i32) {
    %c0_i32 = arith.constant 0 : i32
    %c0_i32_0 = arith.constant 0 : i32
    %c0_i32_1 = arith.constant 0 : i32
    return %arg0, %c0_i32, %c0_i32_0 : i32, i32, i32
  }
  func.func @transform_4(%arg0: i32, %arg1: i32) -> (i32, i32, i32) {
    %c0_i32 = arith.constant 0 : i32
    %c0_i32_0 = arith.constant 0 : i32
    %c0_i32_1 = arith.constant 0 : i32
    %c0_i32_2 = arith.constant 0 : i32
    return %c0_i32, %c0_i32_0, %c0_i32_1 : i32, i32, i32
  }
  func.func @transform_5(%arg0: i32, %arg1: i32) -> (i32, i32) {
    %c0_i32 = arith.constant 0 : i32
    %c0_i32_0 = arith.constant 0 : i32
    %c0_i32_1 = arith.constant 0 : i32
    return %c0_i32, %c0_i32_0 : i32, i32
  }
  func.func @transform_6(%arg0: i32, %arg1: i32) -> (i32, i32, i32, i32) {
    %c0_i32 = arith.constant 0 : i32
    %c0_i32_0 = arith.constant 0 : i32
    %c0_i32_1 = arith.constant 0 : i32
    return %arg0, %arg1, %c0_i32, %c0_i32_0 : i32, i32, i32, i32
  }
  func.func @transform_7(%arg0: i32, %arg1: i32) -> (i32, i32, i32, i32) {
    %c0_i32 = arith.constant 0 : i32
    %c0_i32_0 = arith.constant 0 : i32
    %c0_i32_1 = arith.constant 0 : i32
    return %arg0, %arg1, %c0_i32, %c0_i32_0 : i32, i32, i32, i32
  }
}

module attributes {stable_mosaic.version = 11 : i64} {
  func.func @kernel(%arg0: i32, %arg1: i32, %arg2: memref<1x8x16x8xf32, #tpu.memory_space<vmem>>, %arg3: memref<1x1x2x16x8xf32, #tpu.memory_space<vmem>>, %arg4: memref<1x1x8xf32, #tpu.memory_space<vmem>>, %arg5: memref<1x1x8xf32, #tpu.memory_space<vmem>>, %arg6: memref<3x8x8xbf16, #tpu.memory_space<vmem>>, %arg7: memref<1x8xf32, #tpu.memory_space<vmem>>, %arg8: memref<1x8x16x4xf32, #tpu.memory_space<vmem>>, %arg9: memref<4x8xbf16, #tpu.memory_space<vmem>>, %arg10: memref<1x8xf32, #tpu.memory_space<vmem>>, %arg11: memref<1x8x16x8xf32, #tpu.memory_space<vmem>>, %arg12: memref<10x16x8xbf16, #tpu.memory_space<vmem>>) attributes {dimension_semantics = [#tpu.dimension_semantics<parallel>, #tpu.dimension_semantics<parallel>], iteration_bounds = array<i64: 2, 2>, scalar_prefetch = 0 : i64, scratch_operands = 1 : i64, tpu.core_type = #tpu.core_type<tc>, window_params = [{transform_indices = @transform_0, window_bounds = array<i64: 1, 8, 16, 8>}, {transform_indices = @transform_1, window_bounds = array<i64: 1, 1, 2, 16, 8>}, {transform_indices = @transform_2, window_bounds = array<i64: 1, 1, 8>}, {transform_indices = @transform_3, window_bounds = array<i64: 1, 1, 8>}, {pipeline_mode = #tpu.pipeline_mode<synchronous>, transform_indices = @transform_4, window_bounds = array<i64: 3, 8, 8>}, {pipeline_mode = #tpu.pipeline_mode<synchronous>, transform_indices = @transform_5, window_bounds = array<i64: 1, 8>}, {transform_indices = @transform_6, window_bounds = array<i64: 1, 8, 16, 4>}, {pipeline_mode = #tpu.pipeline_mode<synchronous>, transform_indices = @transform_7, window_bounds = array<i64: 4, 8>}, {pipeline_mode = #tpu.pipeline_mode<synchronous>, transform_indices = @transform_8, window_bounds = array<i64: 1, 8>}, {transform_indices = @transform_9, window_bounds = array<i64: 1, 8, 16, 8>}]} {
    %c0 = arith.constant 0 : index
    %c0_0 = arith.constant 0 : index
    %c0_1 = arith.constant 0 : index
    %0 = vector.load %arg4[%c0, %c0_0, %c0_1] : memref<1x1x8xf32, #tpu.memory_space<vmem>>, vector<1x1x8xf32>
    %1 = vector.shape_cast %0 : vector<1x1x8xf32> to vector<1x8xf32>
    %c0_2 = arith.constant 0 : index
    %c0_3 = arith.constant 0 : index
    %c0_4 = arith.constant 0 : index
    %2 = vector.load %arg5[%c0_2, %c0_3, %c0_4] : memref<1x1x8xf32, #tpu.memory_space<vmem>>, vector<1x1x8xf32>
    %3 = vector.shape_cast %2 : vector<1x1x8xf32> to vector<1x8xf32>
    %c0_5 = arith.constant 0 : index
    %c0_6 = arith.constant 0 : index
    %c0_7 = arith.constant 0 : index
    %c0_8 = arith.constant 0 : index
    %4 = vector.load %arg2[%c0_5, %c0_6, %c0_7, %c0_8] : memref<1x8x16x8xf32, #tpu.memory_space<vmem>>, vector<1x8x16x8xf32>
    %5 = vector.shape_cast %4 : vector<1x8x16x8xf32> to vector<8x16x8xf32>
    %c0_9 = arith.constant 0 : index
    %c0_10 = arith.constant 0 : index
    %c0_11 = arith.constant 0 : index
    %c0_12 = arith.constant 0 : index
    %c0_13 = arith.constant 0 : index
    %6 = vector.load %arg3[%c0_9, %c0_10, %c0_11, %c0_12, %c0_13] : memref<1x1x2x16x8xf32, #tpu.memory_space<vmem>>, vector<1x1x2x16x8xf32>
    %7 = vector.shape_cast %6 : vector<1x1x2x16x8xf32> to vector<2x16x8xf32>
    %8 = vector.extract_strided_slice %7 {offsets = [0, 0, 0], sizes = [1, 16, 8], strides = [1, 1, 1]} : vector<2x16x8xf32> to vector<1x16x8xf32>
    %9 = vector.shape_cast %8 : vector<1x16x8xf32> to vector<16x8xf32>
    %10 = vector.extract_strided_slice %7 {offsets = [1, 0, 0], sizes = [1, 16, 8], strides = [1, 1, 1]} : vector<2x16x8xf32> to vector<1x16x8xf32>
    %11 = vector.shape_cast %10 : vector<1x16x8xf32> to vector<16x8xf32>
    %12 = vector.shape_cast %1 : vector<1x8xf32> to vector<1x1x8xf32>
    %13 = vector.broadcast %12 : vector<1x1x8xf32> to vector<8x16x8xf32>
    %14 = arith.mulf %5, %13 : vector<8x16x8xf32>
    %15 = vector.shape_cast %3 : vector<1x8xf32> to vector<1x1x8xf32>
    %16 = vector.broadcast %15 : vector<1x1x8xf32> to vector<8x16x8xf32>
    %17 = arith.addf %14, %16 : vector<8x16x8xf32>
    %18 = arith.negf %17 : vector<8x16x8xf32>
    %19 = math.exp %18 : vector<8x16x8xf32>
    %cst = arith.constant 1.000000e+00 : f32
    %20 = vector.broadcast %cst : f32 to vector<8x16x8xf32>
    %21 = arith.addf %20, %19 : vector<8x16x8xf32>
    %22 = arith.divf %20, %21 : vector<8x16x8xf32>
    %23 = arith.mulf %17, %22 : vector<8x16x8xf32>
    %24 = arith.truncf %23 : vector<8x16x8xf32> to vector<8x16x8xbf16>
    %c1 = arith.constant 1 : index
    %c0_14 = arith.constant 0 : index
    %c0_15 = arith.constant 0 : index
    %25 = vector.load %arg12[%c1, %c0_14, %c0_15] : memref<10x16x8xbf16, #tpu.memory_space<vmem>>, vector<8x16x8xbf16>
    tpu.vector_store %arg12[%c1, %c0_14, %c0_15], %24 {strides = array<i32>} : memref<10x16x8xbf16, #tpu.memory_space<vmem>>, vector<8x16x8xbf16>,
    %26 = vector.broadcast %1 : vector<1x8xf32> to vector<16x8xf32>
    %27 = arith.mulf %9, %26 : vector<16x8xf32>
    %28 = vector.broadcast %3 : vector<1x8xf32> to vector<16x8xf32>
    %29 = arith.addf %27, %28 : vector<16x8xf32>
    %30 = arith.negf %29 : vector<16x8xf32>
    %31 = math.exp %30 : vector<16x8xf32>
    %cst_16 = arith.constant 1.000000e+00 : f32
    %32 = vector.broadcast %cst_16 : f32 to vector<16x8xf32>
    %33 = arith.addf %32, %31 : vector<16x8xf32>
    %34 = arith.divf %32, %33 : vector<16x8xf32>
    %35 = arith.mulf %29, %34 : vector<16x8xf32>
    %36 = arith.truncf %35 : vector<16x8xf32> to vector<16x8xbf16>
    %37 = vector.shape_cast %36 : vector<16x8xbf16> to vector<1x16x8xbf16>
    %38 = vector.broadcast %1 : vector<1x8xf32> to vector<16x8xf32>
    %39 = arith.mulf %11, %38 : vector<16x8xf32>
    %40 = vector.broadcast %3 : vector<1x8xf32> to vector<16x8xf32>
    %41 = arith.addf %39, %40 : vector<16x8xf32>
    %42 = arith.negf %41 : vector<16x8xf32>
    %43 = math.exp %42 : vector<16x8xf32>
    %cst_17 = arith.constant 1.000000e+00 : f32
    %44 = vector.broadcast %cst_17 : f32 to vector<16x8xf32>
    %45 = arith.addf %44, %43 : vector<16x8xf32>
    %46 = arith.divf %44, %45 : vector<16x8xf32>
    %47 = arith.mulf %41, %46 : vector<16x8xf32>
    %48 = arith.truncf %47 : vector<16x8xf32> to vector<16x8xbf16>
    %49 = vector.shape_cast %48 : vector<16x8xbf16> to vector<1x16x8xbf16>
    %c0_i32 = arith.constant 0 : i32
    %50 = arith.cmpi sgt, %arg1, %c0_i32 : i32
    %cst_18 = arith.constant 0.000000e+00 : bf16
    %51 = vector.broadcast %cst_18 : bf16 to vector<1x16x8xbf16>
    %52 = arith.select %50, %37, %51 : vector<1x16x8xbf16>
    %c0_19 = arith.constant 0 : index
    %c0_20 = arith.constant 0 : index
    %c0_21 = arith.constant 0 : index
    %53 = vector.load %arg12[%c0_19, %c0_20, %c0_21] : memref<10x16x8xbf16, #tpu.memory_space<vmem>>, vector<1x16x8xbf16>
    tpu.vector_store %arg12[%c0_19, %c0_20, %c0_21], %52 {strides = array<i32>} : memref<10x16x8xbf16, #tpu.memory_space<vmem>>, vector<1x16x8xbf16>,
    %c1_i32 = arith.constant 1 : i32
    %54 = arith.cmpi slt, %arg1, %c1_i32 : i32
    %cst_22 = arith.constant 0.000000e+00 : bf16
    %55 = vector.broadcast %cst_22 : bf16 to vector<1x16x8xbf16>
    %56 = arith.select %54, %49, %55 : vector<1x16x8xbf16>
    %c9 = arith.constant 9 : index
    %c0_23 = arith.constant 0 : index
    %c0_24 = arith.constant 0 : index
    %57 = vector.load %arg12[%c9, %c0_23, %c0_24] : memref<10x16x8xbf16, #tpu.memory_space<vmem>>, vector<1x16x8xbf16>
    tpu.vector_store %arg12[%c9, %c0_23, %c0_24], %56 {strides = array<i32>} : memref<10x16x8xbf16, #tpu.memory_space<vmem>>, vector<1x16x8xbf16>,
    %c0_25 = arith.constant 0 : index
    %c0_26 = arith.constant 0 : index
    %58 = vector.load %arg7[%c0_25, %c0_26] : memref<1x8xf32, #tpu.memory_space<vmem>>, vector<1x8xf32>
    %c0_27 = arith.constant 0 : index
    %c0_28 = arith.constant 0 : index
    %c0_29 = arith.constant 0 : index
    %59 = vector.load %arg12[%c0_27, %c0_28, %c0_29] : memref<10x16x8xbf16, #tpu.memory_space<vmem>>, vector<8x16x8xbf16>
    %60 = vector.shape_cast %59 : vector<8x16x8xbf16> to vector<128x8xbf16>
    %c0_30 = arith.constant 0 : index
    %c0_31 = arith.constant 0 : index
    %c0_32 = arith.constant 0 : index
    %61 = vector.load %arg6[%c0_30, %c0_31, %c0_32] : memref<3x8x8xbf16, #tpu.memory_space<vmem>>, vector<1x8x8xbf16>
    %62 = vector.shape_cast %61 : vector<1x8x8xbf16> to vector<8x8xbf16>
    %cst_33 = arith.constant dense<0.000000e+00> : vector<128x8xf32>
    %63 = tpu.matmul %60, %62, %cst_33 {dimension_numbers = #tpu.dot_dimension_numbers<[1], [0], [0], [1], [0, 0, 1, 1], [], []>} : vector<128x8xbf16>, vector<8x8xbf16>, vector<128x8xf32> -> vector<128x8xf32>
    %64 = vector.broadcast %58 : vector<1x8xf32> to vector<128x8xf32>
    %65 = arith.addf %63, %64 : vector<128x8xf32>
    %c1_34 = arith.constant 1 : index
    %c0_35 = arith.constant 0 : index
    %c0_36 = arith.constant 0 : index
    %66 = vector.load %arg12[%c1_34, %c0_35, %c0_36] : memref<10x16x8xbf16, #tpu.memory_space<vmem>>, vector<8x16x8xbf16>
    %67 = vector.shape_cast %66 : vector<8x16x8xbf16> to vector<128x8xbf16>
    %c1_37 = arith.constant 1 : index
    %c0_38 = arith.constant 0 : index
    %c0_39 = arith.constant 0 : index
    %68 = vector.load %arg6[%c1_37, %c0_38, %c0_39] : memref<3x8x8xbf16, #tpu.memory_space<vmem>>, vector<1x8x8xbf16>
    %69 = vector.shape_cast %68 : vector<1x8x8xbf16> to vector<8x8xbf16>
    %cst_40 = arith.constant dense<0.000000e+00> : vector<128x8xf32>
    %70 = tpu.matmul %67, %69, %cst_40 {dimension_numbers = #tpu.dot_dimension_numbers<[1], [0], [0], [1], [0, 0, 1, 1], [], []>} : vector<128x8xbf16>, vector<8x8xbf16>, vector<128x8xf32> -> vector<128x8xf32>
    %71 = arith.addf %65, %70 : vector<128x8xf32>
    %c2 = arith.constant 2 : index
    %c0_41 = arith.constant 0 : index
    %c0_42 = arith.constant 0 : index
    %72 = vector.load %arg12[%c2, %c0_41, %c0_42] : memref<10x16x8xbf16, #tpu.memory_space<vmem>>, vector<8x16x8xbf16>
    %73 = vector.shape_cast %72 : vector<8x16x8xbf16> to vector<128x8xbf16>
    %c2_43 = arith.constant 2 : index
    %c0_44 = arith.constant 0 : index
    %c0_45 = arith.constant 0 : index
    %74 = vector.load %arg6[%c2_43, %c0_44, %c0_45] : memref<3x8x8xbf16, #tpu.memory_space<vmem>>, vector<1x8x8xbf16>
    %75 = vector.shape_cast %74 : vector<1x8x8xbf16> to vector<8x8xbf16>
    %cst_46 = arith.constant dense<0.000000e+00> : vector<128x8xf32>
    %76 = tpu.matmul %73, %75, %cst_46 {dimension_numbers = #tpu.dot_dimension_numbers<[1], [0], [0], [1], [0, 0, 1, 1], [], []>} : vector<128x8xbf16>, vector<8x8xbf16>, vector<128x8xf32> -> vector<128x8xf32>
    %77 = arith.addf %71, %76 : vector<128x8xf32>
    %c0_47 = arith.constant 0 : index
    %c0_48 = arith.constant 0 : index
    %c0_49 = arith.constant 0 : index
    %c0_50 = arith.constant 0 : index
    %78 = vector.load %arg8[%c0_47, %c0_48, %c0_49, %c0_50] : memref<1x8x16x4xf32, #tpu.memory_space<vmem>>, vector<1x8x16x4xf32>
    %79 = vector.shape_cast %78 : vector<1x8x16x4xf32> to vector<8x16x4xf32>
    %80 = vector.shape_cast %79 : vector<8x16x4xf32> to vector<128x4xf32>
    %81 = arith.truncf %80 : vector<128x4xf32> to vector<128x4xbf16>
    %c0_51 = arith.constant 0 : index
    %c0_52 = arith.constant 0 : index
    %82 = vector.load %arg9[%c0_51, %c0_52] : memref<4x8xbf16, #tpu.memory_space<vmem>>, vector<4x8xbf16>
    %cst_53 = arith.constant dense<0.000000e+00> : vector<128x8xf32>
    %83 = tpu.matmul %81, %82, %cst_53 {dimension_numbers = #tpu.dot_dimension_numbers<[1], [0], [0], [1], [0, 0, 1, 1], [], []>} : vector<128x4xbf16>, vector<4x8xbf16>, vector<128x8xf32> -> vector<128x8xf32>
    %c0_54 = arith.constant 0 : index
    %c0_55 = arith.constant 0 : index
    %84 = vector.load %arg10[%c0_54, %c0_55] : memref<1x8xf32, #tpu.memory_space<vmem>>, vector<1x8xf32>
    %85 = vector.broadcast %84 : vector<1x8xf32> to vector<128x8xf32>
    %86 = arith.addf %83, %85 : vector<128x8xf32>
    %87 = arith.addf %77, %86 : vector<128x8xf32>
    %88 = vector.shape_cast %87 : vector<128x8xf32> to vector<8x16x8xf32>
    %c0_56 = arith.constant 0 : index
    %c0_57 = arith.constant 0 : index
    %c0_58 = arith.constant 0 : index
    %c0_59 = arith.constant 0 : index
    %89 = vector.load %arg11[%c0_56, %c0_57, %c0_58, %c0_59] : memref<1x8x16x8xf32, #tpu.memory_space<vmem>>, vector<1x8x16x8xf32>
    %90 = vector.shape_cast %89 : vector<1x8x16x8xf32> to vector<8x16x8xf32>
    %91 = vector.shape_cast %88 : vector<8x16x8xf32> to vector<1x8x16x8xf32>
    tpu.vector_store %arg11[%c0_56, %c0_57, %c0_58, %c0_59], %91 {strides = array<i32>} : memref<1x8x16x8xf32, #tpu.memory_space<vmem>>, vector<1x8x16x8xf32>,
    return
  }
  func.func @transform_0(%arg0: i32, %arg1: i32) -> (i32, i32, i32, i32) {
    %c0_i32 = arith.constant 0 : i32
    %c0_i32_0 = arith.constant 0 : i32
    %c0_i32_1 = arith.constant 0 : i32
    return %arg0, %arg1, %c0_i32, %c0_i32_0 : i32, i32, i32, i32
  }
  func.func @transform_1(%arg0: i32, %arg1: i32) -> (i32, i32, i32, i32, i32) {
    %c0_i32 = arith.constant 0 : i32
    %c0_i32_0 = arith.constant 0 : i32
    %c0_i32_1 = arith.constant 0 : i32
    %c0_i32_2 = arith.constant 0 : i32
    return %arg0, %arg1, %c0_i32, %c0_i32_0, %c0_i32_1 : i32, i32, i32, i32, i32
  }
  func.func @transform_2(%arg0: i32, %arg1: i32) -> (i32, i32, i32) {
    %c0_i32 = arith.constant 0 : i32
    %c0_i32_0 = arith.constant 0 : i32
    %c0_i32_1 = arith.constant 0 : i32
    return %arg0, %c0_i32, %c0_i32_0 : i32, i32, i32
  }
  func.func @transform_3(%arg0: i32, %arg1: i32) -> (i32, i32, i32) {
    %c0_i32 = arith.constant 0 : i32
    %c0_i32_0 = arith.constant 0 : i32
    %c0_i32_1 = arith.constant 0 : i32
    return %arg0, %c0_i32, %c0_i32_0 : i32, i32, i32
  }
  func.func @transform_4(%arg0: i32, %arg1: i32) -> (i32, i32, i32) {
    %c0_i32 = arith.constant 0 : i32
    %c0_i32_0 = arith.constant 0 : i32
    %c0_i32_1 = arith.constant 0 : i32
    %c0_i32_2 = arith.constant 0 : i32
    return %c0_i32, %c0_i32_0, %c0_i32_1 : i32, i32, i32
  }
  func.func @transform_5(%arg0: i32, %arg1: i32) -> (i32, i32) {
    %c0_i32 = arith.constant 0 : i32
    %c0_i32_0 = arith.constant 0 : i32
    %c0_i32_1 = arith.constant 0 : i32
    return %c0_i32, %c0_i32_0 : i32, i32
  }
  func.func @transform_6(%arg0: i32, %arg1: i32) -> (i32, i32, i32, i32) {
    %c0_i32 = arith.constant 0 : i32
    %c0_i32_0 = arith.constant 0 : i32
    %c0_i32_1 = arith.constant 0 : i32
    return %arg0, %arg1, %c0_i32, %c0_i32_0 : i32, i32, i32, i32
  }
  func.func @transform_7(%arg0: i32, %arg1: i32) -> (i32, i32) {
    %c0_i32 = arith.constant 0 : i32
    %c0_i32_0 = arith.constant 0 : i32
    %c0_i32_1 = arith.constant 0 : i32
    return %c0_i32, %c0_i32_0 : i32, i32
  }
  func.func @transform_8(%arg0: i32, %arg1: i32) -> (i32, i32) {
    %c0_i32 = arith.constant 0 : i32
    %c0_i32_0 = arith.constant 0 : i32
    %c0_i32_1 = arith.constant 0 : i32
    return %c0_i32, %c0_i32_0 : i32, i32
  }
  func.func @transform_9(%arg0: i32, %arg1: i32) -> (i32, i32, i32, i32) {
    %c0_i32 = arith.constant 0 : i32
    %c0_i32_0 = arith.constant 0 : i32
    %c0_i32_1 = arith.constant 0 : i32
    return %arg0, %arg1, %c0_i32, %c0_i32_0 : i32, i32, i32, i32
  }
}

</mosaic_0001>

<llo_original>
// kernel: conv_block_pallas.2
$region0: #{conv_block_pallas.2}
  #allocation0 [shape = 'u32[]', space=smem, size = 0x4, offset = 0x4, fixed_abs, tag = 'smem constant byte address 0x4 - core index']
  #allocation1 [shape = 'u32[144,128]{1,0:T(1,128)}', space=vmem, size = 0x12000, scoped, tag = 'internal scratch']
  #allocation2 [shape = 'bf16[10,16,4]{2,1,0:T(8,128)(2,1)}', space=vmem, size = 0xa000, scoped, tag = 'scratch operand']
  %s0 = inlined_call_operand.vmem [shape: f32[2,16,16,4], index: 0, kind: input, shape index: {}]
  %s1 = inlined_call_operand.vmem [shape: f32[2,2,2,16,4], index: 1, kind: input, shape index: {}]
  %s2 = inlined_call_operand.vmem [shape: f32[2,1,4], index: 2, kind: input, shape index: {}]
  %s3 = inlined_call_operand.vmem [shape: f32[2,1,4], index: 3, kind: input, shape index: {}]
  %s4 = inlined_call_operand.vmem [shape: bf16[3,4,8], index: 4, kind: input, shape index: {}]
  %s5 = inlined_call_operand.vmem [shape: f32[1,8], index: 5, kind: input, shape index: {}]
  %s6 = inlined_call_operand.vmem [shape: f32[2,16,16,8], index: 6, kind: output, shape index: {0}]
  %s7 = inlined_call_operand.vmem [shape: f32[2,2,2,8], index: 7, kind: output, shape index: {1}]
  %8 = xla_tuple %s6, %s7
  %s9 = sld [smem:[#allocation0]]
  $region65: #{conv_block_pallas.2} parent=0
    _
  %s11 = ssub.s32 1, %s9
  %s12 = scalar_select 0, %s11, %s9
  loop: start=0, step=1, limit=6
  $region2: #{conv_block_pallas.2} parent=0 // loop_pre_header
    _
  $region3: #{conv_block_pallas.2} parent=0 // loop_header
    %s14 = sphi 0, %s18
    %p15 = scmp.ge.s32.totalorder %s14, 6
    %s21 = sphi 0, %s33
    %s22 = sphi 0, %s29
    %s23 = sphi 0, %s21
    %s24 = sphi 0, %s22
    %s25 = sphi 0, %s23
    %s26 = sphi 0, %s24
    %s38 = sphi 0, %s40
    %s41 = sphi 0, %s38
    %s42 = sphi 0, %s41
    %s58 = sphi 0, %s42
    %s66 = sphi 0, %s68
    %s69 = sphi 0, %s66
    %s70 = sphi 0, %s69
    %s86 = sphi 0, %s70
    %s92 = sphi 0, %s94
    %s95 = sphi 0, %s92
    %s96 = sphi 0, %s95
    %s112 = sphi 0, %s96
    %s118 = sphi 0, %s120
    %s121 = sphi 0, %s118
    %s122 = sphi 0, %s121
    %s138 = sphi 0, %s122
    %s142 = sphi 0, %s142
    %s144 = sphi 0, %s142
    %s145 = sphi 0, %s144
    %s159 = sphi 0, %s145
    %s163 = sphi 0, %s163
    %s165 = sphi 0, %s163
    %s166 = sphi 0, %s165
    %s180 = sphi 0, %s166
    %s188 = sphi 0, %s190
    %s191 = sphi 0, %s188
    %s192 = sphi 0, %s191
    %s208 = sphi 0, %s192
    %s216 = sphi 0, %s218
    %s219 = sphi 0, %s216
    %s220 = sphi 0, %s219
    %s236 = sphi 0, %s220
  $region4: #{conv_block_pallas.2} parent=0 // loop_header_branch
    %17 = sbr.rel (%p15) target = $region8
  $region5: #{conv_block_pallas.2} parent=0 // loop_body
    %s19 = ssub.s32 %s14, 1
    %s20 = ssub.s32 %s14, 2
    %s27 = sadd.s32 1, %s22
    %p28 = scmp.ge.s32.totalorder %s27, 2
    %s29 = scalar_select %p28, 0, %s27
    %s30 = sadd.s32 1, %s21
    %s31 = scalar_select %p28, %s30, %s21
    %p32 = scmp.ge.s32.totalorder %s31, 2
    %s33 = scalar_select %p32, 0, %s31
    %s34 = ssub.s32 %s21, %s33
    %s35 = ssub.s32 %s22, %s29
    %s36 = sor.u32 %s34, %s35
    %p37 = scmp.eq.s32.totalorder %s36, 0
    %s39 = sadd.s32 %s38, 1
    %s40 = scalar_select %p37, %s38, %s39
    %p43 = pneg %p37
    %p44 = scmp.eq.s32.totalorder %s14, 3
    %p45 = por %p43, %p44
    %p46 = scmp.ne.s32.totalorder %s38, %s41
    %p47 = scmp.eq.s32.totalorder %s14, 0
    %p48 = por %p46, %p47
    %p49 = scmp.ne.s32.totalorder %s38, %s41
    %p50 = scmp.eq.s32.totalorder %s19, 3
    %p51 = por %p49, %p50
    %p52 = scmp.ne.s32.totalorder %s41, %s42
    %p53 = scmp.eq.s32.totalorder %s19, 0
    %p54 = por %p52, %p53
    %p55 = scmp.ne.s32.totalorder %s41, %s42
    %p56 = scmp.eq.s32.totalorder %s20, 3
    %p57 = por %p55, %p56
    %p59 = scmp.ne.s32.totalorder %s42, %s58
    %p60 = scmp.eq.s32.totalorder %s20, 0
    %p61 = por %p59, %p60
    %s62 = ssub.s32 %s21, %s33
    %s63 = ssub.s32 %s22, %s29
    %s64 = sor.u32 %s62, %s63
    %p65 = scmp.eq.s32.totalorder %s64, 0
    %s67 = sadd.s32 %s66, 1
    %s68 = scalar_select %p65, %s66, %s67
    %p71 = pneg %p65
    %p72 = scmp.eq.s32.totalorder %s14, 3
    %p73 = por %p71, %p72
    %p74 = scmp.ne.s32.totalorder %s66, %s69
    %p75 = scmp.eq.s32.totalorder %s14, 0
    %p76 = por %p74, %p75
    %p77 = scmp.ne.s32.totalorder %s66, %s69
    %p78 = scmp.eq.s32.totalorder %s19, 3
    %p79 = por %p77, %p78
    %p80 = scmp.ne.s32.totalorder %s69, %s70
    %p81 = scmp.eq.s32.totalorder %s19, 0
    %p82 = por %p80, %p81
    %p83 = scmp.ne.s32.totalorder %s69, %s70
    %p84 = scmp.eq.s32.totalorder %s20, 3
    %p85 = por %p83, %p84
    %p87 = scmp.ne.s32.totalorder %s70, %s86
    %p88 = scmp.eq.s32.totalorder %s20, 0
    %p89 = por %p87, %p88
    %s90 = ssub.s32 %s21, %s33
    %p91 = scmp.eq.s32.totalorder %s90, 0
    %s93 = sadd.s32 %s92, 1
    %s94 = scalar_select %p91, %s92, %s93
    %p97 = pneg %p91
    %p98 = scmp.eq.s32.totalorder %s14, 3
    %p99 = por %p97, %p98
    %p100 = scmp.ne.s32.totalorder %s92, %s95
    %p101 = scmp.eq.s32.totalorder %s14, 0
    %p102 = por %p100, %p101
    %p103 = scmp.ne.s32.totalorder %s92, %s95
    %p104 = scmp.eq.s32.totalorder %s19, 3
    %p105 = por %p103, %p104
    %p106 = scmp.ne.s32.totalorder %s95, %s96
    %p107 = scmp.eq.s32.totalorder %s19, 0
    %p108 = por %p106, %p107
    %p109 = scmp.ne.s32.totalorder %s95, %s96
    %p110 = scmp.eq.s32.totalorder %s20, 3
    %p111 = por %p109, %p110
    %p113 = scmp.ne.s32.totalorder %s96, %s112
    %p114 = scmp.eq.s32.totalorder %s20, 0
    %p115 = por %p113, %p114
    %s116 = ssub.s32 %s21, %s33
    %p117 = scmp.eq.s32.totalorder %s116, 0
    %s119 = sadd.s32 %s118, 1
    %s120 = scalar_select %p117, %s118, %s119
    %p123 = pneg %p117
    %p124 = scmp.eq.s32.totalorder %s14, 3
    %p125 = por %p123, %p124
    %p126 = scmp.ne.s32.totalorder %s118, %s121
    %p127 = scmp.eq.s32.totalorder %s14, 0
    %p128 = por %p126, %p127
    %p129 = scmp.ne.s32.totalorder %s118, %s121
    %p130 = scmp.eq.s32.totalorder %s19, 3
    %p131 = por %p129, %p130
    %p132 = scmp.ne.s32.totalorder %s121, %s122
    %p133 = scmp.eq.s32.totalorder %s19, 0
    %p134 = por %p132, %p133
    %p135 = scmp.ne.s32.totalorder %s121, %s122
    %p136 = scmp.eq.s32.totalorder %s20, 3
    %p137 = por %p135, %p136
    %p139 = scmp.ne.s32.totalorder %s122, %s138
    %p140 = scmp.eq.s32.totalorder %s20, 0
    %p141 = por %p139, %p140
    %s143 = sadd.s32 %s142, 1
    %p146 = scmp.eq.s32.totalorder %s14, 3
    %p147 = scmp.ne.s32.totalorder %s142, %s144
    %p148 = scmp.eq.s32.totalorder %s14, 0
    %p149 = por %p147, %p148
    %p150 = scmp.ne.s32.totalorder %s142, %s144
    %p151 = scmp.eq.s32.totalorder %s19, 3
    %p152 = por %p150, %p151
    %p153 = scmp.ne.s32.totalorder %s144, %s145
    %p154 = scmp.eq.s32.totalorder %s19, 0
    %p155 = por %p153, %p154
    %p156 = scmp.ne.s32.totalorder %s144, %s145
    %p157 = scmp.eq.s32.totalorder %s20, 3
    %p158 = por %p156, %p157
    %p160 = scmp.ne.s32.totalorder %s145, %s159
    %p161 = scmp.eq.s32.totalorder %s20, 0
    %p162 = por %p160, %p161
    %s164 = sadd.s32 %s163, 1
    %p167 = scmp.eq.s32.totalorder %s14, 3
    %p168 = scmp.ne.s32.totalorder %s163, %s165
    %p169 = scmp.eq.s32.totalorder %s14, 0
    %p170 = por %p168, %p169
    %p171 = scmp.ne.s32.totalorder %s163, %s165
    %p172 = scmp.eq.s32.totalorder %s19, 3
    %p173 = por %p171, %p172
    %p174 = scmp.ne.s32.totalorder %s165, %s166
    %p175 = scmp.eq.s32.totalorder %s19, 0
    %p176 = por %p174, %p175
    %p177 = scmp.ne.s32.totalorder %s165, %s166
    %p178 = scmp.eq.s32.totalorder %s20, 3
    %p179 = por %p177, %p178
    %p181 = scmp.ne.s32.totalorder %s166, %s180
    %p182 = scmp.eq.s32.totalorder %s20, 0
    %p183 = por %p181, %p182
    %s184 = ssub.s32 %s21, %s33
    %s185 = ssub.s32 %s22, %s29
    %s186 = sor.u32 %s184, %s185
    %p187 = scmp.eq.s32.totalorder %s186, 0
    %s189 = sadd.s32 %s188, 1
    %s190 = scalar_select %p187, %s188, %s189
    %p193 = pneg %p187
    %p194 = scmp.eq.s32.totalorder %s14, 3
    %p195 = por %p193, %p194
    %p196 = scmp.ne.s32.totalorder %s188, %s191
    %p197 = scmp.eq.s32.totalorder %s14, 0
    %p198 = por %p196, %p197
    %p199 = scmp.ne.s32.totalorder %s188, %s191
    %p200 = scmp.eq.s32.totalorder %s19, 3
    %p201 = por %p199, %p200
    %p202 = scmp.ne.s32.totalorder %s191, %s192
    %p203 = scmp.eq.s32.totalorder %s19, 0
    %p204 = por %p202, %p203
    %p205 = scmp.ne.s32.totalorder %s191, %s192
    %p206 = scmp.eq.s32.totalorder %s20, 3
    %p207 = por %p205, %p206
    %p209 = scmp.ne.s32.totalorder %s192, %s208
    %p210 = scmp.eq.s32.totalorder %s20, 0
    %p211 = por %p209, %p210
    %s212 = ssub.s32 %s21, %s33
    %s213 = ssub.s32 %s22, %s29
    %s214 = sor.u32 %s212, %s213
    %p215 = scmp.eq.s32.totalorder %s214, 0
    %s217 = sadd.s32 %s216, 1
    %s218 = scalar_select %p215, %s216, %s217
    %p221 = pneg %p215
    %p222 = scmp.eq.s32.totalorder %s14, 3
    %p223 = por %p221, %p222
    %p224 = scmp.ne.s32.totalorder %s216, %s219
    %p225 = scmp.eq.s32.totalorder %s14, 0
    %p226 = por %p224, %p225
    %p227 = scmp.ne.s32.totalorder %s216, %s219
    %p228 = scmp.eq.s32.totalorder %s19, 3
    %p229 = por %p227, %p228
    %p230 = scmp.ne.s32.totalorder %s219, %s220
    %p231 = scmp.eq.s32.totalorder %s19, 0
    %p232 = por %p230, %p231
    %p233 = scmp.ne.s32.totalorder %s219, %s220
    %p234 = scmp.eq.s32.totalorder %s20, 3
    %p235 = por %p233, %p234
    %p237 = scmp.ne.s32.totalorder %s220, %s236
    %p238 = scmp.eq.s32.totalorder %s20, 0
    %p239 = por %p237, %p238
    %p240 = scmp.le.s32.totalorder 1, %s14
    %p241 = scmp.lt.s32.totalorder %s14, 5
    %p242 = pnand %p240, %p241
    %p243 = pneg %p242
    // Predicated region
    $region9: #{conv_block_pallas.2} parent=5 // pred_check
      _
    $region10: #{conv_block_pallas.2} parent=5 // pred_check_branch
      %245 = sbr.rel (%p242) target = $region12
    $region11: #{conv_block_pallas.2} parent=5 // pred_region
      %s246 = ssub.s32 %s14, 1
      // Predicated region
      $region13: #{conv_block_pallas.2} parent=11 // pred_check
        %p247 = pneg %p155
      $region14: #{conv_block_pallas.2} parent=11 // pred_check_branch
        %249 = sbr.rel (%p247) target = $region16
      $region15: #{conv_block_pallas.2} parent=11 // pred_region
        _
      $region16: #{conv_block_pallas.2} parent=11 // pred_fallthru
        _
      // Predicated region
      $region17: #{conv_block_pallas.2} parent=11 // pred_check
        %p250 = pneg %p176
      $region18: #{conv_block_pallas.2} parent=11 // pred_check_branch
        %252 = sbr.rel (%p250) target = $region20
      $region19: #{conv_block_pallas.2} parent=11 // pred_region
        _
      $region20: #{conv_block_pallas.2} parent=11 // pred_fallthru
        _
    $region12: #{conv_block_pallas.2} parent=5 // pred_fallthru
      _
    %p253 = scmp.lt.s32.totalorder %s14, 4
    // Predicated region
    $region21: #{conv_block_pallas.2} parent=5 // pred_check
      %p254 = pneg %p253
    $region22: #{conv_block_pallas.2} parent=5 // pred_check_branch
      %256 = sbr.rel (%p254) target = $region24
    $region23: #{conv_block_pallas.2} parent=5 // pred_region
      // Predicated region
      $region25: #{conv_block_pallas.2} parent=23 // pred_check
        %p257 = pneg %p48
      $region26: #{conv_block_pallas.2} parent=23 // pred_check_branch
        %259 = sbr.rel (%p257) target = $region28
      $region27: #{conv_block_pallas.2} parent=23 // pred_region
        %s260 = smul.u32 8, %s22
        %p261 = scmp.lt.s32.totalorder %s21, 1
        %s262 = scalar_select %p261, %s21, 1
        %p263 = scmp.lt.s32.totalorder %s260, 15
        %s264 = scalar_select %p263, %s260, 15
        %s265 = smul.addr %s264, 2
        %s266 = smul.addr %s262, 32
        %s267 = sadd.s32 %s265, %s266
        %s268 = smul.addr %s267, 8
        %s269 = scalar_lea.vmem %s0, %s268
        %s270 = smul.u32 8, %s22
      $region28: #{conv_block_pallas.2} parent=23 // pred_fallthru
        _
      // Predicated region
      $region29: #{conv_block_pallas.2} parent=23 // pred_check
        %p271 = pneg %p76
      $region30: #{conv_block_pallas.2} parent=23 // pred_check_branch
        %273 = sbr.rel (%p271) target = $region32
      $region31: #{conv_block_pallas.2} parent=23 // pred_region
        %p274 = scmp.lt.s32.totalorder %s21, 1
        %s275 = scalar_select %p274, %s21, 1
        %p276 = scmp.lt.s32.totalorder %s22, 1
        %s277 = scalar_select %p276, %s22, 1
        %s278 = smul.addr %s277, 4
        %s279 = smul.addr %s275, 8
        %s280 = sadd.s32 %s278, %s279
        %s281 = smul.addr %s280, 8
        %s282 = scalar_lea.vmem %s1, %s281
      $region32: #{conv_block_pallas.2} parent=23 // pred_fallthru
        _
      // Predicated region
      $region33: #{conv_block_pallas.2} parent=23 // pred_check
        %p283 = pneg %p102
      $region34: #{conv_block_pallas.2} parent=23 // pred_check_branch
        %285 = sbr.rel (%p283) target = $region36
      $region35: #{conv_block_pallas.2} parent=23 // pred_region
        %p286 = scmp.lt.s32.totalorder %s21, 1
        %s287 = scalar_select %p286, %s21, 1
        %s288 = scalar_lea.vmem %s2, %s287
      $region36: #{conv_block_pallas.2} parent=23 // pred_fallthru
        _
      // Predicated region
      $region37: #{conv_block_pallas.2} parent=23 // pred_check
        %p289 = pneg %p128
      $region38: #{conv_block_pallas.2} parent=23 // pred_check_branch
        %291 = sbr.rel (%p289) target = $region40
      $region39: #{conv_block_pallas.2} parent=23 // pred_region
        %p292 = scmp.lt.s32.totalorder %s21, 1
        %s293 = scalar_select %p292, %s21, 1
        %s294 = scalar_lea.vmem %s3, %s293
      $region40: #{conv_block_pallas.2} parent=23 // pred_fallthru
        _
    $region24: #{conv_block_pallas.2} parent=5 // pred_fallthru
      _
    %p295 = scmp.le.s32.totalorder 1, %s14
    %p296 = scmp.lt.s32.totalorder %s14, 5
    %p297 = pnand %p295, %p296
    %p298 = pneg %p297
    // Predicated region
    $region41: #{conv_block_pallas.2} parent=5 // pred_check
      _
    $region42: #{conv_block_pallas.2} parent=5 // pred_check_branch
      %300 = sbr.rel (%p297) target = $region44
    $region43: #{conv_block_pallas.2} parent=5 // pred_region
      %s301 = ssub.s32 %s14, 1
      %s302 = smul.u32 8, %s24
      %p303 = scmp.lt.s32.totalorder %s23, 1
      %s304 = scalar_select %p303, %s23, 1
      %p305 = scmp.lt.s32.totalorder %s302, 15
      %s306 = scalar_select %p305, %s302, 15
      %s307 = smul.addr %s306, 2
      %s308 = smul.addr %s304, 32
      %s309 = sadd.s32 %s307, %s308
      %s310 = smul.addr %s309, 8
      %s311 = scalar_lea.vmem %s0, %s310
      %p312 = pneg %p54
      %p313 = pneg %p51
      %p314 = scmp.lt.s32.totalorder %s23, 1
      %s315 = scalar_select %p314, %s23, 1
      %p316 = scmp.lt.s32.totalorder %s24, 1
      %s317 = scalar_select %p316, %s24, 1
      %s318 = smul.addr %s317, 4
      %s319 = smul.addr %s315, 8
      %s320 = sadd.s32 %s318, %s319
      %s321 = smul.addr %s320, 8
      %s322 = scalar_lea.vmem %s1, %s321
      %p323 = pneg %p82
      %p324 = pneg %p79
      %p325 = scmp.lt.s32.totalorder %s23, 1
      %s326 = scalar_select %p325, %s23, 1
      %s327 = scalar_lea.vmem %s2, %s326
      %p328 = pneg %p108
      %p329 = pneg %p105
      %p330 = scmp.lt.s32.totalorder %s23, 1
      %s331 = scalar_select %p330, %s23, 1
      %s332 = scalar_lea.vmem %s3, %s331
      %p333 = pneg %p134
      %p334 = pneg %p131
      %p335 = pneg %p155
      %p336 = pneg %p152
      %p337 = pneg %p176
      %p338 = pneg %p173
      %p339 = pneg %p204
      %p340 = pneg %p201
      %s341 = smul.u32 8, %s24
      %p342 = scmp.lt.s32.totalorder %s23, 1
      %s343 = scalar_select %p342, %s23, 1
      %p344 = scmp.lt.s32.totalorder %s341, 15
      %s345 = scalar_select %p344, %s341, 15
      %s346 = smul.addr %s345, 2
      %s347 = smul.addr %s343, 32
      %s348 = sadd.s32 %s346, %s347
      %s349 = smul.addr %s348, 8
      %s350 = scalar_lea.vmem %s6, %s349
      %p351 = pneg %p232
      %p352 = pneg %p229
      %p353 = scmp.lt.s32.totalorder %s23, 1
      %s354 = scalar_select %p353, %s23, 1
      %p355 = scmp.lt.s32.totalorder %s24, 1
      %s356 = scalar_select %p355, %s24, 1
      %s357 = smul.addr %s354, 2
      %s358 = sadd.s32 %s356, %s357
      %s359 = smul.addr %s358, 2
      %s360 = scalar_lea.vmem %s7, %s359
      %s361 = smul.u32 8, %s24
      %p362 = scmp.lt.s32.totalorder %s23, 1
      %s363 = scalar_select %p362, %s23, 1
      %p364 = scmp.lt.s32.totalorder %s361, 15
      %s365 = scalar_select %p364, %s361, 15
      %s366 = smul.addr %s365, 2
      %s367 = smul.addr %s363, 32
      %s368 = sadd.s32 %s366, %s367
      %s369 = smul.addr %s368, 8
      %s370 = scalar_lea.vmem %s0, %s369
      %s371 = smul.u32 8, %s24
      %p372 = scmp.lt.s32.totalorder %s23, 1
      %s373 = scalar_select %p372, %s23, 1
      %p374 = scmp.lt.s32.totalorder %s24, 1
      %s375 = scalar_select %p374, %s24, 1
      %s376 = smul.addr %s375, 4
      %s377 = smul.addr %s373, 8
      %s378 = sadd.s32 %s376, %s377
      %s379 = smul.addr %s378, 8
      %s380 = scalar_lea.vmem %s1, %s379
      %p381 = scmp.lt.s32.totalorder %s23, 1
      %s382 = scalar_select %p381, %s23, 1
      %s383 = scalar_lea.vmem %s2, %s382
      %p384 = scmp.lt.s32.totalorder %s23, 1
      %s385 = scalar_select %p384, %s23, 1
      %s386 = scalar_lea.vmem %s3, %s385
      %s387 = smul.u32 8, %s24
      %p388 = scmp.lt.s32.totalorder %s23, 1
      %s389 = scalar_select %p388, %s23, 1
      %p390 = scmp.lt.s32.totalorder %s387, 15
      %s391 = scalar_select %p390, %s387, 15
      %s392 = smul.addr %s391, 2
      %s393 = smul.addr %s389, 32
      %s394 = sadd.s32 %s392, %s393
      %s395 = smul.addr %s394, 8
      %s396 = scalar_lea.vmem %s6, %s395
      %s397 = smul.u32 8, %s24
      %p398 = scmp.lt.s32.totalorder %s23, 1
      %s399 = scalar_select %p398, %s23, 1
      %p400 = scmp.lt.s32.totalorder %s24, 1
      %s401 = scalar_select %p400, %s24, 1
      %s402 = smul.addr %s399, 2
      %s403 = sadd.s32 %s401, %s402
      %s404 = smul.addr %s403, 2
      %s405 = scalar_lea.vmem %s7, %s404
      %v407 = vld [vmem:[%s383] sm:$0x1]
      %v408 = vld [vmem:[%s386] sm:$0x1]
      %v409 = vld [vmem:[%s380] sm:$0xff]
      %v410 = vld [vmem:[%s380 + $0x8] sm:$0xff]
      %v411 = vld [vmem:[%s380 + $0x10] sm:$0xff]
      %v412 = vld [vmem:[%s380 + $0x18] sm:$0xff]
      %v413 = vld [vmem:[%s370] sm:$0xff]
      %v414 = vld [vmem:[%s370 + $0x8] sm:$0xff]
      %v415 = vld [vmem:[%s370 + $0x10] sm:$0xff]
      %v416 = vld [vmem:[%s370 + $0x18] sm:$0xff]
      %v417 = vld [vmem:[%s370 + $0x20] sm:$0xff]
      %v418 = vld [vmem:[%s370 + $0x28] sm:$0xff]
      %v419 = vld [vmem:[%s370 + $0x30] sm:$0xff]
      %v420 = vld [vmem:[%s370 + $0x38] sm:$0xff]
      %v421 = vld [vmem:[%s370 + $0x40] sm:$0xff]
      %v422 = vld [vmem:[%s370 + $0x48] sm:$0xff]
      %v423 = vld [vmem:[%s370 + $0x50] sm:$0xff]
      %v424 = vld [vmem:[%s370 + $0x58] sm:$0xff]
      %v425 = vld [vmem:[%s370 + $0x60] sm:$0xff]
      %v426 = vld [vmem:[%s370 + $0x68] sm:$0xff]
      %v427 = vld [vmem:[%s370 + $0x70] sm:$0xff]
      %v428 = vld [vmem:[%s370 + $0x78] sm:$0xff]
      %v430 = vlaneseq
      %v431 = vshrl.u32 %v430, 7
      %v432 = vsub.s32 0, %v431
      %v433 = vrot.slane %v407, %v432
      %v435 = vmul.f32 %v413, %v433
      %v436 = vmul.f32 %v414, %v433
      %v437 = vmul.f32 %v415, %v433
      %v438 = vmul.f32 %v416, %v433
      %v439 = vmul.f32 %v417, %v433
      %v440 = vmul.f32 %v418, %v433
      %v441 = vmul.f32 %v419, %v433
      %v442 = vmul.f32 %v420, %v433
      %v443 = vmul.f32 %v421, %v433
      %v444 = vmul.f32 %v422, %v433
      %v445 = vmul.f32 %v423, %v433
      %v446 = vmul.f32 %v424, %v433
      %v447 = vmul.f32 %v425, %v433
      %v448 = vmul.f32 %v426, %v433
      %v449 = vmul.f32 %v427, %v433
      %v450 = vmul.f32 %v428, %v433
      %v452 = vlaneseq
      %v453 = vshrl.u32 %v452, 7
      %v454 = vsub.s32 0, %v453
      %v455 = vrot.slane %v408, %v454
      %v457 = vadd.f32 %v435, %v455
      %v458 = vadd.f32 %v436, %v455
      %v459 = vadd.f32 %v437, %v455
      %v460 = vadd.f32 %v438, %v455
      %v461 = vadd.f32 %v439, %v455
      %v462 = vadd.f32 %v440, %v455
      %v463 = vadd.f32 %v441, %v455
      %v464 = vadd.f32 %v442, %v455
      %v465 = vadd.f32 %v443, %v455
      %v466 = vadd.f32 %v444, %v455
      %v467 = vadd.f32 %v445, %v455
      %v468 = vadd.f32 %v446, %v455
      %v469 = vadd.f32 %v447, %v455
      %v470 = vadd.f32 %v448, %v455
      %v471 = vadd.f32 %v449, %v455
      %v472 = vadd.f32 %v450, %v455
      %v473 = vxor.u32 %v457, 2147483648
      %v474 = vxor.u32 %v458, 2147483648
      %v475 = vxor.u32 %v459, 2147483648
      %v476 = vxor.u32 %v460, 2147483648
      %v477 = vxor.u32 %v461, 2147483648
      %v478 = vxor.u32 %v462, 2147483648
      %v479 = vxor.u32 %v463, 2147483648
      %v480 = vxor.u32 %v464, 2147483648
      %v481 = vxor.u32 %v465, 2147483648
      %v482 = vxor.u32 %v466, 2147483648
      %v483 = vxor.u32 %v467, 2147483648
      %v484 = vxor.u32 %v468, 2147483648
      %v485 = vxor.u32 %v469, 2147483648
      %v486 = vxor.u32 %v470, 2147483648
      %v487 = vxor.u32 %v471, 2147483648
      %v488 = vxor.u32 %v472, 2147483648
      %v489 = vmul.f32 %v473, 1.442695
      %v490 = vpow.pop %v489
      %v491 = vmul.f32 %v474, 1.442695
      %v492 = vpow.pop %v491
      %v493 = vmul.f32 %v475, 1.442695
      %v494 = vpow.pop %v493
      %v495 = vmul.f32 %v476, 1.442695
      %v496 = vpow.pop %v495
      %v497 = vmul.f32 %v477, 1.442695
      %v498 = vpow.pop %v497
      %v499 = vmul.f32 %v478, 1.442695
      %v500 = vpow.pop %v499
      %v501 = vmul.f32 %v479, 1.442695
      %v502 = vpow.pop %v501
      %v503 = vmul.f32 %v480, 1.442695
      %v504 = vpow.pop %v503
      %v505 = vmul.f32 %v481, 1.442695
      %v506 = vpow.pop %v505
      %v507 = vmul.f32 %v482, 1.442695
      %v508 = vpow.pop %v507
      %v509 = vmul.f32 %v483, 1.442695
      %v510 = vpow.pop %v509
      %v511 = vmul.f32 %v484, 1.442695
      %v512 = vpow.pop %v511
      %v513 = vmul.f32 %v485, 1.442695
      %v514 = vpow.pop %v513
      %v515 = vmul.f32 %v486, 1.442695
      %v516 = vpow.pop %v515
      %v517 = vmul.f32 %v487, 1.442695
      %v518 = vpow.pop %v517
      %v519 = vmul.f32 %v488, 1.442695
      %v520 = vpow.pop %v519
      %v521 = vadd.f32 %v490, 1.0
      %v522 = vadd.f32 %v492, 1.0
      %v523 = vadd.f32 %v494, 1.0
      %v524 = vadd.f32 %v496, 1.0
      %v525 = vadd.f32 %v498, 1.0
      %v526 = vadd.f32 %v500, 1.0
      %v527 = vadd.f32 %v502, 1.0
      %v528 = vadd.f32 %v504, 1.0
      %v529 = vadd.f32 %v506, 1.0
      %v530 = vadd.f32 %v508, 1.0
      %v531 = vadd.f32 %v510, 1.0
      %v532 = vadd.f32 %v512, 1.0
      %v533 = vadd.f32 %v514, 1.0
      %v534 = vadd.f32 %v516, 1.0
      %v535 = vadd.f32 %v518, 1.0
      %v536 = vadd.f32 %v520, 1.0
      %v537 = vrcp.pop %v521
      %v538 = vmul.f32 1.0, %v537
      %v539 = vrcp.pop %v522
      %v540 = vmul.f32 1.0, %v539
      %v541 = vrcp.pop %v523
      %v542 = vmul.f32 1.0, %v541
      %v543 = vrcp.pop %v524
      %v544 = vmul.f32 1.0, %v543
      %v545 = vrcp.pop %v525
      %v546 = vmul.f32 1.0, %v545
      %v547 = vrcp.pop %v526
      %v548 = vmul.f32 1.0, %v547
      %v549 = vrcp.pop %v527
      %v550 = vmul.f32 1.0, %v549
      %v551 = vrcp.pop %v528
      %v552 = vmul.f32 1.0, %v551
      %v553 = vrcp.pop %v529
      %v554 = vmul.f32 1.0, %v553
      %v555 = vrcp.pop %v530
      %v556 = vmul.f32 1.0, %v555
      %v557 = vrcp.pop %v531
      %v558 = vmul.f32 1.0, %v557
      %v559 = vrcp.pop %v532
      %v560 = vmul.f32 1.0, %v559
      %v561 = vrcp.pop %v533
      %v562 = vmul.f32 1.0, %v561
      %v563 = vrcp.pop %v534
      %v564 = vmul.f32 1.0, %v563
      %v565 = vrcp.pop %v535
      %v566 = vmul.f32 1.0, %v565
      %v567 = vrcp.pop %v536
      %v568 = vmul.f32 1.0, %v567
      %v569 = vmul.f32 %v457, %v538
      %v570 = vmul.f32 %v458, %v540
      %v571 = vmul.f32 %v459, %v542
      %v572 = vmul.f32 %v460, %v544
      %v573 = vmul.f32 %v461, %v546
      %v574 = vmul.f32 %v462, %v548
      %v575 = vmul.f32 %v463, %v550
      %v576 = vmul.f32 %v464, %v552
      %v577 = vmul.f32 %v465, %v554
      %v578 = vmul.f32 %v466, %v556
      %v579 = vmul.f32 %v467, %v558
      %v580 = vmul.f32 %v468, %v560
      %v581 = vmul.f32 %v469, %v562
      %v582 = vmul.f32 %v470, %v564
      %v583 = vmul.f32 %v471, %v566
      %v584 = vmul.f32 %v472, %v568
      %v585 = vpack.c.bf16 %v570, %v569
      %v586 = vpack.c.bf16 %v572, %v571
      %v587 = vpack.c.bf16 %v574, %v573
      %v588 = vpack.c.bf16 %v576, %v575
      %v589 = vpack.c.bf16 %v578, %v577
      %v590 = vpack.c.bf16 %v580, %v579
      %v591 = vpack.c.bf16 %v582, %v581
      %v592 = vpack.c.bf16 %v584, %v583
      %v601 = vunpack.c.l.b16 %v585
      %v602 = vunpack.c.h.b16 %v585
      %v603 = vunpack.c.l.b16 %v586
      %v604 = vunpack.c.h.b16 %v586
      %v605 = vunpack.c.l.b16 %v587
      %v606 = vunpack.c.h.b16 %v587
      %v607 = vunpack.c.l.b16 %v588
      %v608 = vunpack.c.h.b16 %v588
      %v609 = vunpack.c.l.b16 %v589
      %v610 = vunpack.c.h.b16 %v589
      %v611 = vunpack.c.l.b16 %v590
      %v612 = vunpack.c.h.b16 %v590
      %v613 = vunpack.c.l.b16 %v591
      %v614 = vunpack.c.h.b16 %v591
      %v615 = vunpack.c.l.b16 %v592
      %v616 = vunpack.c.h.b16 %v592
      %v617 = vpack.c.b16 %v601, %v601
      %v618 = vpack.c.b16 %v602, %v602
      %v619 = vpack.c.b16 %v603, %v603
      %v620 = vpack.c.b16 %v604, %v604
      %v621 = vpack.c.b16 %v605, %v605
      %v622 = vpack.c.b16 %v606, %v606
      %v623 = vpack.c.b16 %v607, %v607
      %v624 = vpack.c.b16 %v608, %v608
      %v625 = vpack.c.b16 %v609, %v609
      %v626 = vpack.c.b16 %v610, %v610
      %v627 = vpack.c.b16 %v611, %v611
      %v628 = vpack.c.b16 %v612, %v612
      %v629 = vpack.c.b16 %v613, %v613
      %v630 = vpack.c.b16 %v614, %v614
      %v631 = vpack.c.b16 %v615, %v615
      %v632 = vpack.c.b16 %v616, %v616
      %s649 = scalar_lea.vmem [#allocation2], 8
      %vm650 = vcmask 27648
      %651 = vst.msk [vmem:[%s649] sm:$0xf] %vm650, %v617
      %652 = vst.msk [vmem:[%s649 + $0x4] sm:$0xf] %vm650, %v618
      %653 = vst.msk [vmem:[%s649 + $0x8] sm:$0xf] %vm650, %v619
      %654 = vst.msk [vmem:[%s649 + $0xc] sm:$0xf] %vm650, %v620
      %655 = vst.msk [vmem:[%s649 + $0x10] sm:$0xf] %vm650, %v621
      %656 = vst.msk [vmem:[%s649 + $0x14] sm:$0xf] %vm650, %v622
      %657 = vst.msk [vmem:[%s649 + $0x18] sm:$0xf] %vm650, %v623
      %658 = vst.msk [vmem:[%s649 + $0x1c] sm:$0xf] %vm650, %v624
      %659 = vst.msk [vmem:[%s649 + $0x20] sm:$0xf] %vm650, %v625
      %660 = vst.msk [vmem:[%s649 + $0x24] sm:$0xf] %vm650, %v626
      %661 = vst.msk [vmem:[%s649 + $0x28] sm:$0xf] %vm650, %v627
      %662 = vst.msk [vmem:[%s649 + $0x2c] sm:$0xf] %vm650, %v628
      %663 = vst.msk [vmem:[%s649 + $0x30] sm:$0xf] %vm650, %v629
      %664 = vst.msk [vmem:[%s649 + $0x34] sm:$0xf] %vm650, %v630
      %665 = vst.msk [vmem:[%s649 + $0x38] sm:$0xf] %vm650, %v631
      %666 = vst.msk [vmem:[%s649 + $0x3c] sm:$0xf] %vm650, %v632
      %v667 = vmul.f32 %v409, %v433
      %v668 = vmul.f32 %v410, %v433
      %v669 = vadd.f32 %v667, %v455
      %v670 = vadd.f32 %v668, %v455
      %v671 = vxor.u32 %v669, 2147483648
      %v672 = vxor.u32 %v670, 2147483648
      %v673 = vmul.f32 %v671, 1.442695
      %v674 = vpow.pop %v673
      %v675 = vmul.f32 %v672, 1.442695
      %v676 = vpow.pop %v675
      %v677 = vadd.f32 %v674, 1.0
      %v678 = vadd.f32 %v676, 1.0
      %v679 = vrcp.pop %v677
      %v680 = vmul.f32 1.0, %v679
      %v681 = vrcp.pop %v678
      %v682 = vmul.f32 1.0, %v681
      %v683 = vmul.f32 %v669, %v680
      %v684 = vmul.f32 %v670, %v682
      %v685 = vpack.c.bf16 %v684, %v683
      %v686 = vmul.f32 %v411, %v433
      %v687 = vmul.f32 %v412, %v433
      %v688 = vadd.f32 %v686, %v455
      %v689 = vadd.f32 %v687, %v455
      %v690 = vxor.u32 %v688, 2147483648
      %v691 = vxor.u32 %v689, 2147483648
      %v692 = vmul.f32 %v690, 1.442695
      %v693 = vpow.pop %v692
      %v694 = vmul.f32 %v691, 1.442695
      %v695 = vpow.pop %v694
      %v696 = vadd.f32 %v693, 1.0
      %v697 = vadd.f32 %v695, 1.0
      %v698 = vrcp.pop %v696
      %v699 = vmul.f32 1.0, %v698
      %v700 = vrcp.pop %v697
      %v701 = vmul.f32 1.0, %v700
      %v702 = vmul.f32 %v688, %v699
      %v703 = vmul.f32 %v689, %v701
      %v704 = vpack.c.bf16 %v703, %v702
      %p705 = scmp.gt.s32.totalorder %s24, 0
      %s706 = scalar_select %p705, 1, 0
      %v707 = vstv %s706
      %vm708 = vcmp.eq.s32.totalorder %v707, 1
      %v709 = vsel %vm708, %v685, 0
      %v711 = vunpack.c.l.b16 %v709
      %v712 = vunpack.c.h.b16 %v709
      %v713 = vpack.c.b16 %v711, %v711
      %v714 = vpack.c.b16 %v712, %v712
      %717 = vst.msk [vmem:[#allocation2] sm:$0xf] %vm650, %v713
      %718 = vst.msk [vmem:[#allocation2 + $0x4] sm:$0xf] %vm650, %v714
      %p719 = scmp.lt.s32.totalorder %s24, 1
      %s720 = scalar_select %p719, 1, 0
      %v721 = vstv %s720
      %vm722 = vcmp.eq.s32.totalorder %v721, 1
      %v723 = vsel %vm722, %v704, 0
      %v725 = vunpack.c.l.b16 %v723
      %v726 = vunpack.c.h.b16 %v723
      %v727 = vpack.c.b16 %v725, %v725
      %v728 = vpack.c.b16 %v726, %v726
      %s731 = scalar_lea.vmem [#allocation2], 72
      %732 = vst.msk [vmem:[%s731] sm:$0xf] %vm650, %v727
      %733 = vst.msk [vmem:[%s731 + $0x4] sm:$0xf] %vm650, %v728
      %v734 = vld [vmem:[%s5] sm:$0x1]
      %v735 = vld [vmem:[#allocation2] sm:$0xf]
      %v736 = vld [vmem:[#allocation2 + $0x4] sm:$0xf]
      %v737 = vld [vmem:[#allocation2 + $0x8] sm:$0xf]
      %v738 = vld [vmem:[#allocation2 + $0xc] sm:$0xf]
      %v739 = vld [vmem:[#allocation2 + $0x10] sm:$0xf]
      %v740 = vld [vmem:[#allocation2 + $0x14] sm:$0xf]
      %v741 = vld [vmem:[#allocation2 + $0x18] sm:$0xf]
      %v742 = vld [vmem:[#allocation2 + $0x1c] sm:$0xf]
      %v743 = vld [vmem:[#allocation2 + $0x20] sm:$0xf]
      %v744 = vld [vmem:[#allocation2 + $0x24] sm:$0xf]
      %v745 = vld [vmem:[#allocation2 + $0x28] sm:$0xf]
      %v746 = vld [vmem:[#allocation2 + $0x2c] sm:$0xf]
      %v747 = vld [vmem:[#allocation2 + $0x30] sm:$0xf]
      %v748 = vld [vmem:[#allocation2 + $0x34] sm:$0xf]
      %v749 = vld [vmem:[#allocation2 + $0x38] sm:$0xf]
      %v750 = vld [vmem:[#allocation2 + $0x3c] sm:$0xf]
      %v751 = vld [vmem:[%s4] sm:$0x3]
      %v753 = vlaneseq
      %v754 = vshrl.u32 %v753, 7
      %v755 = vsub.s32 0, %v754
      %v756 = vrot.slane %v734, %v755
      %v774 = vunpack.c.l.b16 %v735
      %v775 = vunpack.c.l.b16 %v736
      %v776 = vunpack.c.l.b16 %v737
      %v777 = vunpack.c.l.b16 %v738
      %v778 = vunpack.c.l.b16 %v739
      %v779 = vunpack.c.l.b16 %v740
      %v780 = vunpack.c.l.b16 %v741
      %v781 = vunpack.c.l.b16 %v742
      %v782 = vunpack.c.l.b16 %v743
      %v783 = vunpack.c.l.b16 %v744
      %v784 = vunpack.c.l.b16 %v745
      %v785 = vunpack.c.l.b16 %v746
      %v786 = vunpack.c.l.b16 %v747
      %v787 = vunpack.c.l.b16 %v748
      %v788 = vunpack.c.l.b16 %v749
      %v789 = vunpack.c.l.b16 %v750
      %v790 = vpack.c.b16 %v775, %v774
      %v791 = vpack.c.b16 %v777, %v776
      %v792 = vpack.c.b16 %v779, %v778
      %v793 = vpack.c.b16 %v781, %v780
      %v794 = vpack.c.b16 %v783, %v782
      %v795 = vpack.c.b16 %v785, %v784
      %v796 = vpack.c.b16 %v787, %v786
      %v797 = vpack.c.b16 %v789, %v788
      %vm798 = vcmask 31744
      %v800 = vsel %vm798, %v790, 0
      %v803 = vsel %vm798, %v791, 0
      %v806 = vsel %vm798, %v792, 0
      %v809 = vsel %vm798, %v793, 0
      %v812 = vsel %vm798, %v794, 0
      %v815 = vsel %vm798, %v795, 0
      %v818 = vsel %vm798, %v796, 0
      %v821 = vsel %vm798, %v797, 0
      %vm823 = vcmask 1041408
      %v825 = vsel %vm823, %v751, 0
      %827 = vmatprep.subr.bf16.mxu0 0
      %828 = vmatpush1.bf16.msra.mxu0 0
      %829 = vmatprep.subr.bf16.mxu0 0
      %830 = vmatpush1.bf16.msra.mxu0 0
      %831 = vmatprep.subr.bf16.mxu0 0
      %832 = vmatpush1.bf16.msra.mxu0 0
      %833 = vmatprep.subr.bf16.mxu0 0
      %834 = vmatpush1.bf16.msra.mxu0 0
      %835 = vmatprep.subr.bf16.mxu0 0
      %836 = vmatpush1.bf16.msra.mxu0 0
      %837 = vmatprep.subr.bf16.mxu0 0
      %838 = vmatpush1.bf16.msra.mxu0 0
      %839 = vmatprep.subr.bf16.mxu0 0
      %840 = vmatpush1.bf16.msra.mxu0 0
      %841 = vmatprep.subr.bf16.mxu0 0
      %842 = vmatpush1.bf16.msra.mxu0 %v825
      %843 = vmatprep.subr.bf16.mxu0 0
      %844 = vmatpush2.bf16.msra.mxu0 0
      %845 = vmatprep.subr.bf16.mxu0 0
      %846 = vmatpush2.bf16.msra.mxu0 0
      %847 = vmatprep.subr.bf16.mxu0 0
      %848 = vmatpush2.bf16.msra.mxu0 0
      %849 = vmatprep.subr.bf16.mxu0 0
      %850 = vmatpush2.bf16.msra.mxu0 0
      %851 = vmatprep.subr.bf16.mxu0 0
      %852 = vmatpush2.bf16.msra.mxu0 0
      %853 = vmatprep.subr.bf16.mxu0 0
      %854 = vmatpush2.bf16.msra.mxu0 0
      %855 = vmatprep.subr.bf16.mxu0 0
      %856 = vmatpush2.bf16.msra.mxu0 0
      %857 = vmatprep.subr.bf16.mxu0 0
      %858 = vmatpush2.bf16.msra.mxu0 0
      %859 = vmatprep.mubr.bf16.mxu0 0
      %860 = vmatmul.mubr.bf16.gmra.mxu0 %v800
      %v861 = vpop.f32.mrf.mxu0
      %v862 = vadd.f32 %v756, %v861
      %v863 = vpop.f32.mrf.mxu0
      %v864 = vpop.f32.mrf.mxu0
      %v865 = vadd.f32 %v756, %v864
      %v866 = vpop.f32.mrf.mxu0
      %867 = vmatprep.mubr.bf16.mxu0 0
      %868 = vmatmul.mubr.bf16.gmra.mxu0 %v803
      %v869 = vpop.f32.mrf.mxu0
      %v870 = vadd.f32 %v756, %v869
      %v871 = vpop.f32.mrf.mxu0
      %v872 = vpop.f32.mrf.mxu0
      %v873 = vadd.f32 %v756, %v872
      %v874 = vpop.f32.mrf.mxu0
      %875 = vmatprep.mubr.bf16.mxu0 0
      %876 = vmatmul.mubr.bf16.gmra.mxu0 %v806
      %v877 = vpop.f32.mrf.mxu0
      %v878 = vadd.f32 %v756, %v877
      %v879 = vpop.f32.mrf.mxu0
      %v880 = vpop.f32.mrf.mxu0
      %v881 = vadd.f32 %v756, %v880
      %v882 = vpop.f32.mrf.mxu0
      %883 = vmatprep.mubr.bf16.mxu0 0
      %884 = vmatmul.mubr.bf16.gmra.mxu0 %v809
      %v885 = vpop.f32.mrf.mxu0
      %v886 = vadd.f32 %v756, %v885
      %v887 = vpop.f32.mrf.mxu0
      %v888 = vpop.f32.mrf.mxu0
      %v889 = vadd.f32 %v756, %v888
      %v890 = vpop.f32.mrf.mxu0
      %891 = vmatprep.mubr.bf16.mxu0 0
      %892 = vmatmul.mubr.bf16.gmra.mxu0 %v812
      %v893 = vpop.f32.mrf.mxu0
      %v894 = vadd.f32 %v756, %v893
      %v895 = vpop.f32.mrf.mxu0
      %v896 = vpop.f32.mrf.mxu0
      %v897 = vadd.f32 %v756, %v896
      %v898 = vpop.f32.mrf.mxu0
      %899 = vmatprep.mubr.bf16.mxu0 0
      %900 = vmatmul.mubr.bf16.gmra.mxu0 %v815
      %v901 = vpop.f32.mrf.mxu0
      %v902 = vadd.f32 %v756, %v901
      %v903 = vpop.f32.mrf.mxu0
      %v904 = vpop.f32.mrf.mxu0
      %v905 = vadd.f32 %v756, %v904
      %v906 = vpop.f32.mrf.mxu0
      %907 = vmatprep.mubr.bf16.mxu0 0
      %908 = vmatmul.mubr.bf16.gmra.mxu0 %v818
      %v909 = vpop.f32.mrf.mxu0
      %v910 = vadd.f32 %v756, %v909
      %v911 = vpop.f32.mrf.mxu0
      %v912 = vpop.f32.mrf.mxu0
      %v913 = vadd.f32 %v756, %v912
      %v914 = vpop.f32.mrf.mxu0
      %915 = vmatprep.mubr.bf16.mxu0 0
      %916 = vmatmul.mubr.bf16.gmra.mxu0 %v821
      %v917 = vpop.f32.mrf.mxu0
      %v918 = vadd.f32 %v756, %v917
      %v919 = vpop.f32.mrf.mxu0
      %v920 = vpop.f32.mrf.mxu0
      %v921 = vadd.f32 %v756, %v920
      %v922 = vpop.f32.mrf.mxu0
      %923 = vdwg.mxu0
      %v924 = vld [vmem:[%s649] sm:$0xf]
      %v925 = vld [vmem:[%s649 + $0x4] sm:$0xf]
      %v926 = vld [vmem:[%s649 + $0x8] sm:$0xf]
      %v927 = vld [vmem:[%s649 + $0xc] sm:$0xf]
      %v928 = vld [vmem:[%s649 + $0x10] sm:$0xf]
      %v929 = vld [vmem:[%s649 + $0x14] sm:$0xf]
      %v930 = vld [vmem:[%s649 + $0x18] sm:$0xf]
      %v931 = vld [vmem:[%s649 + $0x1c] sm:$0xf]
      %v932 = vld [vmem:[%s649 + $0x20] sm:$0xf]
      %v933 = vld [vmem:[%s649 + $0x24] sm:$0xf]
      %v934 = vld [vmem:[%s649 + $0x28] sm:$0xf]
      %v935 = vld [vmem:[%s649 + $0x2c] sm:$0xf]
      %v936 = vld [vmem:[%s649 + $0x30] sm:$0xf]
      %v937 = vld [vmem:[%s649 + $0x34] sm:$0xf]
      %v938 = vld [vmem:[%s649 + $0x38] sm:$0xf]
      %v939 = vld [vmem:[%s649 + $0x3c] sm:$0xf]
      %s940 = scalar_lea.vmem %s4, 2
      %v941 = vld [vmem:[%s940] sm:$0x3]
      %v958 = vunpack.c.l.b16 %v924
      %v959 = vunpack.c.l.b16 %v925
      %v960 = vunpack.c.l.b16 %v926
      %v961 = vunpack.c.l.b16 %v927
      %v962 = vunpack.c.l.b16 %v928
      %v963 = vunpack.c.l.b16 %v929
      %v964 = vunpack.c.l.b16 %v930
      %v965 = vunpack.c.l.b16 %v931
      %v966 = vunpack.c.l.b16 %v932
      %v967 = vunpack.c.l.b16 %v933
      %v968 = vunpack.c.l.b16 %v934
      %v969 = vunpack.c.l.b16 %v935
      %v970 = vunpack.c.l.b16 %v936
      %v971 = vunpack.c.l.b16 %v937
      %v972 = vunpack.c.l.b16 %v938
      %v973 = vunpack.c.l.b16 %v939
      %v974 = vpack.c.b16 %v959, %v958
      %v975 = vpack.c.b16 %v961, %v960
      %v976 = vpack.c.b16 %v963, %v962
      %v977 = vpack.c.b16 %v965, %v964
      %v978 = vpack.c.b16 %v967, %v966
      %v979 = vpack.c.b16 %v969, %v968
      %v980 = vpack.c.b16 %v971, %v970
      %v981 = vpack.c.b16 %v973, %v972
      %v983 = vsel %vm798, %v974, 0
      %v986 = vsel %vm798, %v975, 0
      %v989 = vsel %vm798, %v976, 0
      %v992 = vsel %vm798, %v977, 0
      %v995 = vsel %vm798, %v978, 0
      %v998 = vsel %vm798, %v979, 0
      %v1001 = vsel %vm798, %v980, 0
      %v1004 = vsel %vm798, %v981, 0
      %v1007 = vsel %vm823, %v941, 0
      %1009 = vmatprep.subr.bf16.mxu0 0
      %1010 = vmatpush1.bf16.msra.mxu0 0
      %1011 = vmatprep.subr.bf16.mxu0 0
      %1012 = vmatpush1.bf16.msra.mxu0 0
      %1013 = vmatprep.subr.bf16.mxu0 0
      %1014 = vmatpush1.bf16.msra.mxu0 0
      %1015 = vmatprep.subr.bf16.mxu0 0
      %1016 = vmatpush1.bf16.msra.mxu0 0
      %1017 = vmatprep.subr.bf16.mxu0 0
      %1018 = vmatpush1.bf16.msra.mxu0 0
      %1019 = vmatprep.subr.bf16.mxu0 0
      %1020 = vmatpush1.bf16.msra.mxu0 0
      %1021 = vmatprep.subr.bf16.mxu0 0
      %1022 = vmatpush1.bf16.msra.mxu0 0
      %1023 = vmatprep.subr.bf16.mxu0 0
      %1024 = vmatpush1.bf16.msra.mxu0 %v1007
      %1025 = vmatprep.subr.bf16.mxu0 0
      %1026 = vmatpush2.bf16.msra.mxu0 0
      %1027 = vmatprep.subr.bf16.mxu0 0
      %1028 = vmatpush2.bf16.msra.mxu0 0
      %1029 = vmatprep.subr.bf16.mxu0 0
      %1030 = vmatpush2.bf16.msra.mxu0 0
      %1031 = vmatprep.subr.bf16.mxu0 0
      %1032 = vmatpush2.bf16.msra.mxu0 0
      %1033 = vmatprep.subr.bf16.mxu0 0
      %1034 = vmatpush2.bf16.msra.mxu0 0
      %1035 = vmatprep.subr.bf16.mxu0 0
      %1036 = vmatpush2.bf16.msra.mxu0 0
      %1037 = vmatprep.subr.bf16.mxu0 0
      %1038 = vmatpush2.bf16.msra.mxu0 0
      %1039 = vmatprep.subr.bf16.mxu0 0
      %1040 = vmatpush2.bf16.msra.mxu0 0
      %1041 = vmatprep.mubr.bf16.mxu0 0
      %1042 = vmatmul.mubr.bf16.gmra.mxu0 %v983
      %v1043 = vpop.f32.mrf.mxu0
      %v1044 = vadd.f32 0.0, %v1043
      %v1045 = vpop.f32.mrf.mxu0
      %v1046 = vpop.f32.mrf.mxu0
      %v1047 = vadd.f32 0.0, %v1046
      %v1048 = vpop.f32.mrf.mxu0
      %1049 = vmatprep.mubr.bf16.mxu0 0
      %1050 = vmatmul.mubr.bf16.gmra.mxu0 %v986
      %v1051 = vpop.f32.mrf.mxu0
      %v1052 = vadd.f32 0.0, %v1051
      %v1053 = vpop.f32.mrf.mxu0
      %v1054 = vpop.f32.mrf.mxu0
      %v1055 = vadd.f32 0.0, %v1054
      %v1056 = vpop.f32.mrf.mxu0
      %1057 = vmatprep.mubr.bf16.mxu0 0
      %1058 = vmatmul.mubr.bf16.gmra.mxu0 %v989
      %v1059 = vpop.f32.mrf.mxu0
      %v1060 = vadd.f32 0.0, %v1059
      %v1061 = vpop.f32.mrf.mxu0
      %v1062 = vpop.f32.mrf.mxu0
      %v1063 = vadd.f32 0.0, %v1062
      %v1064 = vpop.f32.mrf.mxu0
      %1065 = vmatprep.mubr.bf16.mxu0 0
      %1066 = vmatmul.mubr.bf16.gmra.mxu0 %v992
      %v1067 = vpop.f32.mrf.mxu0
      %v1068 = vadd.f32 0.0, %v1067
      %v1069 = vpop.f32.mrf.mxu0
      %v1070 = vpop.f32.mrf.mxu0
      %v1071 = vadd.f32 0.0, %v1070
      %v1072 = vpop.f32.mrf.mxu0
      %1073 = vmatprep.mubr.bf16.mxu0 0
      %1074 = vmatmul.mubr.bf16.gmra.mxu0 %v995
      %v1075 = vpop.f32.mrf.mxu0
      %v1076 = vadd.f32 0.0, %v1075
      %v1077 = vpop.f32.mrf.mxu0
      %v1078 = vpop.f32.mrf.mxu0
      %v1079 = vadd.f32 0.0, %v1078
      %v1080 = vpop.f32.mrf.mxu0
      %1081 = vmatprep.mubr.bf16.mxu0 0
      %1082 = vmatmul.mubr.bf16.gmra.mxu0 %v998
      %v1083 = vpop.f32.mrf.mxu0
      %v1084 = vadd.f32 0.0, %v1083
      %v1085 = vpop.f32.mrf.mxu0
      %v1086 = vpop.f32.mrf.mxu0
      %v1087 = vadd.f32 0.0, %v1086
      %v1088 = vpop.f32.mrf.mxu0
      %1089 = vmatprep.mubr.bf16.mxu0 0
      %1090 = vmatmul.mubr.bf16.gmra.mxu0 %v1001
      %v1091 = vpop.f32.mrf.mxu0
      %v1092 = vadd.f32 0.0, %v1091
      %v1093 = vpop.f32.mrf.mxu0
      %v1094 = vpop.f32.mrf.mxu0
      %v1095 = vadd.f32 0.0, %v1094
      %v1096 = vpop.f32.mrf.mxu0
      %1097 = vmatprep.mubr.bf16.mxu0 0
      %1098 = vmatmul.mubr.bf16.gmra.mxu0 %v1004
      %v1099 = vpop.f32.mrf.mxu0
      %v1100 = vadd.f32 0.0, %v1099
      %v1101 = vpop.f32.mrf.mxu0
      %v1102 = vpop.f32.mrf.mxu0
      %v1103 = vadd.f32 0.0, %v1102
      %v1104 = vpop.f32.mrf.mxu0
      %1105 = vdwg.mxu0
      %v1106 = vadd.f32 %v862, %v1044
      %v1107 = vadd.f32 %v865, %v1047
      %v1108 = vadd.f32 %v870, %v1052
      %v1109 = vadd.f32 %v873, %v1055
      %v1110 = vadd.f32 %v878, %v1060
      %v1111 = vadd.f32 %v881, %v1063
      %v1112 = vadd.f32 %v886, %v1068
      %v1113 = vadd.f32 %v889, %v1071
      %v1114 = vadd.f32 %v894, %v1076
      %v1115 = vadd.f32 %v897, %v1079
      %v1116 = vadd.f32 %v902, %v1084
      %v1117 = vadd.f32 %v905, %v1087
      %v1118 = vadd.f32 %v910, %v1092
      %v1119 = vadd.f32 %v913, %v1095
      %v1120 = vadd.f32 %v918, %v1100
      %v1121 = vadd.f32 %v921, %v1103
      %s1122 = scalar_lea.vmem [#allocation2], 16
      %v1123 = vld [vmem:[%s1122] sm:$0xf]
      %v1124 = vld [vmem:[%s1122 + $0x4] sm:$0xf]
      %v1125 = vld [vmem:[%s1122 + $0x8] sm:$0xf]
      %v1126 = vld [vmem:[%s1122 + $0xc] sm:$0xf]
      %v1127 = vld [vmem:[%s1122 + $0x10] sm:$0xf]
      %v1128 = vld [vmem:[%s1122 + $0x14] sm:$0xf]
      %v1129 = vld [vmem:[%s1122 + $0x18] sm:$0xf]
      %v1130 = vld [vmem:[%s1122 + $0x1c] sm:$0xf]
      %v1131 = vld [vmem:[%s1122 + $0x20] sm:$0xf]
      %v1132 = vld [vmem:[%s1122 + $0x24] sm:$0xf]
      %v1133 = vld [vmem:[%s1122 + $0x28] sm:$0xf]
      %v1134 = vld [vmem:[%s1122 + $0x2c] sm:$0xf]
      %v1135 = vld [vmem:[%s1122 + $0x30] sm:$0xf]
      %v1136 = vld [vmem:[%s1122 + $0x34] sm:$0xf]
      %v1137 = vld [vmem:[%s1122 + $0x38] sm:$0xf]
      %v1138 = vld [vmem:[%s1122 + $0x3c] sm:$0xf]
      %s1139 = scalar_lea.vmem %s4, 4
      %v1140 = vld [vmem:[%s1139] sm:$0x3]
      %v1157 = vunpack.c.l.b16 %v1123
      %v1158 = vunpack.c.l.b16 %v1124
      %v1159 = vunpack.c.l.b16 %v1125
      %v1160 = vunpack.c.l.b16 %v1126
      %v1161 = vunpack.c.l.b16 %v1127
      %v1162 = vunpack.c.l.b16 %v1128
      %v1163 = vunpack.c.l.b16 %v1129
      %v1164 = vunpack.c.l.b16 %v1130
      %v1165 = vunpack.c.l.b16 %v1131
      %v1166 = vunpack.c.l.b16 %v1132
      %v1167 = vunpack.c.l.b16 %v1133
      %v1168 = vunpack.c.l.b16 %v1134
      %v1169 = vunpack.c.l.b16 %v1135
      %v1170 = vunpack.c.l.b16 %v1136
      %v1171 = vunpack.c.l.b16 %v1137
      %v1172 = vunpack.c.l.b16 %v1138
      %v1173 = vpack.c.b16 %v1158, %v1157
      %v1174 = vpack.c.b16 %v1160, %v1159
      %v1175 = vpack.c.b16 %v1162, %v1161
      %v1176 = vpack.c.b16 %v1164, %v1163
      %v1177 = vpack.c.b16 %v1166, %v1165
      %v1178 = vpack.c.b16 %v1168, %v1167
      %v1179 = vpack.c.b16 %v1170, %v1169
      %v1180 = vpack.c.b16 %v1172, %v1171
      %v1182 = vsel %vm798, %v1173, 0
      %v1185 = vsel %vm798, %v1174, 0
      %v1188 = vsel %vm798, %v1175, 0
      %v1191 = vsel %vm798, %v1176, 0
      %v1194 = vsel %vm798, %v1177, 0
      %v1197 = vsel %vm798, %v1178, 0
      %v1200 = vsel %vm798, %v1179, 0
      %v1203 = vsel %vm798, %v1180, 0
      %v1206 = vsel %vm823, %v1140, 0
      %1208 = vmatprep.subr.bf16.mxu0 0
      %1209 = vmatpush1.bf16.msra.mxu0 0
      %1210 = vmatprep.subr.bf16.mxu0 0
      %1211 = vmatpush1.bf16.msra.mxu0 0
      %1212 = vmatprep.subr.bf16.mxu0 0
      %1213 = vmatpush1.bf16.msra.mxu0 0
      %1214 = vmatprep.subr.bf16.mxu0 0
      %1215 = vmatpush1.bf16.msra.mxu0 0
      %1216 = vmatprep.subr.bf16.mxu0 0
      %1217 = vmatpush1.bf16.msra.mxu0 0
      %1218 = vmatprep.subr.bf16.mxu0 0
      %1219 = vmatpush1.bf16.msra.mxu0 0
      %1220 = vmatprep.subr.bf16.mxu0 0
      %1221 = vmatpush1.bf16.msra.mxu0 0
      %1222 = vmatprep.subr.bf16.mxu0 0
      %1223 = vmatpush1.bf16.msra.mxu0 %v1206
      %1224 = vmatprep.subr.bf16.mxu0 0
      %1225 = vmatpush2.bf16.msra.mxu0 0
      %1226 = vmatprep.subr.bf16.mxu0 0
      %1227 = vmatpush2.bf16.msra.mxu0 0
      %1228 = vmatprep.subr.bf16.mxu0 0
      %1229 = vmatpush2.bf16.msra.mxu0 0
      %1230 = vmatprep.subr.bf16.mxu0 0
      %1231 = vmatpush2.bf16.msra.mxu0 0
      %1232 = vmatprep.subr.bf16.mxu0 0
      %1233 = vmatpush2.bf16.msra.mxu0 0
      %1234 = vmatprep.subr.bf16.mxu0 0
      %1235 = vmatpush2.bf16.msra.mxu0 0
      %1236 = vmatprep.subr.bf16.mxu0 0
      %1237 = vmatpush2.bf16.msra.mxu0 0
      %1238 = vmatprep.subr.bf16.mxu0 0
      %1239 = vmatpush2.bf16.msra.mxu0 0
      %1240 = vmatprep.mubr.bf16.mxu0 0
      %1241 = vmatmul.mubr.bf16.gmra.mxu0 %v1182
      %v1242 = vpop.f32.mrf.mxu0
      %v1243 = vadd.f32 0.0, %v1242
      %v1244 = vpop.f32.mrf.mxu0
      %v1245 = vpop.f32.mrf.mxu0
      %v1246 = vadd.f32 0.0, %v1245
      %v1247 = vpop.f32.mrf.mxu0
      %1248 = vmatprep.mubr.bf16.mxu0 0
      %1249 = vmatmul.mubr.bf16.gmra.mxu0 %v1185
      %v1250 = vpop.f32.mrf.mxu0
      %v1251 = vadd.f32 0.0, %v1250
      %v1252 = vpop.f32.mrf.mxu0
      %v1253 = vpop.f32.mrf.mxu0
      %v1254 = vadd.f32 0.0, %v1253
      %v1255 = vpop.f32.mrf.mxu0
      %1256 = vmatprep.mubr.bf16.mxu0 0
      %1257 = vmatmul.mubr.bf16.gmra.mxu0 %v1188
      %v1258 = vpop.f32.mrf.mxu0
      %v1259 = vadd.f32 0.0, %v1258
      %v1260 = vpop.f32.mrf.mxu0
      %v1261 = vpop.f32.mrf.mxu0
      %v1262 = vadd.f32 0.0, %v1261
      %v1263 = vpop.f32.mrf.mxu0
      %1264 = vmatprep.mubr.bf16.mxu0 0
      %1265 = vmatmul.mubr.bf16.gmra.mxu0 %v1191
      %v1266 = vpop.f32.mrf.mxu0
      %v1267 = vadd.f32 0.0, %v1266
      %v1268 = vpop.f32.mrf.mxu0
      %v1269 = vpop.f32.mrf.mxu0
      %v1270 = vadd.f32 0.0, %v1269
      %v1271 = vpop.f32.mrf.mxu0
      %1272 = vmatprep.mubr.bf16.mxu0 0
      %1273 = vmatmul.mubr.bf16.gmra.mxu0 %v1194
      %v1274 = vpop.f32.mrf.mxu0
      %v1275 = vadd.f32 0.0, %v1274
      %v1276 = vpop.f32.mrf.mxu0
      %v1277 = vpop.f32.mrf.mxu0
      %v1278 = vadd.f32 0.0, %v1277
      %v1279 = vpop.f32.mrf.mxu0
      %1280 = vmatprep.mubr.bf16.mxu0 0
      %1281 = vmatmul.mubr.bf16.gmra.mxu0 %v1197
      %v1282 = vpop.f32.mrf.mxu0
      %v1283 = vadd.f32 0.0, %v1282
      %v1284 = vpop.f32.mrf.mxu0
      %v1285 = vpop.f32.mrf.mxu0
      %v1286 = vadd.f32 0.0, %v1285
      %v1287 = vpop.f32.mrf.mxu0
      %1288 = vmatprep.mubr.bf16.mxu0 0
      %1289 = vmatmul.mubr.bf16.gmra.mxu0 %v1200
      %v1290 = vpop.f32.mrf.mxu0
      %v1291 = vadd.f32 0.0, %v1290
      %v1292 = vpop.f32.mrf.mxu0
      %v1293 = vpop.f32.mrf.mxu0
      %v1294 = vadd.f32 0.0, %v1293
      %v1295 = vpop.f32.mrf.mxu0
      %1296 = vmatprep.mubr.bf16.mxu0 0
      %1297 = vmatmul.mubr.bf16.gmra.mxu0 %v1203
      %v1298 = vpop.f32.mrf.mxu0
      %v1299 = vadd.f32 0.0, %v1298
      %v1300 = vpop.f32.mrf.mxu0
      %v1301 = vpop.f32.mrf.mxu0
      %v1302 = vadd.f32 0.0, %v1301
      %v1303 = vpop.f32.mrf.mxu0
      %1304 = vdwg.mxu0
      %v1305 = vadd.f32 %v1106, %v1243
      %v1306 = vadd.f32 %v1107, %v1246
      %v1307 = vadd.f32 %v1108, %v1251
      %v1308 = vadd.f32 %v1109, %v1254
      %v1309 = vadd.f32 %v1110, %v1259
      %v1310 = vadd.f32 %v1111, %v1262
      %v1311 = vadd.f32 %v1112, %v1267
      %v1312 = vadd.f32 %v1113, %v1270
      %v1313 = vadd.f32 %v1114, %v1275
      %v1314 = vadd.f32 %v1115, %v1278
      %v1315 = vadd.f32 %v1116, %v1283
      %v1316 = vadd.f32 %v1117, %v1286
      %v1317 = vadd.f32 %v1118, %v1291
      %v1318 = vadd.f32 %v1119, %v1294
      %v1319 = vadd.f32 %v1120, %v1299
      %v1320 = vadd.f32 %v1121, %v1302
      %vm1321 = vcmask 64512
      %1322 = vst.msk [vmem:[%s396] sm:$0xff] %vm1321, %v1305
      %1323 = vst.msk [vmem:[%s396 + $0x8] sm:$0xff] %vm1321, %v1306
      %1324 = vst.msk [vmem:[%s396 + $0x10] sm:$0xff] %vm1321, %v1307
      %1325 = vst.msk [vmem:[%s396 + $0x18] sm:$0xff] %vm1321, %v1308
      %1326 = vst.msk [vmem:[%s396 + $0x20] sm:$0xff] %vm1321, %v1309
      %1327 = vst.msk [vmem:[%s396 + $0x28] sm:$0xff] %vm1321, %v1310
      %1328 = vst.msk [vmem:[%s396 + $0x30] sm:$0xff] %vm1321, %v1311
      %1329 = vst.msk [vmem:[%s396 + $0x38] sm:$0xff] %vm1321, %v1312
      %1330 = vst.msk [vmem:[%s396 + $0x40] sm:$0xff] %vm1321, %v1313
      %1331 = vst.msk [vmem:[%s396 + $0x48] sm:$0xff] %vm1321, %v1314
      %1332 = vst.msk [vmem:[%s396 + $0x50] sm:$0xff] %vm1321, %v1315
      %1333 = vst.msk [vmem:[%s396 + $0x58] sm:$0xff] %vm1321, %v1316
      %1334 = vst.msk [vmem:[%s396 + $0x60] sm:$0xff] %vm1321, %v1317
      %1335 = vst.msk [vmem:[%s396 + $0x68] sm:$0xff] %vm1321, %v1318
      %1336 = vst.msk [vmem:[%s396 + $0x70] sm:$0xff] %vm1321, %v1319
      %1337 = vst.msk [vmem:[%s396 + $0x78] sm:$0xff] %vm1321, %v1320
      %v1338 = vsel %vm1321, %v1305, 0.0
      %v1339 = vsel %vm1321, %v1306, 0.0
      %v1340 = vadd.f32 %v1338, %v1339
      %v1341 = vsel %vm1321, %v1307, 0.0
      %v1342 = vadd.f32 %v1340, %v1341
      %v1343 = vsel %vm1321, %v1308, 0.0
      %v1344 = vadd.f32 %v1342, %v1343
      %v1345 = vsel %vm1321, %v1309, 0.0
      %v1346 = vadd.f32 %v1344, %v1345
      %v1347 = vsel %vm1321, %v1310, 0.0
      %v1348 = vadd.f32 %v1346, %v1347
      %v1349 = vsel %vm1321, %v1311, 0.0
      %v1350 = vadd.f32 %v1348, %v1349
      %v1351 = vsel %vm1321, %v1312, 0.0
      %v1352 = vadd.f32 %v1350, %v1351
      %v1353 = vsel %vm1321, %v1313, 0.0
      %v1354 = vadd.f32 %v1352, %v1353
      %v1355 = vsel %vm1321, %v1314, 0.0
      %v1356 = vadd.f32 %v1354, %v1355
      %v1357 = vsel %vm1321, %v1315, 0.0
      %v1358 = vadd.f32 %v1356, %v1357
      %v1359 = vsel %vm1321, %v1316, 0.0
      %v1360 = vadd.f32 %v1358, %v1359
      %v1361 = vsel %vm1321, %v1317, 0.0
      %v1362 = vadd.f32 %v1360, %v1361
      %v1363 = vsel %vm1321, %v1318, 0.0
      %v1364 = vadd.f32 %v1362, %v1363
      %v1365 = vsel %vm1321, %v1319, 0.0
      %v1366 = vadd.f32 %v1364, %v1365
      %v1367 = vsel %vm1321, %v1320, 0.0
      %v1368 = vadd.f32 %v1366, %v1367
      %v1369 = vrot.slane %v1368, 4
      %v1370 = vadd.f32 %v1368, %v1369
      %v1371 = vrot.slane %v1370, 2
      %v1372 = vadd.f32 %v1370, %v1371
      %v1373 = vrot.slane %v1372, 1
      %v1374 = vadd.f32 %v1372, %v1373
      %vm1375 = vcmask 57344
      %1376 = vst.msk [vmem:[%s405] sm:$0x1] %vm1375, %v1374
      %v1377 = vmul.f32 %v1305, %v1305
      %v1378 = vmul.f32 %v1306, %v1306
      %v1379 = vmul.f32 %v1307, %v1307
      %v1380 = vmul.f32 %v1308, %v1308
      %v1381 = vmul.f32 %v1309, %v1309
      %v1382 = vmul.f32 %v1310, %v1310
      %v1383 = vmul.f32 %v1311, %v1311
      %v1384 = vmul.f32 %v1312, %v1312
      %v1385 = vmul.f32 %v1313, %v1313
      %v1386 = vmul.f32 %v1314, %v1314
      %v1387 = vmul.f32 %v1315, %v1315
      %v1388 = vmul.f32 %v1316, %v1316
      %v1389 = vmul.f32 %v1317, %v1317
      %v1390 = vmul.f32 %v1318, %v1318
      %v1391 = vmul.f32 %v1319, %v1319
      %v1392 = vmul.f32 %v1320, %v1320
      %v1393 = vsel %vm1321, %v1377, 0.0
      %v1394 = vsel %vm1321, %v1378, 0.0
      %v1395 = vadd.f32 %v1393, %v1394
      %v1396 = vsel %vm1321, %v1379, 0.0
      %v1397 = vadd.f32 %v1395, %v1396
      %v1398 = vsel %vm1321, %v1380, 0.0
      %v1399 = vadd.f32 %v1397, %v1398
      %v1400 = vsel %vm1321, %v1381, 0.0
      %v1401 = vadd.f32 %v1399, %v1400
      %v1402 = vsel %vm1321, %v1382, 0.0
      %v1403 = vadd.f32 %v1401, %v1402
      %v1404 = vsel %vm1321, %v1383, 0.0
      %v1405 = vadd.f32 %v1403, %v1404
      %v1406 = vsel %vm1321, %v1384, 0.0
      %v1407 = vadd.f32 %v1405, %v1406
      %v1408 = vsel %vm1321, %v1385, 0.0
      %v1409 = vadd.f32 %v1407, %v1408
      %v1410 = vsel %vm1321, %v1386, 0.0
      %v1411 = vadd.f32 %v1409, %v1410
      %v1412 = vsel %vm1321, %v1387, 0.0
      %v1413 = vadd.f32 %v1411, %v1412
      %v1414 = vsel %vm1321, %v1388, 0.0
      %v1415 = vadd.f32 %v1413, %v1414
      %v1416 = vsel %vm1321, %v1389, 0.0
      %v1417 = vadd.f32 %v1415, %v1416
      %v1418 = vsel %vm1321, %v1390, 0.0
      %v1419 = vadd.f32 %v1417, %v1418
      %v1420 = vsel %vm1321, %v1391, 0.0
      %v1421 = vadd.f32 %v1419, %v1420
      %v1422 = vsel %vm1321, %v1392, 0.0
      %v1423 = vadd.f32 %v1421, %v1422
      %v1424 = vrot.slane %v1423, 4
      %v1425 = vadd.f32 %v1423, %v1424
      %v1426 = vrot.slane %v1425, 2
      %v1427 = vadd.f32 %v1425, %v1426
      %v1428 = vrot.slane %v1427, 1
      %v1429 = vadd.f32 %v1427, %v1428
      %1430 = vst.msk [vmem:[%s405 + $0x1] sm:$0x1] %vm1375, %v1429
      %s1431 = smul.u32 8, %s24
      %p1432 = scmp.lt.s32.totalorder %s23, 1
      %s1433 = scalar_select %p1432, %s23, 1
      %p1434 = scmp.lt.s32.totalorder %s1431, 15
      %s1435 = scalar_select %p1434, %s1431, 15
      %s1436 = smul.addr %s1435, 2
      %s1437 = smul.addr %s1433, 32
      %s1438 = sadd.s32 %s1436, %s1437
      %s1439 = smul.addr %s1438, 8
      %s1440 = scalar_lea.vmem %s6, %s1439
      %p1441 = scmp.lt.s32.totalorder %s23, 1
      %s1442 = scalar_select %p1441, %s23, 1
      %p1443 = scmp.lt.s32.totalorder %s24, 1
      %s1444 = scalar_select %p1443, %s24, 1
      %s1445 = smul.addr %s1442, 2
      %s1446 = sadd.s32 %s1444, %s1445
      %s1447 = smul.addr %s1446, 2
      %s1448 = scalar_lea.vmem %s7, %s1447
      // Predicated region
      $region45: #{conv_block_pallas.2} parent=43 // pred_check
        %p1449 = pneg %p201
      $region46: #{conv_block_pallas.2} parent=43 // pred_check_branch
        %1451 = sbr.rel (%p1449) target = $region48
      $region47: #{conv_block_pallas.2} parent=43 // pred_region
        %s1452 = smul.u32 8, %s24
      $region48: #{conv_block_pallas.2} parent=43 // pred_fallthru
        _
      // Predicated region
      $region49: #{conv_block_pallas.2} parent=43 // pred_check
        %p1453 = pneg %p229
      $region50: #{conv_block_pallas.2} parent=43 // pred_check_branch
        %1455 = sbr.rel (%p1453) target = $region52
      $region51: #{conv_block_pallas.2} parent=43 // pred_region
        _
      $region52: #{conv_block_pallas.2} parent=43 // pred_fallthru
        _
    $region44: #{conv_block_pallas.2} parent=5 // pred_fallthru
      _
    %p1456 = scmp.le.s32.totalorder 2, %s14
    // Predicated region
    $region53: #{conv_block_pallas.2} parent=5 // pred_check
      %p1457 = pneg %p1456
    $region54: #{conv_block_pallas.2} parent=5 // pred_check_branch
      %1459 = sbr.rel (%p1457) target = $region56
    $region55: #{conv_block_pallas.2} parent=5 // pred_region
      %s1460 = ssub.s32 %s14, 2
      // Predicated region
      $region57: #{conv_block_pallas.2} parent=55 // pred_check
        %p1461 = pneg %p207
      $region58: #{conv_block_pallas.2} parent=55 // pred_check_branch
        %1463 = sbr.rel (%p1461) target = $region60
      $region59: #{conv_block_pallas.2} parent=55 // pred_region
        %s1464 = smul.u32 8, %s26
        %p1465 = scmp.lt.s32.totalorder %s25, 1
        %s1466 = scalar_select %p1465, %s25, 1
        %p1467 = scmp.lt.s32.totalorder %s1464, 15
        %s1468 = scalar_select %p1467, %s1464, 15
        %s1469 = smul.addr %s1468, 2
        %s1470 = smul.addr %s1466, 32
        %s1471 = sadd.s32 %s1469, %s1470
        %s1472 = smul.addr %s1471, 8
        %s1473 = scalar_lea.vmem %s6, %s1472
      $region60: #{conv_block_pallas.2} parent=55 // pred_fallthru
        _
      // Predicated region
      $region61: #{conv_block_pallas.2} parent=55 // pred_check
        %p1474 = pneg %p235
      $region62: #{conv_block_pallas.2} parent=55 // pred_check_branch
        %1476 = sbr.rel (%p1474) target = $region64
      $region63: #{conv_block_pallas.2} parent=55 // pred_region
        %p1477 = scmp.lt.s32.totalorder %s25, 1
        %s1478 = scalar_select %p1477, %s25, 1
        %p1479 = scmp.lt.s32.totalorder %s26, 1
        %s1480 = scalar_select %p1479, %s26, 1
        %s1481 = smul.addr %s1478, 2
        %s1482 = sadd.s32 %s1480, %s1481
        %s1483 = smul.addr %s1482, 2
        %s1484 = scalar_lea.vmem %s7, %s1483
      $region64: #{conv_block_pallas.2} parent=55 // pred_fallthru
        _
    $region56: #{conv_block_pallas.2} parent=5 // pred_fallthru
      _
  $region6: #{conv_block_pallas.2} parent=0 // loop_footer
    %s18 = sadd.s32 1, %s14
  $region7: #{conv_block_pallas.2} parent=0 // loop_footer_branch
    %13 = sbr.rel target = $region3
  $region8: #{conv_block_pallas.2} parent=0 // loop_exit
    _

// kernel: conv_block_pallas.3
$region0: #{conv_block_pallas.3}
  #allocation0 [shape = 'u32[]', space=smem, size = 0x4, offset = 0x4, fixed_abs, tag = 'smem constant byte address 0x4 - core index']
  #allocation1 [shape = 'u32[144,128]{1,0:T(1,128)}', space=vmem, size = 0x12000, scoped, tag = 'internal scratch']
  #allocation2 [shape = 'bf16[10,16,8]{2,1,0:T(8,128)(2,1)}', space=vmem, size = 0xa000, scoped, tag = 'scratch operand']
  %s0 = inlined_call_operand.vmem [shape: f32[2,16,16,8], index: 0, kind: input, shape index: {}]
  %s1 = inlined_call_operand.vmem [shape: f32[2,2,2,16,8], index: 1, kind: input, shape index: {}]
  %s2 = inlined_call_operand.vmem [shape: f32[2,1,8], index: 2, kind: input, shape index: {}]
  %s3 = inlined_call_operand.vmem [shape: f32[2,1,8], index: 3, kind: input, shape index: {}]
  %s4 = inlined_call_operand.vmem [shape: bf16[3,8,8], index: 4, kind: input, shape index: {}]
  %s5 = inlined_call_operand.vmem [shape: f32[1,8], index: 5, kind: input, shape index: {}]
  %s6 = inlined_call_operand.vmem [shape: f32[2,16,16,4], index: 6, kind: input, shape index: {}]
  %s7 = inlined_call_operand.vmem [shape: bf16[4,8], index: 7, kind: input, shape index: {}]
  %s8 = inlined_call_operand.vmem [shape: f32[1,8], index: 8, kind: input, shape index: {}]
  %s9 = inlined_call_operand.vmem [shape: f32[2,16,16,8], index: 9, kind: output, shape index: {}]
  %s10 = sld [smem:[#allocation0]]
  $region69: #{conv_block_pallas.3} parent=0
    _
  %s12 = ssub.s32 1, %s10
  %s13 = scalar_select 0, %s12, %s10
  loop: start=0, step=1, limit=6
  $region2: #{conv_block_pallas.3} parent=0 // loop_pre_header
    _
  $region3: #{conv_block_pallas.3} parent=0 // loop_header
    %s15 = sphi 0, %s19
    %p16 = scmp.ge.s32.totalorder %s15, 6
    %s22 = sphi 0, %s34
    %s23 = sphi 0, %s30
    %s24 = sphi 0, %s22
    %s25 = sphi 0, %s23
    %s26 = sphi 0, %s24
    %s27 = sphi 0, %s25
    %s39 = sphi 0, %s41
    %s42 = sphi 0, %s39
    %s43 = sphi 0, %s42
    %s59 = sphi 0, %s43
    %s67 = sphi 0, %s69
    %s70 = sphi 0, %s67
    %s71 = sphi 0, %s70
    %s87 = sphi 0, %s71
    %s93 = sphi 0, %s95
    %s96 = sphi 0, %s93
    %s97 = sphi 0, %s96
    %s113 = sphi 0, %s97
    %s119 = sphi 0, %s121
    %s122 = sphi 0, %s119
    %s123 = sphi 0, %s122
    %s139 = sphi 0, %s123
    %s143 = sphi 0, %s143
    %s145 = sphi 0, %s143
    %s146 = sphi 0, %s145
    %s160 = sphi 0, %s146
    %s164 = sphi 0, %s164
    %s166 = sphi 0, %s164
    %s167 = sphi 0, %s166
    %s181 = sphi 0, %s167
    %s189 = sphi 0, %s191
    %s192 = sphi 0, %s189
    %s193 = sphi 0, %s192
    %s209 = sphi 0, %s193
    %s213 = sphi 0, %s213
    %s215 = sphi 0, %s213
    %s216 = sphi 0, %s215
    %s230 = sphi 0, %s216
    %s234 = sphi 0, %s234
    %s236 = sphi 0, %s234
    %s237 = sphi 0, %s236
    %s251 = sphi 0, %s237
    %s259 = sphi 0, %s261
    %s262 = sphi 0, %s259
    %s263 = sphi 0, %s262
    %s279 = sphi 0, %s263
  $region4: #{conv_block_pallas.3} parent=0 // loop_header_branch
    %18 = sbr.rel (%p16) target = $region8
  $region5: #{conv_block_pallas.3} parent=0 // loop_body
    %s20 = ssub.s32 %s15, 1
    %s21 = ssub.s32 %s15, 2
    %s28 = sadd.s32 1, %s23
    %p29 = scmp.ge.s32.totalorder %s28, 2
    %s30 = scalar_select %p29, 0, %s28
    %s31 = sadd.s32 1, %s22
    %s32 = scalar_select %p29, %s31, %s22
    %p33 = scmp.ge.s32.totalorder %s32, 2
    %s34 = scalar_select %p33, 0, %s32
    %s35 = ssub.s32 %s22, %s34
    %s36 = ssub.s32 %s23, %s30
    %s37 = sor.u32 %s35, %s36
    %p38 = scmp.eq.s32.totalorder %s37, 0
    %s40 = sadd.s32 %s39, 1
    %s41 = scalar_select %p38, %s39, %s40
    %p44 = pneg %p38
    %p45 = scmp.eq.s32.totalorder %s15, 3
    %p46 = por %p44, %p45
    %p47 = scmp.ne.s32.totalorder %s39, %s42
    %p48 = scmp.eq.s32.totalorder %s15, 0
    %p49 = por %p47, %p48
    %p50 = scmp.ne.s32.totalorder %s39, %s42
    %p51 = scmp.eq.s32.totalorder %s20, 3
    %p52 = por %p50, %p51
    %p53 = scmp.ne.s32.totalorder %s42, %s43
    %p54 = scmp.eq.s32.totalorder %s20, 0
    %p55 = por %p53, %p54
    %p56 = scmp.ne.s32.totalorder %s42, %s43
    %p57 = scmp.eq.s32.totalorder %s21, 3
    %p58 = por %p56, %p57
    %p60 = scmp.ne.s32.totalorder %s43, %s59
    %p61 = scmp.eq.s32.totalorder %s21, 0
    %p62 = por %p60, %p61
    %s63 = ssub.s32 %s22, %s34
    %s64 = ssub.s32 %s23, %s30
    %s65 = sor.u32 %s63, %s64
    %p66 = scmp.eq.s32.totalorder %s65, 0
    %s68 = sadd.s32 %s67, 1
    %s69 = scalar_select %p66, %s67, %s68
    %p72 = pneg %p66
    %p73 = scmp.eq.s32.totalorder %s15, 3
    %p74 = por %p72, %p73
    %p75 = scmp.ne.s32.totalorder %s67, %s70
    %p76 = scmp.eq.s32.totalorder %s15, 0
    %p77 = por %p75, %p76
    %p78 = scmp.ne.s32.totalorder %s67, %s70
    %p79 = scmp.eq.s32.totalorder %s20, 3
    %p80 = por %p78, %p79
    %p81 = scmp.ne.s32.totalorder %s70, %s71
    %p82 = scmp.eq.s32.totalorder %s20, 0
    %p83 = por %p81, %p82
    %p84 = scmp.ne.s32.totalorder %s70, %s71
    %p85 = scmp.eq.s32.totalorder %s21, 3
    %p86 = por %p84, %p85
    %p88 = scmp.ne.s32.totalorder %s71, %s87
    %p89 = scmp.eq.s32.totalorder %s21, 0
    %p90 = por %p88, %p89
    %s91 = ssub.s32 %s22, %s34
    %p92 = scmp.eq.s32.totalorder %s91, 0
    %s94 = sadd.s32 %s93, 1
    %s95 = scalar_select %p92, %s93, %s94
    %p98 = pneg %p92
    %p99 = scmp.eq.s32.totalorder %s15, 3
    %p100 = por %p98, %p99
    %p101 = scmp.ne.s32.totalorder %s93, %s96
    %p102 = scmp.eq.s32.totalorder %s15, 0
    %p103 = por %p101, %p102
    %p104 = scmp.ne.s32.totalorder %s93, %s96
    %p105 = scmp.eq.s32.totalorder %s20, 3
    %p106 = por %p104, %p105
    %p107 = scmp.ne.s32.totalorder %s96, %s97
    %p108 = scmp.eq.s32.totalorder %s20, 0
    %p109 = por %p107, %p108
    %p110 = scmp.ne.s32.totalorder %s96, %s97
    %p111 = scmp.eq.s32.totalorder %s21, 3
    %p112 = por %p110, %p111
    %p114 = scmp.ne.s32.totalorder %s97, %s113
    %p115 = scmp.eq.s32.totalorder %s21, 0
    %p116 = por %p114, %p115
    %s117 = ssub.s32 %s22, %s34
    %p118 = scmp.eq.s32.totalorder %s117, 0
    %s120 = sadd.s32 %s119, 1
    %s121 = scalar_select %p118, %s119, %s120
    %p124 = pneg %p118
    %p125 = scmp.eq.s32.totalorder %s15, 3
    %p126 = por %p124, %p125
    %p127 = scmp.ne.s32.totalorder %s119, %s122
    %p128 = scmp.eq.s32.totalorder %s15, 0
    %p129 = por %p127, %p128
    %p130 = scmp.ne.s32.totalorder %s119, %s122
    %p131 = scmp.eq.s32.totalorder %s20, 3
    %p132 = por %p130, %p131
    %p133 = scmp.ne.s32.totalorder %s122, %s123
    %p134 = scmp.eq.s32.totalorder %s20, 0
    %p135 = por %p133, %p134
    %p136 = scmp.ne.s32.totalorder %s122, %s123
    %p137 = scmp.eq.s32.totalorder %s21, 3
    %p138 = por %p136, %p137
    %p140 = scmp.ne.s32.totalorder %s123, %s139
    %p141 = scmp.eq.s32.totalorder %s21, 0
    %p142 = por %p140, %p141
    %s144 = sadd.s32 %s143, 1
    %p147 = scmp.eq.s32.totalorder %s15, 3
    %p148 = scmp.ne.s32.totalorder %s143, %s145
    %p149 = scmp.eq.s32.totalorder %s15, 0
    %p150 = por %p148, %p149
    %p151 = scmp.ne.s32.totalorder %s143, %s145
    %p152 = scmp.eq.s32.totalorder %s20, 3
    %p153 = por %p151, %p152
    %p154 = scmp.ne.s32.totalorder %s145, %s146
    %p155 = scmp.eq.s32.totalorder %s20, 0
    %p156 = por %p154, %p155
    %p157 = scmp.ne.s32.totalorder %s145, %s146
    %p158 = scmp.eq.s32.totalorder %s21, 3
    %p159 = por %p157, %p158
    %p161 = scmp.ne.s32.totalorder %s146, %s160
    %p162 = scmp.eq.s32.totalorder %s21, 0
    %p163 = por %p161, %p162
    %s165 = sadd.s32 %s164, 1
    %p168 = scmp.eq.s32.totalorder %s15, 3
    %p169 = scmp.ne.s32.totalorder %s164, %s166
    %p170 = scmp.eq.s32.totalorder %s15, 0
    %p171 = por %p169, %p170
    %p172 = scmp.ne.s32.totalorder %s164, %s166
    %p173 = scmp.eq.s32.totalorder %s20, 3
    %p174 = por %p172, %p173
    %p175 = scmp.ne.s32.totalorder %s166, %s167
    %p176 = scmp.eq.s32.totalorder %s20, 0
    %p177 = por %p175, %p176
    %p178 = scmp.ne.s32.totalorder %s166, %s167
    %p179 = scmp.eq.s32.totalorder %s21, 3
    %p180 = por %p178, %p179
    %p182 = scmp.ne.s32.totalorder %s167, %s181
    %p183 = scmp.eq.s32.totalorder %s21, 0
    %p184 = por %p182, %p183
    %s185 = ssub.s32 %s22, %s34
    %s186 = ssub.s32 %s23, %s30
    %s187 = sor.u32 %s185, %s186
    %p188 = scmp.eq.s32.totalorder %s187, 0
    %s190 = sadd.s32 %s189, 1
    %s191 = scalar_select %p188, %s189, %s190
    %p194 = pneg %p188
    %p195 = scmp.eq.s32.totalorder %s15, 3
    %p196 = por %p194, %p195
    %p197 = scmp.ne.s32.totalorder %s189, %s192
    %p198 = scmp.eq.s32.totalorder %s15, 0
    %p199 = por %p197, %p198
    %p200 = scmp.ne.s32.totalorder %s189, %s192
    %p201 = scmp.eq.s32.totalorder %s20, 3
    %p202 = por %p200, %p201
    %p203 = scmp.ne.s32.totalorder %s192, %s193
    %p204 = scmp.eq.s32.totalorder %s20, 0
    %p205 = por %p203, %p204
    %p206 = scmp.ne.s32.totalorder %s192, %s193
    %p207 = scmp.eq.s32.totalorder %s21, 3
    %p208 = por %p206, %p207
    %p210 = scmp.ne.s32.totalorder %s193, %s209
    %p211 = scmp.eq.s32.totalorder %s21, 0
    %p212 = por %p210, %p211
    %s214 = sadd.s32 %s213, 1
    %p217 = scmp.eq.s32.totalorder %s15, 3
    %p218 = scmp.ne.s32.totalorder %s213, %s215
    %p219 = scmp.eq.s32.totalorder %s15, 0
    %p220 = por %p218, %p219
    %p221 = scmp.ne.s32.totalorder %s213, %s215
    %p222 = scmp.eq.s32.totalorder %s20, 3
    %p223 = por %p221, %p222
    %p224 = scmp.ne.s32.totalorder %s215, %s216
    %p225 = scmp.eq.s32.totalorder %s20, 0
    %p226 = por %p224, %p225
    %p227 = scmp.ne.s32.totalorder %s215, %s216
    %p228 = scmp.eq.s32.totalorder %s21, 3
    %p229 = por %p227, %p228
    %p231 = scmp.ne.s32.totalorder %s216, %s230
    %p232 = scmp.eq.s32.totalorder %s21, 0
    %p233 = por %p231, %p232
    %s235 = sadd.s32 %s234, 1
    %p238 = scmp.eq.s32.totalorder %s15, 3
    %p239 = scmp.ne.s32.totalorder %s234, %s236
    %p240 = scmp.eq.s32.totalorder %s15, 0
    %p241 = por %p239, %p240
    %p242 = scmp.ne.s32.totalorder %s234, %s236
    %p243 = scmp.eq.s32.totalorder %s20, 3
    %p244 = por %p242, %p243
    %p245 = scmp.ne.s32.totalorder %s236, %s237
    %p246 = scmp.eq.s32.totalorder %s20, 0
    %p247 = por %p245, %p246
    %p248 = scmp.ne.s32.totalorder %s236, %s237
    %p249 = scmp.eq.s32.totalorder %s21, 3
    %p250 = por %p248, %p249
    %p252 = scmp.ne.s32.totalorder %s237, %s251
    %p253 = scmp.eq.s32.totalorder %s21, 0
    %p254 = por %p252, %p253
    %s255 = ssub.s32 %s22, %s34
    %s256 = ssub.s32 %s23, %s30
    %s257 = sor.u32 %s255, %s256
    %p258 = scmp.eq.s32.totalorder %s257, 0
    %s260 = sadd.s32 %s259, 1
    %s261 = scalar_select %p258, %s259, %s260
    %p264 = pneg %p258
    %p265 = scmp.eq.s32.totalorder %s15, 3
    %p266 = por %p264, %p265
    %p267 = scmp.ne.s32.totalorder %s259, %s262
    %p268 = scmp.eq.s32.totalorder %s15, 0
    %p269 = por %p267, %p268
    %p270 = scmp.ne.s32.totalorder %s259, %s262
    %p271 = scmp.eq.s32.totalorder %s20, 3
    %p272 = por %p270, %p271
    %p273 = scmp.ne.s32.totalorder %s262, %s263
    %p274 = scmp.eq.s32.totalorder %s20, 0
    %p275 = por %p273, %p274
    %p276 = scmp.ne.s32.totalorder %s262, %s263
    %p277 = scmp.eq.s32.totalorder %s21, 3
    %p278 = por %p276, %p277
    %p280 = scmp.ne.s32.totalorder %s263, %s279
    %p281 = scmp.eq.s32.totalorder %s21, 0
    %p282 = por %p280, %p281
    %p283 = scmp.le.s32.totalorder 1, %s15
    %p284 = scmp.lt.s32.totalorder %s15, 5
    %p285 = pnand %p283, %p284
    %p286 = pneg %p285
    // Predicated region
    $region9: #{conv_block_pallas.3} parent=5 // pred_check
      _
    $region10: #{conv_block_pallas.3} parent=5 // pred_check_branch
      %288 = sbr.rel (%p285) target = $region12
    $region11: #{conv_block_pallas.3} parent=5 // pred_region
      %s289 = ssub.s32 %s15, 1
      // Predicated region
      $region13: #{conv_block_pallas.3} parent=11 // pred_check
        %p290 = pneg %p156
      $region14: #{conv_block_pallas.3} parent=11 // pred_check_branch
        %292 = sbr.rel (%p290) target = $region16
      $region15: #{conv_block_pallas.3} parent=11 // pred_region
        _
      $region16: #{conv_block_pallas.3} parent=11 // pred_fallthru
        _
      // Predicated region
      $region17: #{conv_block_pallas.3} parent=11 // pred_check
        %p293 = pneg %p177
      $region18: #{conv_block_pallas.3} parent=11 // pred_check_branch
        %295 = sbr.rel (%p293) target = $region20
      $region19: #{conv_block_pallas.3} parent=11 // pred_region
        _
      $region20: #{conv_block_pallas.3} parent=11 // pred_fallthru
        _
      // Predicated region
      $region21: #{conv_block_pallas.3} parent=11 // pred_check
        %p296 = pneg %p226
      $region22: #{conv_block_pallas.3} parent=11 // pred_check_branch
        %298 = sbr.rel (%p296) target = $region24
      $region23: #{conv_block_pallas.3} parent=11 // pred_region
        _
      $region24: #{conv_block_pallas.3} parent=11 // pred_fallthru
        _
      // Predicated region
      $region25: #{conv_block_pallas.3} parent=11 // pred_check
        %p299 = pneg %p247
      $region26: #{conv_block_pallas.3} parent=11 // pred_check_branch
        %301 = sbr.rel (%p299) target = $region28
      $region27: #{conv_block_pallas.3} parent=11 // pred_region
        _
      $region28: #{conv_block_pallas.3} parent=11 // pred_fallthru
        _
    $region12: #{conv_block_pallas.3} parent=5 // pred_fallthru
      _
    %p302 = scmp.lt.s32.totalorder %s15, 4
    // Predicated region
    $region29: #{conv_block_pallas.3} parent=5 // pred_check
      %p303 = pneg %p302
    $region30: #{conv_block_pallas.3} parent=5 // pred_check_branch
      %305 = sbr.rel (%p303) target = $region32
    $region31: #{conv_block_pallas.3} parent=5 // pred_region
      // Predicated region
      $region33: #{conv_block_pallas.3} parent=31 // pred_check
        %p306 = pneg %p49
      $region34: #{conv_block_pallas.3} parent=31 // pred_check_branch
        %308 = sbr.rel (%p306) target = $region36
      $region35: #{conv_block_pallas.3} parent=31 // pred_region
        %s309 = smul.u32 8, %s23
        %p310 = scmp.lt.s32.totalorder %s22, 1
        %s311 = scalar_select %p310, %s22, 1
        %p312 = scmp.lt.s32.totalorder %s309, 15
        %s313 = scalar_select %p312, %s309, 15
        %s314 = smul.addr %s313, 2
        %s315 = smul.addr %s311, 32
        %s316 = sadd.s32 %s314, %s315
        %s317 = smul.addr %s316, 8
        %s318 = scalar_lea.vmem %s0, %s317
        %s319 = smul.u32 8, %s23
      $region36: #{conv_block_pallas.3} parent=31 // pred_fallthru
        _
      // Predicated region
      $region37: #{conv_block_pallas.3} parent=31 // pred_check
        %p320 = pneg %p77
      $region38: #{conv_block_pallas.3} parent=31 // pred_check_branch
        %322 = sbr.rel (%p320) target = $region40
      $region39: #{conv_block_pallas.3} parent=31 // pred_region
        %p323 = scmp.lt.s32.totalorder %s22, 1
        %s324 = scalar_select %p323, %s22, 1
        %p325 = scmp.lt.s32.totalorder %s23, 1
        %s326 = scalar_select %p325, %s23, 1
        %s327 = smul.addr %s326, 4
        %s328 = smul.addr %s324, 8
        %s329 = sadd.s32 %s327, %s328
        %s330 = smul.addr %s329, 8
        %s331 = scalar_lea.vmem %s1, %s330
      $region40: #{conv_block_pallas.3} parent=31 // pred_fallthru
        _
      // Predicated region
      $region41: #{conv_block_pallas.3} parent=31 // pred_check
        %p332 = pneg %p103
      $region42: #{conv_block_pallas.3} parent=31 // pred_check_branch
        %334 = sbr.rel (%p332) target = $region44
      $region43: #{conv_block_pallas.3} parent=31 // pred_region
        %p335 = scmp.lt.s32.totalorder %s22, 1
        %s336 = scalar_select %p335, %s22, 1
        %s337 = scalar_lea.vmem %s2, %s336
      $region44: #{conv_block_pallas.3} parent=31 // pred_fallthru
        _
      // Predicated region
      $region45: #{conv_block_pallas.3} parent=31 // pred_check
        %p338 = pneg %p129
      $region46: #{conv_block_pallas.3} parent=31 // pred_check_branch
        %340 = sbr.rel (%p338) target = $region48
      $region47: #{conv_block_pallas.3} parent=31 // pred_region
        %p341 = scmp.lt.s32.totalorder %s22, 1
        %s342 = scalar_select %p341, %s22, 1
        %s343 = scalar_lea.vmem %s3, %s342
      $region48: #{conv_block_pallas.3} parent=31 // pred_fallthru
        _
      // Predicated region
      $region49: #{conv_block_pallas.3} parent=31 // pred_check
        %p344 = pneg %p199
      $region50: #{conv_block_pallas.3} parent=31 // pred_check_branch
        %346 = sbr.rel (%p344) target = $region52
      $region51: #{conv_block_pallas.3} parent=31 // pred_region
        %s347 = smul.u32 8, %s23
        %p348 = scmp.lt.s32.totalorder %s22, 1
        %s349 = scalar_select %p348, %s22, 1
        %p350 = scmp.lt.s32.totalorder %s347, 15
        %s351 = scalar_select %p350, %s347, 15
        %s352 = smul.addr %s351, 2
        %s353 = smul.addr %s349, 32
        %s354 = sadd.s32 %s352, %s353
        %s355 = smul.addr %s354, 8
        %s356 = scalar_lea.vmem %s6, %s355
        %s357 = smul.u32 8, %s23
      $region52: #{conv_block_pallas.3} parent=31 // pred_fallthru
        _
    $region32: #{conv_block_pallas.3} parent=5 // pred_fallthru
      _
    %p358 = scmp.le.s32.totalorder 1, %s15
    %p359 = scmp.lt.s32.totalorder %s15, 5
    %p360 = pnand %p358, %p359
    %p361 = pneg %p360
    // Predicated region
    $region53: #{conv_block_pallas.3} parent=5 // pred_check
      _
    $region54: #{conv_block_pallas.3} parent=5 // pred_check_branch
      %363 = sbr.rel (%p360) target = $region56
    $region55: #{conv_block_pallas.3} parent=5 // pred_region
      %s364 = ssub.s32 %s15, 1
      %s365 = smul.u32 8, %s25
      %p366 = scmp.lt.s32.totalorder %s24, 1
      %s367 = scalar_select %p366, %s24, 1
      %p368 = scmp.lt.s32.totalorder %s365, 15
      %s369 = scalar_select %p368, %s365, 15
      %s370 = smul.addr %s369, 2
      %s371 = smul.addr %s367, 32
      %s372 = sadd.s32 %s370, %s371
      %s373 = smul.addr %s372, 8
      %s374 = scalar_lea.vmem %s0, %s373
      %p375 = pneg %p55
      %p376 = pneg %p52
      %p377 = scmp.lt.s32.totalorder %s24, 1
      %s378 = scalar_select %p377, %s24, 1
      %p379 = scmp.lt.s32.totalorder %s25, 1
      %s380 = scalar_select %p379, %s25, 1
      %s381 = smul.addr %s380, 4
      %s382 = smul.addr %s378, 8
      %s383 = sadd.s32 %s381, %s382
      %s384 = smul.addr %s383, 8
      %s385 = scalar_lea.vmem %s1, %s384
      %p386 = pneg %p83
      %p387 = pneg %p80
      %p388 = scmp.lt.s32.totalorder %s24, 1
      %s389 = scalar_select %p388, %s24, 1
      %s390 = scalar_lea.vmem %s2, %s389
      %p391 = pneg %p109
      %p392 = pneg %p106
      %p393 = scmp.lt.s32.totalorder %s24, 1
      %s394 = scalar_select %p393, %s24, 1
      %s395 = scalar_lea.vmem %s3, %s394
      %p396 = pneg %p135
      %p397 = pneg %p132
      %p398 = pneg %p156
      %p399 = pneg %p153
      %p400 = pneg %p177
      %p401 = pneg %p174
      %s402 = smul.u32 8, %s25
      %p403 = scmp.lt.s32.totalorder %s24, 1
      %s404 = scalar_select %p403, %s24, 1
      %p405 = scmp.lt.s32.totalorder %s402, 15
      %s406 = scalar_select %p405, %s402, 15
      %s407 = smul.addr %s406, 2
      %s408 = smul.addr %s404, 32
      %s409 = sadd.s32 %s407, %s408
      %s410 = smul.addr %s409, 8
      %s411 = scalar_lea.vmem %s6, %s410
      %p412 = pneg %p205
      %p413 = pneg %p202
      %p414 = pneg %p226
      %p415 = pneg %p223
      %p416 = pneg %p247
      %p417 = pneg %p244
      %p418 = pneg %p275
      %p419 = pneg %p272
      %s420 = smul.u32 8, %s25
      %p421 = scmp.lt.s32.totalorder %s24, 1
      %s422 = scalar_select %p421, %s24, 1
      %p423 = scmp.lt.s32.totalorder %s420, 15
      %s424 = scalar_select %p423, %s420, 15
      %s425 = smul.addr %s424, 2
      %s426 = smul.addr %s422, 32
      %s427 = sadd.s32 %s425, %s426
      %s428 = smul.addr %s427, 8
      %s429 = scalar_lea.vmem %s9, %s428
      %s430 = smul.u32 8, %s25
      %p431 = scmp.lt.s32.totalorder %s24, 1
      %s432 = scalar_select %p431, %s24, 1
      %p433 = scmp.lt.s32.totalorder %s430, 15
      %s434 = scalar_select %p433, %s430, 15
      %s435 = smul.addr %s434, 2
      %s436 = smul.addr %s432, 32
      %s437 = sadd.s32 %s435, %s436
      %s438 = smul.addr %s437, 8
      %s439 = scalar_lea.vmem %s0, %s438
      %s440 = smul.u32 8, %s25
      %p441 = scmp.lt.s32.totalorder %s24, 1
      %s442 = scalar_select %p441, %s24, 1
      %p443 = scmp.lt.s32.totalorder %s25, 1
      %s444 = scalar_select %p443, %s25, 1
      %s445 = smul.addr %s444, 4
      %s446 = smul.addr %s442, 8
      %s447 = sadd.s32 %s445, %s446
      %s448 = smul.addr %s447, 8
      %s449 = scalar_lea.vmem %s1, %s448
      %p450 = scmp.lt.s32.totalorder %s24, 1
      %s451 = scalar_select %p450, %s24, 1
      %s452 = scalar_lea.vmem %s2, %s451
      %p453 = scmp.lt.s32.totalorder %s24, 1
      %s454 = scalar_select %p453, %s24, 1
      %s455 = scalar_lea.vmem %s3, %s454
      %s456 = smul.u32 8, %s25
      %p457 = scmp.lt.s32.totalorder %s24, 1
      %s458 = scalar_select %p457, %s24, 1
      %p459 = scmp.lt.s32.totalorder %s456, 15
      %s460 = scalar_select %p459, %s456, 15
      %s461 = smul.addr %s460, 2
      %s462 = smul.addr %s458, 32
      %s463 = sadd.s32 %s461, %s462
      %s464 = smul.addr %s463, 8
      %s465 = scalar_lea.vmem %s6, %s464
      %s466 = smul.u32 8, %s25
      %s467 = smul.u32 8, %s25
      %p468 = scmp.lt.s32.totalorder %s24, 1
      %s469 = scalar_select %p468, %s24, 1
      %p470 = scmp.lt.s32.totalorder %s467, 15
      %s471 = scalar_select %p470, %s467, 15
      %s472 = smul.addr %s471, 2
      %s473 = smul.addr %s469, 32
      %s474 = sadd.s32 %s472, %s473
      %s475 = smul.addr %s474, 8
      %s476 = scalar_lea.vmem %s9, %s475
      %s477 = smul.u32 8, %s25
      %v479 = vld [vmem:[%s452] sm:$0x1]
      %v480 = vld [vmem:[%s455] sm:$0x1]
      %v481 = vld [vmem:[%s439] sm:$0xff]
      %v482 = vld [vmem:[%s439 + $0x8] sm:$0xff]
      %v483 = vld [vmem:[%s439 + $0x10] sm:$0xff]
      %v484 = vld [vmem:[%s439 + $0x18] sm:$0xff]
      %v485 = vld [vmem:[%s439 + $0x20] sm:$0xff]
      %v486 = vld [vmem:[%s439 + $0x28] sm:$0xff]
      %v487 = vld [vmem:[%s439 + $0x30] sm:$0xff]
      %v488 = vld [vmem:[%s439 + $0x38] sm:$0xff]
      %v489 = vld [vmem:[%s439 + $0x40] sm:$0xff]
      %v490 = vld [vmem:[%s439 + $0x48] sm:$0xff]
      %v491 = vld [vmem:[%s439 + $0x50] sm:$0xff]
      %v492 = vld [vmem:[%s439 + $0x58] sm:$0xff]
      %v493 = vld [vmem:[%s439 + $0x60] sm:$0xff]
      %v494 = vld [vmem:[%s439 + $0x68] sm:$0xff]
      %v495 = vld [vmem:[%s439 + $0x70] sm:$0xff]
      %v496 = vld [vmem:[%s439 + $0x78] sm:$0xff]
      %v497 = vld [vmem:[%s449] sm:$0xff]
      %v498 = vld [vmem:[%s449 + $0x8] sm:$0xff]
      %v499 = vld [vmem:[%s449 + $0x10] sm:$0xff]
      %v500 = vld [vmem:[%s449 + $0x18] sm:$0xff]
      %v502 = vlaneseq
      %v503 = vshrl.u32 %v502, 7
      %v504 = vsub.s32 0, %v503
      %v505 = vrot.slane %v479, %v504
      %v507 = vmul.f32 %v481, %v505
      %v508 = vmul.f32 %v482, %v505
      %v509 = vmul.f32 %v483, %v505
      %v510 = vmul.f32 %v484, %v505
      %v511 = vmul.f32 %v485, %v505
      %v512 = vmul.f32 %v486, %v505
      %v513 = vmul.f32 %v487, %v505
      %v514 = vmul.f32 %v488, %v505
      %v515 = vmul.f32 %v489, %v505
      %v516 = vmul.f32 %v490, %v505
      %v517 = vmul.f32 %v491, %v505
      %v518 = vmul.f32 %v492, %v505
      %v519 = vmul.f32 %v493, %v505
      %v520 = vmul.f32 %v494, %v505
      %v521 = vmul.f32 %v495, %v505
      %v522 = vmul.f32 %v496, %v505
      %v524 = vlaneseq
      %v525 = vshrl.u32 %v524, 7
      %v526 = vsub.s32 0, %v525
      %v527 = vrot.slane %v480, %v526
      %v529 = vadd.f32 %v507, %v527
      %v530 = vadd.f32 %v508, %v527
      %v531 = vadd.f32 %v509, %v527
      %v532 = vadd.f32 %v510, %v527
      %v533 = vadd.f32 %v511, %v527
      %v534 = vadd.f32 %v512, %v527
      %v535 = vadd.f32 %v513, %v527
      %v536 = vadd.f32 %v514, %v527
      %v537 = vadd.f32 %v515, %v527
      %v538 = vadd.f32 %v516, %v527
      %v539 = vadd.f32 %v517, %v527
      %v540 = vadd.f32 %v518, %v527
      %v541 = vadd.f32 %v519, %v527
      %v542 = vadd.f32 %v520, %v527
      %v543 = vadd.f32 %v521, %v527
      %v544 = vadd.f32 %v522, %v527
      %v545 = vxor.u32 %v529, 2147483648
      %v546 = vxor.u32 %v530, 2147483648
      %v547 = vxor.u32 %v531, 2147483648
      %v548 = vxor.u32 %v532, 2147483648
      %v549 = vxor.u32 %v533, 2147483648
      %v550 = vxor.u32 %v534, 2147483648
      %v551 = vxor.u32 %v535, 2147483648
      %v552 = vxor.u32 %v536, 2147483648
      %v553 = vxor.u32 %v537, 2147483648
      %v554 = vxor.u32 %v538, 2147483648
      %v555 = vxor.u32 %v539, 2147483648
      %v556 = vxor.u32 %v540, 2147483648
      %v557 = vxor.u32 %v541, 2147483648
      %v558 = vxor.u32 %v542, 2147483648
      %v559 = vxor.u32 %v543, 2147483648
      %v560 = vxor.u32 %v544, 2147483648
      %v561 = vmul.f32 %v545, 1.442695
      %v562 = vpow.pop %v561
      %v563 = vmul.f32 %v546, 1.442695
      %v564 = vpow.pop %v563
      %v565 = vmul.f32 %v547, 1.442695
      %v566 = vpow.pop %v565
      %v567 = vmul.f32 %v548, 1.442695
      %v568 = vpow.pop %v567
      %v569 = vmul.f32 %v549, 1.442695
      %v570 = vpow.pop %v569
      %v571 = vmul.f32 %v550, 1.442695
      %v572 = vpow.pop %v571
      %v573 = vmul.f32 %v551, 1.442695
      %v574 = vpow.pop %v573
      %v575 = vmul.f32 %v552, 1.442695
      %v576 = vpow.pop %v575
      %v577 = vmul.f32 %v553, 1.442695
      %v578 = vpow.pop %v577
      %v579 = vmul.f32 %v554, 1.442695
      %v580 = vpow.pop %v579
      %v581 = vmul.f32 %v555, 1.442695
      %v582 = vpow.pop %v581
      %v583 = vmul.f32 %v556, 1.442695
      %v584 = vpow.pop %v583
      %v585 = vmul.f32 %v557, 1.442695
      %v586 = vpow.pop %v585
      %v587 = vmul.f32 %v558, 1.442695
      %v588 = vpow.pop %v587
      %v589 = vmul.f32 %v559, 1.442695
      %v590 = vpow.pop %v589
      %v591 = vmul.f32 %v560, 1.442695
      %v592 = vpow.pop %v591
      %v593 = vadd.f32 %v562, 1.0
      %v594 = vadd.f32 %v564, 1.0
      %v595 = vadd.f32 %v566, 1.0
      %v596 = vadd.f32 %v568, 1.0
      %v597 = vadd.f32 %v570, 1.0
      %v598 = vadd.f32 %v572, 1.0
      %v599 = vadd.f32 %v574, 1.0
      %v600 = vadd.f32 %v576, 1.0
      %v601 = vadd.f32 %v578, 1.0
      %v602 = vadd.f32 %v580, 1.0
      %v603 = vadd.f32 %v582, 1.0
      %v604 = vadd.f32 %v584, 1.0
      %v605 = vadd.f32 %v586, 1.0
      %v606 = vadd.f32 %v588, 1.0
      %v607 = vadd.f32 %v590, 1.0
      %v608 = vadd.f32 %v592, 1.0
      %v609 = vrcp.pop %v593
      %v610 = vmul.f32 1.0, %v609
      %v611 = vrcp.pop %v594
      %v612 = vmul.f32 1.0, %v611
      %v613 = vrcp.pop %v595
      %v614 = vmul.f32 1.0, %v613
      %v615 = vrcp.pop %v596
      %v616 = vmul.f32 1.0, %v615
      %v617 = vrcp.pop %v597
      %v618 = vmul.f32 1.0, %v617
      %v619 = vrcp.pop %v598
      %v620 = vmul.f32 1.0, %v619
      %v621 = vrcp.pop %v599
      %v622 = vmul.f32 1.0, %v621
      %v623 = vrcp.pop %v600
      %v624 = vmul.f32 1.0, %v623
      %v625 = vrcp.pop %v601
      %v626 = vmul.f32 1.0, %v625
      %v627 = vrcp.pop %v602
      %v628 = vmul.f32 1.0, %v627
      %v629 = vrcp.pop %v603
      %v630 = vmul.f32 1.0, %v629
      %v631 = vrcp.pop %v604
      %v632 = vmul.f32 1.0, %v631
      %v633 = vrcp.pop %v605
      %v634 = vmul.f32 1.0, %v633
      %v635 = vrcp.pop %v606
      %v636 = vmul.f32 1.0, %v635
      %v637 = vrcp.pop %v607
      %v638 = vmul.f32 1.0, %v637
      %v639 = vrcp.pop %v608
      %v640 = vmul.f32 1.0, %v639
      %v641 = vmul.f32 %v529, %v610
      %v642 = vmul.f32 %v530, %v612
      %v643 = vmul.f32 %v531, %v614
      %v644 = vmul.f32 %v532, %v616
      %v645 = vmul.f32 %v533, %v618
      %v646 = vmul.f32 %v534, %v620
      %v647 = vmul.f32 %v535, %v622
      %v648 = vmul.f32 %v536, %v624
      %v649 = vmul.f32 %v537, %v626
      %v650 = vmul.f32 %v538, %v628
      %v651 = vmul.f32 %v539, %v630
      %v652 = vmul.f32 %v540, %v632
      %v653 = vmul.f32 %v541, %v634
      %v654 = vmul.f32 %v542, %v636
      %v655 = vmul.f32 %v543, %v638
      %v656 = vmul.f32 %v544, %v640
      %v657 = vpack.c.bf16 %v642, %v641
      %v658 = vpack.c.bf16 %v644, %v643
      %v659 = vpack.c.bf16 %v646, %v645
      %v660 = vpack.c.bf16 %v648, %v647
      %v661 = vpack.c.bf16 %v650, %v649
      %v662 = vpack.c.bf16 %v652, %v651
      %v663 = vpack.c.bf16 %v654, %v653
      %v664 = vpack.c.bf16 %v656, %v655
      %v673 = vunpack.c.l.b16 %v657
      %v674 = vunpack.c.h.b16 %v657
      %v675 = vunpack.c.l.b16 %v658
      %v676 = vunpack.c.h.b16 %v658
      %v677 = vunpack.c.l.b16 %v659
      %v678 = vunpack.c.h.b16 %v659
      %v679 = vunpack.c.l.b16 %v660
      %v680 = vunpack.c.h.b16 %v660
      %v681 = vunpack.c.l.b16 %v661
      %v682 = vunpack.c.h.b16 %v661
      %v683 = vunpack.c.l.b16 %v662
      %v684 = vunpack.c.h.b16 %v662
      %v685 = vunpack.c.l.b16 %v663
      %v686 = vunpack.c.h.b16 %v663
      %v687 = vunpack.c.l.b16 %v664
      %v688 = vunpack.c.h.b16 %v664
      %v689 = vpack.c.b16 %v673, %v673
      %v690 = vpack.c.b16 %v674, %v674
      %v691 = vpack.c.b16 %v675, %v675
      %v692 = vpack.c.b16 %v676, %v676
      %v693 = vpack.c.b16 %v677, %v677
      %v694 = vpack.c.b16 %v678, %v678
      %v695 = vpack.c.b16 %v679, %v679
      %v696 = vpack.c.b16 %v680, %v680
      %v697 = vpack.c.b16 %v681, %v681
      %v698 = vpack.c.b16 %v682, %v682
      %v699 = vpack.c.b16 %v683, %v683
      %v700 = vpack.c.b16 %v684, %v684
      %v701 = vpack.c.b16 %v685, %v685
      %v702 = vpack.c.b16 %v686, %v686
      %v703 = vpack.c.b16 %v687, %v687
      %v704 = vpack.c.b16 %v688, %v688
      %s721 = scalar_lea.vmem [#allocation2], 8
      %vm722 = vcmask 60416
      %723 = vst.msk [vmem:[%s721] sm:$0xf] %vm722, %v689
      %724 = vst.msk [vmem:[%s721 + $0x4] sm:$0xf] %vm722, %v690
      %725 = vst.msk [vmem:[%s721 + $0x8] sm:$0xf] %vm722, %v691
      %726 = vst.msk [vmem:[%s721 + $0xc] sm:$0xf] %vm722, %v692
      %727 = vst.msk [vmem:[%s721 + $0x10] sm:$0xf] %vm722, %v693
      %728 = vst.msk [vmem:[%s721 + $0x14] sm:$0xf] %vm722, %v694
      %729 = vst.msk [vmem:[%s721 + $0x18] sm:$0xf] %vm722, %v695
      %730 = vst.msk [vmem:[%s721 + $0x1c] sm:$0xf] %vm722, %v696
      %731 = vst.msk [vmem:[%s721 + $0x20] sm:$0xf] %vm722, %v697
      %732 = vst.msk [vmem:[%s721 + $0x24] sm:$0xf] %vm722, %v698
      %733 = vst.msk [vmem:[%s721 + $0x28] sm:$0xf] %vm722, %v699
      %734 = vst.msk [vmem:[%s721 + $0x2c] sm:$0xf] %vm722, %v700
      %735 = vst.msk [vmem:[%s721 + $0x30] sm:$0xf] %vm722, %v701
      %736 = vst.msk [vmem:[%s721 + $0x34] sm:$0xf] %vm722, %v702
      %737 = vst.msk [vmem:[%s721 + $0x38] sm:$0xf] %vm722, %v703
      %738 = vst.msk [vmem:[%s721 + $0x3c] sm:$0xf] %vm722, %v704
      %v739 = vmul.f32 %v497, %v505
      %v740 = vmul.f32 %v498, %v505
      %v741 = vadd.f32 %v739, %v527
      %v742 = vadd.f32 %v740, %v527
      %v743 = vxor.u32 %v741, 2147483648
      %v744 = vxor.u32 %v742, 2147483648
      %v745 = vmul.f32 %v743, 1.442695
      %v746 = vpow.pop %v745
      %v747 = vmul.f32 %v744, 1.442695
      %v748 = vpow.pop %v747
      %v749 = vadd.f32 %v746, 1.0
      %v750 = vadd.f32 %v748, 1.0
      %v751 = vrcp.pop %v749
      %v752 = vmul.f32 1.0, %v751
      %v753 = vrcp.pop %v750
      %v754 = vmul.f32 1.0, %v753
      %v755 = vmul.f32 %v741, %v752
      %v756 = vmul.f32 %v742, %v754
      %v757 = vpack.c.bf16 %v756, %v755
      %v758 = vmul.f32 %v499, %v505
      %v759 = vmul.f32 %v500, %v505
      %v760 = vadd.f32 %v758, %v527
      %v761 = vadd.f32 %v759, %v527
      %v762 = vxor.u32 %v760, 2147483648
      %v763 = vxor.u32 %v761, 2147483648
      %v764 = vmul.f32 %v762, 1.442695
      %v765 = vpow.pop %v764
      %v766 = vmul.f32 %v763, 1.442695
      %v767 = vpow.pop %v766
      %v768 = vadd.f32 %v765, 1.0
      %v769 = vadd.f32 %v767, 1.0
      %v770 = vrcp.pop %v768
      %v771 = vmul.f32 1.0, %v770
      %v772 = vrcp.pop %v769
      %v773 = vmul.f32 1.0, %v772
      %v774 = vmul.f32 %v760, %v771
      %v775 = vmul.f32 %v761, %v773
      %v776 = vpack.c.bf16 %v775, %v774
      %p777 = scmp.gt.s32.totalorder %s25, 0
      %s778 = scalar_select %p777, 1, 0
      %v779 = vstv %s778
      %vm780 = vcmp.eq.s32.totalorder %v779, 1
      %v781 = vsel %vm780, %v757, 0
      %v783 = vunpack.c.l.b16 %v781
      %v784 = vunpack.c.h.b16 %v781
      %v785 = vpack.c.b16 %v783, %v783
      %v786 = vpack.c.b16 %v784, %v784
      %789 = vst.msk [vmem:[#allocation2] sm:$0xf] %vm722, %v785
      %790 = vst.msk [vmem:[#allocation2 + $0x4] sm:$0xf] %vm722, %v786
      %p791 = scmp.lt.s32.totalorder %s25, 1
      %s792 = scalar_select %p791, 1, 0
      %v793 = vstv %s792
      %vm794 = vcmp.eq.s32.totalorder %v793, 1
      %v795 = vsel %vm794, %v776, 0
      %v797 = vunpack.c.l.b16 %v795
      %v798 = vunpack.c.h.b16 %v795
      %v799 = vpack.c.b16 %v797, %v797
      %v800 = vpack.c.b16 %v798, %v798
      %s803 = scalar_lea.vmem [#allocation2], 72
      %804 = vst.msk [vmem:[%s803] sm:$0xf] %vm722, %v799
      %805 = vst.msk [vmem:[%s803 + $0x4] sm:$0xf] %vm722, %v800
      %v806 = vld [vmem:[%s5] sm:$0x1]
      %v807 = vld [vmem:[#allocation2] sm:$0xf]
      %v808 = vld [vmem:[#allocation2 + $0x4] sm:$0xf]
      %v809 = vld [vmem:[#allocation2 + $0x8] sm:$0xf]
      %v810 = vld [vmem:[#allocation2 + $0xc] sm:$0xf]
      %v811 = vld [vmem:[#allocation2 + $0x10] sm:$0xf]
      %v812 = vld [vmem:[#allocation2 + $0x14] sm:$0xf]
      %v813 = vld [vmem:[#allocation2 + $0x18] sm:$0xf]
      %v814 = vld [vmem:[#allocation2 + $0x1c] sm:$0xf]
      %v815 = vld [vmem:[#allocation2 + $0x20] sm:$0xf]
      %v816 = vld [vmem:[#allocation2 + $0x24] sm:$0xf]
      %v817 = vld [vmem:[#allocation2 + $0x28] sm:$0xf]
      %v818 = vld [vmem:[#allocation2 + $0x2c] sm:$0xf]
      %v819 = vld [vmem:[#allocation2 + $0x30] sm:$0xf]
      %v820 = vld [vmem:[#allocation2 + $0x34] sm:$0xf]
      %v821 = vld [vmem:[#allocation2 + $0x38] sm:$0xf]
      %v822 = vld [vmem:[#allocation2 + $0x3c] sm:$0xf]
      %v823 = vld [vmem:[%s4] sm:$0xf]
      %v825 = vlaneseq
      %v826 = vshrl.u32 %v825, 7
      %v827 = vsub.s32 0, %v826
      %v828 = vrot.slane %v806, %v827
      %v846 = vunpack.c.l.b16 %v807
      %v847 = vunpack.c.l.b16 %v808
      %v848 = vunpack.c.l.b16 %v809
      %v849 = vunpack.c.l.b16 %v810
      %v850 = vunpack.c.l.b16 %v811
      %v851 = vunpack.c.l.b16 %v812
      %v852 = vunpack.c.l.b16 %v813
      %v853 = vunpack.c.l.b16 %v814
      %v854 = vunpack.c.l.b16 %v815
      %v855 = vunpack.c.l.b16 %v816
      %v856 = vunpack.c.l.b16 %v817
      %v857 = vunpack.c.l.b16 %v818
      %v858 = vunpack.c.l.b16 %v819
      %v859 = vunpack.c.l.b16 %v820
      %v860 = vunpack.c.l.b16 %v821
      %v861 = vunpack.c.l.b16 %v822
      %v862 = vpack.c.b16 %v847, %v846
      %v863 = vpack.c.b16 %v849, %v848
      %v864 = vpack.c.b16 %v851, %v850
      %v865 = vpack.c.b16 %v853, %v852
      %v866 = vpack.c.b16 %v855, %v854
      %v867 = vpack.c.b16 %v857, %v856
      %v868 = vpack.c.b16 %v859, %v858
      %v869 = vpack.c.b16 %v861, %v860
      %vm870 = vcmask 64512
      %v872 = vsel %vm870, %v862, 0
      %v875 = vsel %vm870, %v863, 0
      %v878 = vsel %vm870, %v864, 0
      %v881 = vsel %vm870, %v865, 0
      %v884 = vsel %vm870, %v866, 0
      %v887 = vsel %vm870, %v867, 0
      %v890 = vsel %vm870, %v868, 0
      %v893 = vsel %vm870, %v869, 0
      %vm895 = vcmask 1043456
      %v897 = vsel %vm895, %v823, 0
      %899 = vmatprep.subr.bf16.mxu0 0
      %900 = vmatpush1.bf16.msra.mxu0 0
      %901 = vmatprep.subr.bf16.mxu0 0
      %902 = vmatpush1.bf16.msra.mxu0 0
      %903 = vmatprep.subr.bf16.mxu0 0
      %904 = vmatpush1.bf16.msra.mxu0 0
      %905 = vmatprep.subr.bf16.mxu0 0
      %906 = vmatpush1.bf16.msra.mxu0 0
      %907 = vmatprep.subr.bf16.mxu0 0
      %908 = vmatpush1.bf16.msra.mxu0 0
      %909 = vmatprep.subr.bf16.mxu0 0
      %910 = vmatpush1.bf16.msra.mxu0 0
      %911 = vmatprep.subr.bf16.mxu0 0
      %912 = vmatpush1.bf16.msra.mxu0 0
      %913 = vmatprep.subr.bf16.mxu0 0
      %914 = vmatpush1.bf16.msra.mxu0 %v897
      %915 = vmatprep.subr.bf16.mxu0 0
      %916 = vmatpush2.bf16.msra.mxu0 0
      %917 = vmatprep.subr.bf16.mxu0 0
      %918 = vmatpush2.bf16.msra.mxu0 0
      %919 = vmatprep.subr.bf16.mxu0 0
      %920 = vmatpush2.bf16.msra.mxu0 0
      %921 = vmatprep.subr.bf16.mxu0 0
      %922 = vmatpush2.bf16.msra.mxu0 0
      %923 = vmatprep.subr.bf16.mxu0 0
      %924 = vmatpush2.bf16.msra.mxu0 0
      %925 = vmatprep.subr.bf16.mxu0 0
      %926 = vmatpush2.bf16.msra.mxu0 0
      %927 = vmatprep.subr.bf16.mxu0 0
      %928 = vmatpush2.bf16.msra.mxu0 0
      %929 = vmatprep.subr.bf16.mxu0 0
      %930 = vmatpush2.bf16.msra.mxu0 0
      %931 = vmatprep.mubr.bf16.mxu0 0
      %932 = vmatmul.mubr.bf16.gmra.mxu0 %v872
      %v933 = vpop.f32.mrf.mxu0
      %v934 = vadd.f32 %v828, %v933
      %v935 = vpop.f32.mrf.mxu0
      %v936 = vpop.f32.mrf.mxu0
      %v937 = vadd.f32 %v828, %v936
      %v938 = vpop.f32.mrf.mxu0
      %939 = vmatprep.mubr.bf16.mxu0 0
      %940 = vmatmul.mubr.bf16.gmra.mxu0 %v875
      %v941 = vpop.f32.mrf.mxu0
      %v942 = vadd.f32 %v828, %v941
      %v943 = vpop.f32.mrf.mxu0
      %v944 = vpop.f32.mrf.mxu0
      %v945 = vadd.f32 %v828, %v944
      %v946 = vpop.f32.mrf.mxu0
      %947 = vmatprep.mubr.bf16.mxu0 0
      %948 = vmatmul.mubr.bf16.gmra.mxu0 %v878
      %v949 = vpop.f32.mrf.mxu0
      %v950 = vadd.f32 %v828, %v949
      %v951 = vpop.f32.mrf.mxu0
      %v952 = vpop.f32.mrf.mxu0
      %v953 = vadd.f32 %v828, %v952
      %v954 = vpop.f32.mrf.mxu0
      %955 = vmatprep.mubr.bf16.mxu0 0
      %956 = vmatmul.mubr.bf16.gmra.mxu0 %v881
      %v957 = vpop.f32.mrf.mxu0
      %v958 = vadd.f32 %v828, %v957
      %v959 = vpop.f32.mrf.mxu0
      %v960 = vpop.f32.mrf.mxu0
      %v961 = vadd.f32 %v828, %v960
      %v962 = vpop.f32.mrf.mxu0
      %963 = vmatprep.mubr.bf16.mxu0 0
      %964 = vmatmul.mubr.bf16.gmra.mxu0 %v884
      %v965 = vpop.f32.mrf.mxu0
      %v966 = vadd.f32 %v828, %v965
      %v967 = vpop.f32.mrf.mxu0
      %v968 = vpop.f32.mrf.mxu0
      %v969 = vadd.f32 %v828, %v968
      %v970 = vpop.f32.mrf.mxu0
      %971 = vmatprep.mubr.bf16.mxu0 0
      %972 = vmatmul.mubr.bf16.gmra.mxu0 %v887
      %v973 = vpop.f32.mrf.mxu0
      %v974 = vadd.f32 %v828, %v973
      %v975 = vpop.f32.mrf.mxu0
      %v976 = vpop.f32.mrf.mxu0
      %v977 = vadd.f32 %v828, %v976
      %v978 = vpop.f32.mrf.mxu0
      %979 = vmatprep.mubr.bf16.mxu0 0
      %980 = vmatmul.mubr.bf16.gmra.mxu0 %v890
      %v981 = vpop.f32.mrf.mxu0
      %v982 = vadd.f32 %v828, %v981
      %v983 = vpop.f32.mrf.mxu0
      %v984 = vpop.f32.mrf.mxu0
      %v985 = vadd.f32 %v828, %v984
      %v986 = vpop.f32.mrf.mxu0
      %987 = vmatprep.mubr.bf16.mxu0 0
      %988 = vmatmul.mubr.bf16.gmra.mxu0 %v893
      %v989 = vpop.f32.mrf.mxu0
      %v990 = vadd.f32 %v828, %v989
      %v991 = vpop.f32.mrf.mxu0
      %v992 = vpop.f32.mrf.mxu0
      %v993 = vadd.f32 %v828, %v992
      %v994 = vpop.f32.mrf.mxu0
      %995 = vdwg.mxu0
      %v996 = vld [vmem:[%s721] sm:$0xf]
      %v997 = vld [vmem:[%s721 + $0x4] sm:$0xf]
      %v998 = vld [vmem:[%s721 + $0x8] sm:$0xf]
      %v999 = vld [vmem:[%s721 + $0xc] sm:$0xf]
      %v1000 = vld [vmem:[%s721 + $0x10] sm:$0xf]
      %v1001 = vld [vmem:[%s721 + $0x14] sm:$0xf]
      %v1002 = vld [vmem:[%s721 + $0x18] sm:$0xf]
      %v1003 = vld [vmem:[%s721 + $0x1c] sm:$0xf]
      %v1004 = vld [vmem:[%s721 + $0x20] sm:$0xf]
      %v1005 = vld [vmem:[%s721 + $0x24] sm:$0xf]
      %v1006 = vld [vmem:[%s721 + $0x28] sm:$0xf]
      %v1007 = vld [vmem:[%s721 + $0x2c] sm:$0xf]
      %v1008 = vld [vmem:[%s721 + $0x30] sm:$0xf]
      %v1009 = vld [vmem:[%s721 + $0x34] sm:$0xf]
      %v1010 = vld [vmem:[%s721 + $0x38] sm:$0xf]
      %v1011 = vld [vmem:[%s721 + $0x3c] sm:$0xf]
      %s1012 = scalar_lea.vmem %s4, 4
      %v1013 = vld [vmem:[%s1012] sm:$0xf]
      %v1030 = vunpack.c.l.b16 %v996
      %v1031 = vunpack.c.l.b16 %v997
      %v1032 = vunpack.c.l.b16 %v998
      %v1033 = vunpack.c.l.b16 %v999
      %v1034 = vunpack.c.l.b16 %v1000
      %v1035 = vunpack.c.l.b16 %v1001
      %v1036 = vunpack.c.l.b16 %v1002
      %v1037 = vunpack.c.l.b16 %v1003
      %v1038 = vunpack.c.l.b16 %v1004
      %v1039 = vunpack.c.l.b16 %v1005
      %v1040 = vunpack.c.l.b16 %v1006
      %v1041 = vunpack.c.l.b16 %v1007
      %v1042 = vunpack.c.l.b16 %v1008
      %v1043 = vunpack.c.l.b16 %v1009
      %v1044 = vunpack.c.l.b16 %v1010
      %v1045 = vunpack.c.l.b16 %v1011
      %v1046 = vpack.c.b16 %v1031, %v1030
      %v1047 = vpack.c.b16 %v1033, %v1032
      %v1048 = vpack.c.b16 %v1035, %v1034
      %v1049 = vpack.c.b16 %v1037, %v1036
      %v1050 = vpack.c.b16 %v1039, %v1038
      %v1051 = vpack.c.b16 %v1041, %v1040
      %v1052 = vpack.c.b16 %v1043, %v1042
      %v1053 = vpack.c.b16 %v1045, %v1044
      %v1055 = vsel %vm870, %v1046, 0
      %v1058 = vsel %vm870, %v1047, 0
      %v1061 = vsel %vm870, %v1048, 0
      %v1064 = vsel %vm870, %v1049, 0
      %v1067 = vsel %vm870, %v1050, 0
      %v1070 = vsel %vm870, %v1051, 0
      %v1073 = vsel %vm870, %v1052, 0
      %v1076 = vsel %vm870, %v1053, 0
      %v1079 = vsel %vm895, %v1013, 0
      %1081 = vmatprep.subr.bf16.mxu0 0
      %1082 = vmatpush1.bf16.msra.mxu0 0
      %1083 = vmatprep.subr.bf16.mxu0 0
      %1084 = vmatpush1.bf16.msra.mxu0 0
      %1085 = vmatprep.subr.bf16.mxu0 0
      %1086 = vmatpush1.bf16.msra.mxu0 0
      %1087 = vmatprep.subr.bf16.mxu0 0
      %1088 = vmatpush1.bf16.msra.mxu0 0
      %1089 = vmatprep.subr.bf16.mxu0 0
      %1090 = vmatpush1.bf16.msra.mxu0 0
      %1091 = vmatprep.subr.bf16.mxu0 0
      %1092 = vmatpush1.bf16.msra.mxu0 0
      %1093 = vmatprep.subr.bf16.mxu0 0
      %1094 = vmatpush1.bf16.msra.mxu0 0
      %1095 = vmatprep.subr.bf16.mxu0 0
      %1096 = vmatpush1.bf16.msra.mxu0 %v1079
      %1097 = vmatprep.subr.bf16.mxu0 0
      %1098 = vmatpush2.bf16.msra.mxu0 0
      %1099 = vmatprep.subr.bf16.mxu0 0
      %1100 = vmatpush2.bf16.msra.mxu0 0
      %1101 = vmatprep.subr.bf16.mxu0 0
      %1102 = vmatpush2.bf16.msra.mxu0 0
      %1103 = vmatprep.subr.bf16.mxu0 0
      %1104 = vmatpush2.bf16.msra.mxu0 0
      %1105 = vmatprep.subr.bf16.mxu0 0
      %1106 = vmatpush2.bf16.msra.mxu0 0
      %1107 = vmatprep.subr.bf16.mxu0 0
      %1108 = vmatpush2.bf16.msra.mxu0 0
      %1109 = vmatprep.subr.bf16.mxu0 0
      %1110 = vmatpush2.bf16.msra.mxu0 0
      %1111 = vmatprep.subr.bf16.mxu0 0
      %1112 = vmatpush2.bf16.msra.mxu0 0
      %1113 = vmatprep.mubr.bf16.mxu0 0
      %1114 = vmatmul.mubr.bf16.gmra.mxu0 %v1055
      %v1115 = vpop.f32.mrf.mxu0
      %v1116 = vadd.f32 0.0, %v1115
      %v1117 = vpop.f32.mrf.mxu0
      %v1118 = vpop.f32.mrf.mxu0
      %v1119 = vadd.f32 0.0, %v1118
      %v1120 = vpop.f32.mrf.mxu0
      %1121 = vmatprep.mubr.bf16.mxu0 0
      %1122 = vmatmul.mubr.bf16.gmra.mxu0 %v1058
      %v1123 = vpop.f32.mrf.mxu0
      %v1124 = vadd.f32 0.0, %v1123
      %v1125 = vpop.f32.mrf.mxu0
      %v1126 = vpop.f32.mrf.mxu0
      %v1127 = vadd.f32 0.0, %v1126
      %v1128 = vpop.f32.mrf.mxu0
      %1129 = vmatprep.mubr.bf16.mxu0 0
      %1130 = vmatmul.mubr.bf16.gmra.mxu0 %v1061
      %v1131 = vpop.f32.mrf.mxu0
      %v1132 = vadd.f32 0.0, %v1131
      %v1133 = vpop.f32.mrf.mxu0
      %v1134 = vpop.f32.mrf.mxu0
      %v1135 = vadd.f32 0.0, %v1134
      %v1136 = vpop.f32.mrf.mxu0
      %1137 = vmatprep.mubr.bf16.mxu0 0
      %1138 = vmatmul.mubr.bf16.gmra.mxu0 %v1064
      %v1139 = vpop.f32.mrf.mxu0
      %v1140 = vadd.f32 0.0, %v1139
      %v1141 = vpop.f32.mrf.mxu0
      %v1142 = vpop.f32.mrf.mxu0
      %v1143 = vadd.f32 0.0, %v1142
      %v1144 = vpop.f32.mrf.mxu0
      %1145 = vmatprep.mubr.bf16.mxu0 0
      %1146 = vmatmul.mubr.bf16.gmra.mxu0 %v1067
      %v1147 = vpop.f32.mrf.mxu0
      %v1148 = vadd.f32 0.0, %v1147
      %v1149 = vpop.f32.mrf.mxu0
      %v1150 = vpop.f32.mrf.mxu0
      %v1151 = vadd.f32 0.0, %v1150
      %v1152 = vpop.f32.mrf.mxu0
      %1153 = vmatprep.mubr.bf16.mxu0 0
      %1154 = vmatmul.mubr.bf16.gmra.mxu0 %v1070
      %v1155 = vpop.f32.mrf.mxu0
      %v1156 = vadd.f32 0.0, %v1155
      %v1157 = vpop.f32.mrf.mxu0
      %v1158 = vpop.f32.mrf.mxu0
      %v1159 = vadd.f32 0.0, %v1158
      %v1160 = vpop.f32.mrf.mxu0
      %1161 = vmatprep.mubr.bf16.mxu0 0
      %1162 = vmatmul.mubr.bf16.gmra.mxu0 %v1073
      %v1163 = vpop.f32.mrf.mxu0
      %v1164 = vadd.f32 0.0, %v1163
      %v1165 = vpop.f32.mrf.mxu0
      %v1166 = vpop.f32.mrf.mxu0
      %v1167 = vadd.f32 0.0, %v1166
      %v1168 = vpop.f32.mrf.mxu0
      %1169 = vmatprep.mubr.bf16.mxu0 0
      %1170 = vmatmul.mubr.bf16.gmra.mxu0 %v1076
      %v1171 = vpop.f32.mrf.mxu0
      %v1172 = vadd.f32 0.0, %v1171
      %v1173 = vpop.f32.mrf.mxu0
      %v1174 = vpop.f32.mrf.mxu0
      %v1175 = vadd.f32 0.0, %v1174
      %v1176 = vpop.f32.mrf.mxu0
      %1177 = vdwg.mxu0
      %v1178 = vadd.f32 %v934, %v1116
      %v1179 = vadd.f32 %v937, %v1119
      %v1180 = vadd.f32 %v942, %v1124
      %v1181 = vadd.f32 %v945, %v1127
      %v1182 = vadd.f32 %v950, %v1132
      %v1183 = vadd.f32 %v953, %v1135
      %v1184 = vadd.f32 %v958, %v1140
      %v1185 = vadd.f32 %v961, %v1143
      %v1186 = vadd.f32 %v966, %v1148
      %v1187 = vadd.f32 %v969, %v1151
      %v1188 = vadd.f32 %v974, %v1156
      %v1189 = vadd.f32 %v977, %v1159
      %v1190 = vadd.f32 %v982, %v1164
      %v1191 = vadd.f32 %v985, %v1167
      %v1192 = vadd.f32 %v990, %v1172
      %v1193 = vadd.f32 %v993, %v1175
      %s1194 = scalar_lea.vmem [#allocation2], 16
      %v1195 = vld [vmem:[%s1194] sm:$0xf]
      %v1196 = vld [vmem:[%s1194 + $0x4] sm:$0xf]
      %v1197 = vld [vmem:[%s1194 + $0x8] sm:$0xf]
      %v1198 = vld [vmem:[%s1194 + $0xc] sm:$0xf]
      %v1199 = vld [vmem:[%s1194 + $0x10] sm:$0xf]
      %v1200 = vld [vmem:[%s1194 + $0x14] sm:$0xf]
      %v1201 = vld [vmem:[%s1194 + $0x18] sm:$0xf]
      %v1202 = vld [vmem:[%s1194 + $0x1c] sm:$0xf]
      %v1203 = vld [vmem:[%s1194 + $0x20] sm:$0xf]
      %v1204 = vld [vmem:[%s1194 + $0x24] sm:$0xf]
      %v1205 = vld [vmem:[%s1194 + $0x28] sm:$0xf]
      %v1206 = vld [vmem:[%s1194 + $0x2c] sm:$0xf]
      %v1207 = vld [vmem:[%s1194 + $0x30] sm:$0xf]
      %v1208 = vld [vmem:[%s1194 + $0x34] sm:$0xf]
      %v1209 = vld [vmem:[%s1194 + $0x38] sm:$0xf]
      %v1210 = vld [vmem:[%s1194 + $0x3c] sm:$0xf]
      %s1211 = scalar_lea.vmem %s4, 8
      %v1212 = vld [vmem:[%s1211] sm:$0xf]
      %v1229 = vunpack.c.l.b16 %v1195
      %v1230 = vunpack.c.l.b16 %v1196
      %v1231 = vunpack.c.l.b16 %v1197
      %v1232 = vunpack.c.l.b16 %v1198
      %v1233 = vunpack.c.l.b16 %v1199
      %v1234 = vunpack.c.l.b16 %v1200
      %v1235 = vunpack.c.l.b16 %v1201
      %v1236 = vunpack.c.l.b16 %v1202
      %v1237 = vunpack.c.l.b16 %v1203
      %v1238 = vunpack.c.l.b16 %v1204
      %v1239 = vunpack.c.l.b16 %v1205
      %v1240 = vunpack.c.l.b16 %v1206
      %v1241 = vunpack.c.l.b16 %v1207
      %v1242 = vunpack.c.l.b16 %v1208
      %v1243 = vunpack.c.l.b16 %v1209
      %v1244 = vunpack.c.l.b16 %v1210
      %v1245 = vpack.c.b16 %v1230, %v1229
      %v1246 = vpack.c.b16 %v1232, %v1231
      %v1247 = vpack.c.b16 %v1234, %v1233
      %v1248 = vpack.c.b16 %v1236, %v1235
      %v1249 = vpack.c.b16 %v1238, %v1237
      %v1250 = vpack.c.b16 %v1240, %v1239
      %v1251 = vpack.c.b16 %v1242, %v1241
      %v1252 = vpack.c.b16 %v1244, %v1243
      %v1254 = vsel %vm870, %v1245, 0
      %v1257 = vsel %vm870, %v1246, 0
      %v1260 = vsel %vm870, %v1247, 0
      %v1263 = vsel %vm870, %v1248, 0
      %v1266 = vsel %vm870, %v1249, 0
      %v1269 = vsel %vm870, %v1250, 0
      %v1272 = vsel %vm870, %v1251, 0
      %v1275 = vsel %vm870, %v1252, 0
      %v1278 = vsel %vm895, %v1212, 0
      %1280 = vmatprep.subr.bf16.mxu0 0
      %1281 = vmatpush1.bf16.msra.mxu0 0
      %1282 = vmatprep.subr.bf16.mxu0 0
      %1283 = vmatpush1.bf16.msra.mxu0 0
      %1284 = vmatprep.subr.bf16.mxu0 0
      %1285 = vmatpush1.bf16.msra.mxu0 0
      %1286 = vmatprep.subr.bf16.mxu0 0
      %1287 = vmatpush1.bf16.msra.mxu0 0
      %1288 = vmatprep.subr.bf16.mxu0 0
      %1289 = vmatpush1.bf16.msra.mxu0 0
      %1290 = vmatprep.subr.bf16.mxu0 0
      %1291 = vmatpush1.bf16.msra.mxu0 0
      %1292 = vmatprep.subr.bf16.mxu0 0
      %1293 = vmatpush1.bf16.msra.mxu0 0
      %1294 = vmatprep.subr.bf16.mxu0 0
      %1295 = vmatpush1.bf16.msra.mxu0 %v1278
      %1296 = vmatprep.subr.bf16.mxu0 0
      %1297 = vmatpush2.bf16.msra.mxu0 0
      %1298 = vmatprep.subr.bf16.mxu0 0
      %1299 = vmatpush2.bf16.msra.mxu0 0
      %1300 = vmatprep.subr.bf16.mxu0 0
      %1301 = vmatpush2.bf16.msra.mxu0 0
      %1302 = vmatprep.subr.bf16.mxu0 0
      %1303 = vmatpush2.bf16.msra.mxu0 0
      %1304 = vmatprep.subr.bf16.mxu0 0
      %1305 = vmatpush2.bf16.msra.mxu0 0
      %1306 = vmatprep.subr.bf16.mxu0 0
      %1307 = vmatpush2.bf16.msra.mxu0 0
      %1308 = vmatprep.subr.bf16.mxu0 0
      %1309 = vmatpush2.bf16.msra.mxu0 0
      %1310 = vmatprep.subr.bf16.mxu0 0
      %1311 = vmatpush2.bf16.msra.mxu0 0
      %1312 = vmatprep.mubr.bf16.mxu0 0
      %1313 = vmatmul.mubr.bf16.gmra.mxu0 %v1254
      %v1314 = vpop.f32.mrf.mxu0
      %v1315 = vadd.f32 0.0, %v1314
      %v1316 = vpop.f32.mrf.mxu0
      %v1317 = vpop.f32.mrf.mxu0
      %v1318 = vadd.f32 0.0, %v1317
      %v1319 = vpop.f32.mrf.mxu0
      %1320 = vmatprep.mubr.bf16.mxu0 0
      %1321 = vmatmul.mubr.bf16.gmra.mxu0 %v1257
      %v1322 = vpop.f32.mrf.mxu0
      %v1323 = vadd.f32 0.0, %v1322
      %v1324 = vpop.f32.mrf.mxu0
      %v1325 = vpop.f32.mrf.mxu0
      %v1326 = vadd.f32 0.0, %v1325
      %v1327 = vpop.f32.mrf.mxu0
      %1328 = vmatprep.mubr.bf16.mxu0 0
      %1329 = vmatmul.mubr.bf16.gmra.mxu0 %v1260
      %v1330 = vpop.f32.mrf.mxu0
      %v1331 = vadd.f32 0.0, %v1330
      %v1332 = vpop.f32.mrf.mxu0
      %v1333 = vpop.f32.mrf.mxu0
      %v1334 = vadd.f32 0.0, %v1333
      %v1335 = vpop.f32.mrf.mxu0
      %1336 = vmatprep.mubr.bf16.mxu0 0
      %1337 = vmatmul.mubr.bf16.gmra.mxu0 %v1263
      %v1338 = vpop.f32.mrf.mxu0
      %v1339 = vadd.f32 0.0, %v1338
      %v1340 = vpop.f32.mrf.mxu0
      %v1341 = vpop.f32.mrf.mxu0
      %v1342 = vadd.f32 0.0, %v1341
      %v1343 = vpop.f32.mrf.mxu0
      %1344 = vmatprep.mubr.bf16.mxu0 0
      %1345 = vmatmul.mubr.bf16.gmra.mxu0 %v1266
      %v1346 = vpop.f32.mrf.mxu0
      %v1347 = vadd.f32 0.0, %v1346
      %v1348 = vpop.f32.mrf.mxu0
      %v1349 = vpop.f32.mrf.mxu0
      %v1350 = vadd.f32 0.0, %v1349
      %v1351 = vpop.f32.mrf.mxu0
      %1352 = vmatprep.mubr.bf16.mxu0 0
      %1353 = vmatmul.mubr.bf16.gmra.mxu0 %v1269
      %v1354 = vpop.f32.mrf.mxu0
      %v1355 = vadd.f32 0.0, %v1354
      %v1356 = vpop.f32.mrf.mxu0
      %v1357 = vpop.f32.mrf.mxu0
      %v1358 = vadd.f32 0.0, %v1357
      %v1359 = vpop.f32.mrf.mxu0
      %1360 = vmatprep.mubr.bf16.mxu0 0
      %1361 = vmatmul.mubr.bf16.gmra.mxu0 %v1272
      %v1362 = vpop.f32.mrf.mxu0
      %v1363 = vadd.f32 0.0, %v1362
      %v1364 = vpop.f32.mrf.mxu0
      %v1365 = vpop.f32.mrf.mxu0
      %v1366 = vadd.f32 0.0, %v1365
      %v1367 = vpop.f32.mrf.mxu0
      %1368 = vmatprep.mubr.bf16.mxu0 0
      %1369 = vmatmul.mubr.bf16.gmra.mxu0 %v1275
      %v1370 = vpop.f32.mrf.mxu0
      %v1371 = vadd.f32 0.0, %v1370
      %v1372 = vpop.f32.mrf.mxu0
      %v1373 = vpop.f32.mrf.mxu0
      %v1374 = vadd.f32 0.0, %v1373
      %v1375 = vpop.f32.mrf.mxu0
      %1376 = vdwg.mxu0
      %v1377 = vadd.f32 %v1178, %v1315
      %v1378 = vadd.f32 %v1179, %v1318
      %v1379 = vadd.f32 %v1180, %v1323
      %v1380 = vadd.f32 %v1181, %v1326
      %v1381 = vadd.f32 %v1182, %v1331
      %v1382 = vadd.f32 %v1183, %v1334
      %v1383 = vadd.f32 %v1184, %v1339
      %v1384 = vadd.f32 %v1185, %v1342
      %v1385 = vadd.f32 %v1186, %v1347
      %v1386 = vadd.f32 %v1187, %v1350
      %v1387 = vadd.f32 %v1188, %v1355
      %v1388 = vadd.f32 %v1189, %v1358
      %v1389 = vadd.f32 %v1190, %v1363
      %v1390 = vadd.f32 %v1191, %v1366
      %v1391 = vadd.f32 %v1192, %v1371
      %v1392 = vadd.f32 %v1193, %v1374
      %v1393 = vld [vmem:[%s465] sm:$0xff]
      %v1394 = vld [vmem:[%s465 + $0x8] sm:$0xff]
      %v1395 = vld [vmem:[%s465 + $0x10] sm:$0xff]
      %v1396 = vld [vmem:[%s465 + $0x18] sm:$0xff]
      %v1397 = vld [vmem:[%s465 + $0x20] sm:$0xff]
      %v1398 = vld [vmem:[%s465 + $0x28] sm:$0xff]
      %v1399 = vld [vmem:[%s465 + $0x30] sm:$0xff]
      %v1400 = vld [vmem:[%s465 + $0x38] sm:$0xff]
      %v1401 = vld [vmem:[%s465 + $0x40] sm:$0xff]
      %v1402 = vld [vmem:[%s465 + $0x48] sm:$0xff]
      %v1403 = vld [vmem:[%s465 + $0x50] sm:$0xff]
      %v1404 = vld [vmem:[%s465 + $0x58] sm:$0xff]
      %v1405 = vld [vmem:[%s465 + $0x60] sm:$0xff]
      %v1406 = vld [vmem:[%s465 + $0x68] sm:$0xff]
      %v1407 = vld [vmem:[%s465 + $0x70] sm:$0xff]
      %v1408 = vld [vmem:[%s465 + $0x78] sm:$0xff]
      %v1409 = vpack.c.bf16 %v1394, %v1393
      %v1410 = vpack.c.bf16 %v1396, %v1395
      %v1411 = vpack.c.bf16 %v1398, %v1397
      %v1412 = vpack.c.bf16 %v1400, %v1399
      %v1413 = vpack.c.bf16 %v1402, %v1401
      %v1414 = vpack.c.bf16 %v1404, %v1403
      %v1415 = vpack.c.bf16 %v1406, %v1405
      %v1416 = vpack.c.bf16 %v1408, %v1407
      %v1417 = vld [vmem:[%s7] sm:$0x3]
      %v1418 = vld [vmem:[%s8] sm:$0x1]
      %v1420 = vlaneseq
      %v1421 = vshrl.u32 %v1420, 7
      %v1422 = vsub.s32 0, %v1421
      %v1423 = vrot.slane %v1418, %v1422
      %vm1425 = vcmask 31744
      %v1427 = vsel %vm1425, %v1409, 0
      %v1430 = vsel %vm1425, %v1410, 0
      %v1433 = vsel %vm1425, %v1411, 0
      %v1436 = vsel %vm1425, %v1412, 0
      %v1439 = vsel %vm1425, %v1413, 0
      %v1442 = vsel %vm1425, %v1414, 0
      %v1445 = vsel %vm1425, %v1415, 0
      %v1448 = vsel %vm1425, %v1416, 0
      %vm1450 = vcmask 1041408
      %v1452 = vsel %vm1450, %v1417, 0
      %1454 = vmatprep.subr.bf16.mxu0 0
      %1455 = vmatpush1.bf16.msra.mxu0 0
      %1456 = vmatprep.subr.bf16.mxu0 0
      %1457 = vmatpush1.bf16.msra.mxu0 0
      %1458 = vmatprep.subr.bf16.mxu0 0
      %1459 = vmatpush1.bf16.msra.mxu0 0
      %1460 = vmatprep.subr.bf16.mxu0 0
      %1461 = vmatpush1.bf16.msra.mxu0 0
      %1462 = vmatprep.subr.bf16.mxu0 0
      %1463 = vmatpush1.bf16.msra.mxu0 0
      %1464 = vmatprep.subr.bf16.mxu0 0
      %1465 = vmatpush1.bf16.msra.mxu0 0
      %1466 = vmatprep.subr.bf16.mxu0 0
      %1467 = vmatpush1.bf16.msra.mxu0 0
      %1468 = vmatprep.subr.bf16.mxu0 0
      %1469 = vmatpush1.bf16.msra.mxu0 %v1452
      %1470 = vmatprep.subr.bf16.mxu0 0
      %1471 = vmatpush2.bf16.msra.mxu0 0
      %1472 = vmatprep.subr.bf16.mxu0 0
      %1473 = vmatpush2.bf16.msra.mxu0 0
      %1474 = vmatprep.subr.bf16.mxu0 0
      %1475 = vmatpush2.bf16.msra.mxu0 0
      %1476 = vmatprep.subr.bf16.mxu0 0
      %1477 = vmatpush2.bf16.msra.mxu0 0
      %1478 = vmatprep.subr.bf16.mxu0 0
      %1479 = vmatpush2.bf16.msra.mxu0 0
      %1480 = vmatprep.subr.bf16.mxu0 0
      %1481 = vmatpush2.bf16.msra.mxu0 0
      %1482 = vmatprep.subr.bf16.mxu0 0
      %1483 = vmatpush2.bf16.msra.mxu0 0
      %1484 = vmatprep.subr.bf16.mxu0 0
      %1485 = vmatpush2.bf16.msra.mxu0 0
      %1486 = vmatprep.mubr.bf16.mxu0 0
      %1487 = vmatmul.mubr.bf16.gmra.mxu0 %v1427
      %v1488 = vpop.f32.mrf.mxu0
      %v1489 = vadd.f32 %v1423, %v1488
      %v1490 = vpop.f32.mrf.mxu0
      %v1491 = vpop.f32.mrf.mxu0
      %v1492 = vadd.f32 %v1423, %v1491
      %v1493 = vpop.f32.mrf.mxu0
      %1494 = vmatprep.mubr.bf16.mxu0 0
      %1495 = vmatmul.mubr.bf16.gmra.mxu0 %v1430
      %v1496 = vpop.f32.mrf.mxu0
      %v1497 = vadd.f32 %v1423, %v1496
      %v1498 = vpop.f32.mrf.mxu0
      %v1499 = vpop.f32.mrf.mxu0
      %v1500 = vadd.f32 %v1423, %v1499
      %v1501 = vpop.f32.mrf.mxu0
      %1502 = vmatprep.mubr.bf16.mxu0 0
      %1503 = vmatmul.mubr.bf16.gmra.mxu0 %v1433
      %v1504 = vpop.f32.mrf.mxu0
      %v1505 = vadd.f32 %v1423, %v1504
      %v1506 = vpop.f32.mrf.mxu0
      %v1507 = vpop.f32.mrf.mxu0
      %v1508 = vadd.f32 %v1423, %v1507
      %v1509 = vpop.f32.mrf.mxu0
      %1510 = vmatprep.mubr.bf16.mxu0 0
      %1511 = vmatmul.mubr.bf16.gmra.mxu0 %v1436
      %v1512 = vpop.f32.mrf.mxu0
      %v1513 = vadd.f32 %v1423, %v1512
      %v1514 = vpop.f32.mrf.mxu0
      %v1515 = vpop.f32.mrf.mxu0
      %v1516 = vadd.f32 %v1423, %v1515
      %v1517 = vpop.f32.mrf.mxu0
      %1518 = vmatprep.mubr.bf16.mxu0 0
      %1519 = vmatmul.mubr.bf16.gmra.mxu0 %v1439
      %v1520 = vpop.f32.mrf.mxu0
      %v1521 = vadd.f32 %v1423, %v1520
      %v1522 = vpop.f32.mrf.mxu0
      %v1523 = vpop.f32.mrf.mxu0
      %v1524 = vadd.f32 %v1423, %v1523
      %v1525 = vpop.f32.mrf.mxu0
      %1526 = vmatprep.mubr.bf16.mxu0 0
      %1527 = vmatmul.mubr.bf16.gmra.mxu0 %v1442
      %v1528 = vpop.f32.mrf.mxu0
      %v1529 = vadd.f32 %v1423, %v1528
      %v1530 = vpop.f32.mrf.mxu0
      %v1531 = vpop.f32.mrf.mxu0
      %v1532 = vadd.f32 %v1423, %v1531
      %v1533 = vpop.f32.mrf.mxu0
      %1534 = vmatprep.mubr.bf16.mxu0 0
      %1535 = vmatmul.mubr.bf16.gmra.mxu0 %v1445
      %v1536 = vpop.f32.mrf.mxu0
      %v1537 = vadd.f32 %v1423, %v1536
      %v1538 = vpop.f32.mrf.mxu0
      %v1539 = vpop.f32.mrf.mxu0
      %v1540 = vadd.f32 %v1423, %v1539
      %v1541 = vpop.f32.mrf.mxu0
      %1542 = vmatprep.mubr.bf16.mxu0 0
      %1543 = vmatmul.mubr.bf16.gmra.mxu0 %v1448
      %v1544 = vpop.f32.mrf.mxu0
      %v1545 = vadd.f32 %v1423, %v1544
      %v1546 = vpop.f32.mrf.mxu0
      %v1547 = vpop.f32.mrf.mxu0
      %v1548 = vadd.f32 %v1423, %v1547
      %v1549 = vpop.f32.mrf.mxu0
      %1550 = vdwg.mxu0
      %v1551 = vadd.f32 %v1377, %v1489
      %v1552 = vadd.f32 %v1378, %v1492
      %v1553 = vadd.f32 %v1379, %v1497
      %v1554 = vadd.f32 %v1380, %v1500
      %v1555 = vadd.f32 %v1381, %v1505
      %v1556 = vadd.f32 %v1382, %v1508
      %v1557 = vadd.f32 %v1383, %v1513
      %v1558 = vadd.f32 %v1384, %v1516
      %v1559 = vadd.f32 %v1385, %v1521
      %v1560 = vadd.f32 %v1386, %v1524
      %v1561 = vadd.f32 %v1387, %v1529
      %v1562 = vadd.f32 %v1388, %v1532
      %v1563 = vadd.f32 %v1389, %v1537
      %v1564 = vadd.f32 %v1390, %v1540
      %v1565 = vadd.f32 %v1391, %v1545
      %v1566 = vadd.f32 %v1392, %v1548
      %1567 = vst.msk [vmem:[%s476] sm:$0xff] %vm870, %v1551
      %1568 = vst.msk [vmem:[%s476 + $0x8] sm:$0xff] %vm870, %v1552
      %1569 = vst.msk [vmem:[%s476 + $0x10] sm:$0xff] %vm870, %v1553
      %1570 = vst.msk [vmem:[%s476 + $0x18] sm:$0xff] %vm870, %v1554
      %1571 = vst.msk [vmem:[%s476 + $0x20] sm:$0xff] %vm870, %v1555
      %1572 = vst.msk [vmem:[%s476 + $0x28] sm:$0xff] %vm870, %v1556
      %1573 = vst.msk [vmem:[%s476 + $0x30] sm:$0xff] %vm870, %v1557
      %1574 = vst.msk [vmem:[%s476 + $0x38] sm:$0xff] %vm870, %v1558
      %1575 = vst.msk [vmem:[%s476 + $0x40] sm:$0xff] %vm870, %v1559
      %1576 = vst.msk [vmem:[%s476 + $0x48] sm:$0xff] %vm870, %v1560
      %1577 = vst.msk [vmem:[%s476 + $0x50] sm:$0xff] %vm870, %v1561
      %1578 = vst.msk [vmem:[%s476 + $0x58] sm:$0xff] %vm870, %v1562
      %1579 = vst.msk [vmem:[%s476 + $0x60] sm:$0xff] %vm870, %v1563
      %1580 = vst.msk [vmem:[%s476 + $0x68] sm:$0xff] %vm870, %v1564
      %1581 = vst.msk [vmem:[%s476 + $0x70] sm:$0xff] %vm870, %v1565
      %1582 = vst.msk [vmem:[%s476 + $0x78] sm:$0xff] %vm870, %v1566
      %s1583 = smul.u32 8, %s25
      %p1584 = scmp.lt.s32.totalorder %s24, 1
      %s1585 = scalar_select %p1584, %s24, 1
      %p1586 = scmp.lt.s32.totalorder %s1583, 15
      %s1587 = scalar_select %p1586, %s1583, 15
      %s1588 = smul.addr %s1587, 2
      %s1589 = smul.addr %s1585, 32
      %s1590 = sadd.s32 %s1588, %s1589
      %s1591 = smul.addr %s1590, 8
      %s1592 = scalar_lea.vmem %s9, %s1591
      // Predicated region
      $region57: #{conv_block_pallas.3} parent=55 // pred_check
        %p1593 = pneg %p272
      $region58: #{conv_block_pallas.3} parent=55 // pred_check_branch
        %1595 = sbr.rel (%p1593) target = $region60
      $region59: #{conv_block_pallas.3} parent=55 // pred_region
        %s1596 = smul.u32 8, %s25
      $region60: #{conv_block_pallas.3} parent=55 // pred_fallthru
        _
    $region56: #{conv_block_pallas.3} parent=5 // pred_fallthru
      _
    %p1597 = scmp.le.s32.totalorder 2, %s15
    // Predicated region
    $region61: #{conv_block_pallas.3} parent=5 // pred_check
      %p1598 = pneg %p1597
    $region62: #{conv_block_pallas.3} parent=5 // pred_check_branch
      %1600 = sbr.rel (%p1598) target = $region64
    $region63: #{conv_block_pallas.3} parent=5 // pred_region
      %s1601 = ssub.s32 %s15, 2
      // Predicated region
      $region65: #{conv_block_pallas.3} parent=63 // pred_check
        %p1602 = pneg %p278
      $region66: #{conv_block_pallas.3} parent=63 // pred_check_branch
        %1604 = sbr.rel (%p1602) target = $region68
      $region67: #{conv_block_pallas.3} parent=63 // pred_region
        %s1605 = smul.u32 8, %s27
        %p1606 = scmp.lt.s32.totalorder %s26, 1
        %s1607 = scalar_select %p1606, %s26, 1
        %p1608 = scmp.lt.s32.totalorder %s1605, 15
        %s1609 = scalar_select %p1608, %s1605, 15
        %s1610 = smul.addr %s1609, 2
        %s1611 = smul.addr %s1607, 32
        %s1612 = sadd.s32 %s1610, %s1611
        %s1613 = smul.addr %s1612, 8
        %s1614 = scalar_lea.vmem %s9, %s1613
      $region68: #{conv_block_pallas.3} parent=63 // pred_fallthru
        _
    $region64: #{conv_block_pallas.3} parent=5 // pred_fallthru
      _
  $region6: #{conv_block_pallas.3} parent=0 // loop_footer
    %s19 = sadd.s32 1, %s15
  $region7: #{conv_block_pallas.3} parent=0 // loop_footer_branch
    %14 = sbr.rel target = $region3
  $region8: #{conv_block_pallas.3} parent=0 // loop_exit
    _

</llo_original>
